<compile_context>
chip_gen: v7x
topology: tpu7x:2x2x1
jax: 0.10.0
libtpu: 0.0.40
codegen_flags: <defaults>
</compile_context>

<pallas_src>
import math
from functools import partial

import jax
import jax.numpy as jnp
from jax import lax
from jax.experimental import pallas as pl
from jax.experimental.pallas import tpu as pltpu

# Module constants (hardcoded in the PyTorch file)
D_K = 128
D_V = 128
D_MODEL = 128
N_HEADS = 32
LN_EPS = 1e-5
NEG_INF = -1e9


def _pick_tile(dim, preferred):
    """Largest tile <= preferred that divides dim (falls back to full dim)."""
    if dim <= preferred:
        return dim
    for t in (preferred, 1024, 512, 256, 128, 64, 32, 16, 8):
        if t <= preferred and dim % t == 0:
            return t
    # Awkward dimension: one whole block.  Fail loudly rather than silently
    # producing a block that blows scoped VMEM.
    assert dim <= 4096, f"no tile <= {preferred} divides {dim}; pad the input"
    return dim


def _compiler_params(semantics, est_bytes):
    """CompilerParams with an explicit scoped-VMEM budget (32..48 MiB)."""
    limit = int(min(48 * 1024 * 1024, max(32 * 1024 * 1024, int(1.5 * est_bytes))))
    return pltpu.CompilerParams(dimension_semantics=semantics,
                                vmem_limit_bytes=limit)


# ---------------------------------------------------------------------------
# Kernel 1: linear projection  y = x @ w.
# w is bf16 and stays fully VMEM-resident; grid is over rows only, so the
# weight is DMA'd once per call and the (tiny) activation streams past it.
# ---------------------------------------------------------------------------
def _matmul_kernel(x_ref, w_ref, o_ref):
    o_ref[...] = jnp.dot(
        x_ref[...].astype(jnp.bfloat16),
        w_ref[...],
        preferred_element_type=jnp.float32,
    ).astype(o_ref.dtype)


def matmul_tiled(x, w, out_dtype=jnp.bfloat16, tm_pref=256):
    M, K = x.shape
    K2, N = w.shape
    assert K == K2
    tm = _pick_tile(M, tm_pref)
    est = 2 * (tm * K * x.dtype.itemsize
               + K * N * w.dtype.itemsize
               + tm * N * jnp.dtype(out_dtype).itemsize)
    return pl.pallas_call(
        _matmul_kernel,
        out_shape=jax.ShapeDtypeStruct((M, N), out_dtype),
        grid_spec=pltpu.PrefetchScalarGridSpec(
            num_scalar_prefetch=0,
            grid=(M // tm,),
            in_specs=[
                pl.BlockSpec((tm, K), lambda i: (i, 0)),
                pl.BlockSpec((K, N), lambda i: (0, 0)),   # weight resident
            ],
            out_specs=pl.BlockSpec((tm, N), lambda i: (i, 0)),
        ),
        compiler_params=_compiler_params(("parallel",), est),
    )(x, w)


# ---------------------------------------------------------------------------
# Kernel 2: scaled-dot-product attention.
# Grid = (batch, head-block).  Heads are sliced straight out of the
# [B, L, H*d_k]-layout projections via the BlockSpec index_map (no transposes).
# The 1/sqrt(d_k) scale is already folded into the Q projection weights.
# ---------------------------------------------------------------------------
def _attention_kernel(q_ref, k_ref, v_ref, bias_ref, ctx_ref, attn_ref, *, hb, dk, dv):
    bias = bias_ref[0].astype(jnp.float32)        # [L, L] additive mask bias

    def head_body(h, carry):
        qo = pl.multiple_of(h * dk, 128)
        vo = pl.multiple_of(h * dv, 128)
        q = q_ref[0, :, pl.ds(qo, dk)]            # [L, dk] bf16
        k = k_ref[0, :, pl.ds(qo, dk)]            # [L, dk] bf16
        v = v_ref[0, :, pl.ds(vo, dv)]            # [L, dv] bf16
        # q @ k^T via trans-B contraction; no materialized transpose of k.
        s = lax.dot_general(q, k, (((1,), (1,)), ((), ())),
                            preferred_element_type=jnp.float32)
        s = s + bias
        m = jnp.max(s, axis=-1, keepdims=True)
        e = jnp.exp(s - m)
        p = e * pl.reciprocal(jnp.sum(e, axis=-1, keepdims=True), approx=True)
        ctx = jnp.dot(p.astype(jnp.bfloat16), v, preferred_element_type=jnp.float32)
        ctx_ref[0, :, pl.ds(vo, dv)] = ctx.astype(ctx_ref.dtype)
        attn_ref[0, pl.ds(h, 1)] = p[None].astype(attn_ref.dtype)
        return carry

    # fori_loop (not a Python for): bounds the [L,L] temporaries per head and
    # stays visible to the LLO scheduler.
    lax.fori_loop(0, hb, head_body, 0, unroll=True)


def scaled_dot_product_attention(q_src, k_src, v_src, bias, *,
                                 q_off, k_off, v_off, n_heads, heads_per_block):
    B, L, _ = q_src.shape
    HB = heads_per_block
    kernel = partial(_attention_kernel, hb=HB, dk=D_K, dv=D_V)
    blk_bytes = (2 * L * HB * D_K * 2 + L * HB * D_V * 2      # q, k, v (bf16)
                 + L * L * 2                                   # bias (bf16)
                 + L * HB * D_V * 2                            # ctx out (bf16)
                 + HB * L * L * 2)                             # attn out (bf16)
    est = 2 * blk_bytes + 4 * L * L * 4                        # + f32 temporaries
    ctx, attn = pl.pallas_call(
        kernel,
        out_shape=(
            jax.ShapeDtypeStruct((B, L, n_heads * D_V), jnp.bfloat16),
            jax.ShapeDtypeStruct((B, n_heads, L, L), jnp.bfloat16),
        ),
        grid_spec=pltpu.PrefetchScalarGridSpec(
            num_scalar_prefetch=0,
            grid=(B, n_heads // HB),
            in_specs=[
                pl.BlockSpec((1, L, HB * D_K), lambda b, h: (b, 0, q_off + h)),
                pl.BlockSpec((1, L, HB * D_K), lambda b, h: (b, 0, k_off + h)),
                pl.BlockSpec((1, L, HB * D_V), lambda b, h: (b, 0, v_off + h)),
                pl.BlockSpec((1, L, L),        lambda b, h: (b, 0, 0)),
            ],
            out_specs=(
                pl.BlockSpec((1, L, HB * D_V), lambda b, h: (b, 0, h)),
                pl.BlockSpec((1, HB, L, L),    lambda b, h: (b, h, 0, 0)),
            ),
        ),
        compiler_params=_compiler_params(("parallel", "parallel"), est),
    )(q_src, k_src, v_src, bias)
    return ctx, attn


# ---------------------------------------------------------------------------
# Kernel 3: output projection + residual + LayerNorm (gamma=1, beta=0).
# Tiled over rows, W_fc stays resident; two-pass mean/variance.
# ---------------------------------------------------------------------------
def _out_kernel(ctx_ref, wfc_ref, res_ref, o_ref):
    y = jnp.dot(ctx_ref[...], wfc_ref[...],
                preferred_element_type=jnp.float32) + res_ref[...]
    mean = jnp.mean(y, axis=-1, keepdims=True)
    xc = y - mean
    var = jnp.mean(xc * xc, axis=-1, keepdims=True)
    o_ref[...] = xc * lax.rsqrt(var + LN_EPS)


def out_proj_residual_ln(ctx2d, w_fc, res2d, tm_pref=256):
    M, KF = ctx2d.shape
    _, N = w_fc.shape
    tm = _pick_tile(M, tm_pref)
    est = 2 * (tm * KF * 2 + KF * N * 2 + tm * N * 4 + tm * N * 4)
    return pl.pallas_call(
        _out_kernel,
        out_shape=jax.ShapeDtypeStruct((M, N), jnp.float32),
        grid_spec=pltpu.PrefetchScalarGridSpec(
            num_scalar_prefetch=0,
            grid=(M // tm,),
            in_specs=[
                pl.BlockSpec((tm, KF), lambda i: (i, 0)),
                pl.BlockSpec((KF, N), lambda i: (0, 0)),    # W_fc resident
                pl.BlockSpec((tm, N), lambda i: (i, 0)),
            ],
            out_specs=pl.BlockSpec((tm, N), lambda i: (i, 0)),
        ),
        compiler_params=_compiler_params(("parallel",), est),
    )(ctx2d, w_fc, res2d)


# ---------------------------------------------------------------------------
# Full MultiHeadAttention forward (takes *prepared* bf16 params)
# ---------------------------------------------------------------------------
def multi_head_attention(params, input_Q, input_K, input_V, attn_mask):
    """
    input_Q/K/V: [B, L, d_model] float32
    attn_mask:   [B, L, L] bool (True = masked)
    returns (output [B, L, d_model] f32, attn [B, n_heads, L, L] bf16)
    """
    B, L, _ = input_Q.shape
    M = B * L
    H = N_HEADS
    HB = 8 if L < 512 else 4         # smaller head-block at long L (VMEM budget)
    while H % HB:
        HB //= 2

    residual2d = input_Q.reshape(M, D_MODEL)
    # Additive mask bias in bf16: one add in-kernel, half the DMA of f32.
    bias = jnp.where(attn_mask, jnp.float32(NEG_INF),
                     jnp.float32(0.0)).astype(jnp.bfloat16)

    w_qkv = params["W_QKV_T"]                              # bf16 [d_model, 3*H*d_k]
    if (input_K is input_Q) and (input_V is input_Q):
        # Fused QKV projection: x read from HBM once, single pallas_call.
        qkv = matmul_tiled(residual2d, w_qkv).reshape(B, L, 3 * H * D_K)
        nb = H // HB                                       # head-blocks per projection
        ctx, attn = scaled_dot_product_attention(
            qkv, qkv, qkv, bias,
            q_off=0, k_off=nb, v_off=2 * nb, n_heads=H, heads_per_block=HB)
    else:
        Wq = w_qkv[:, :H * D_K]
        Wk = w_qkv[:, H * D_K:2 * H * D_K]
        Wv = w_qkv[:, 2 * H * D_K:]
        Qf = matmul_tiled(input_Q.reshape(M, D_MODEL), Wq).reshape(B, L, H * D_K)
        Kf = matmul_tiled(input_K.reshape(M, D_MODEL), Wk).reshape(B, L, H * D_K)
        Vf = matmul_tiled(input_V.reshape(M, D_MODEL), Wv).reshape(B, L, H * D_V)
        ctx, attn = scaled_dot_product_attention(
            Qf, Kf, Vf, bias,
            q_off=0, k_off=0, v_off=0, n_heads=H, heads_per_block=HB)

    out2d = out_proj_residual_ln(ctx.reshape(M, H * D_V),
                                 params["W_fc_T"], residual2d)
    return out2d.reshape(B, L, D_MODEL), attn


def init_params(key):
    """Canonical f32 weights matching the PyTorch module (x @ W^T layout)."""
    k1, k2 = jax.random.split(key, 2)
    scale = 0.02
    return {
        "W_QKV_T": scale * jax.random.normal(
            k1, (D_MODEL, 3 * N_HEADS * D_K), jnp.float32),
        "W_fc_T": scale * jax.random.normal(
            k2, (N_HEADS * D_V, D_MODEL), jnp.float32),
    }


def prepare_params(params):
    """Cast weights to bf16 once and fold 1/sqrt(d_k) into the Q projection."""
    w_qkv = params["W_QKV_T"]
    sm_scale = 1.0 / math.sqrt(D_K)
    wq = (w_qkv[:, :N_HEADS * D_K] * sm_scale)             # fold in f32, then cast
    w_qkv_bf16 = jnp.concatenate(
        [wq, w_qkv[:, N_HEADS * D_K:]], axis=1).astype(jnp.bfloat16)
    return {
        "W_QKV_T": w_qkv_bf16,
        "W_fc_T": params["W_fc_T"].astype(jnp.bfloat16),
    }


# ---------------------------------------------------------------------------
# Pure-JAX f32 reference (mirrors the PyTorch module) for validation
# ---------------------------------------------------------------------------
def reference(params, iq, ik, iv, mask):
    H = N_HEADS
    Wq = params["W_QKV_T"][:, :H * D_K]
    Wk = params["W_QKV_T"][:, H * D_K:2 * H * D_K]
    Wv = params["W_QKV_T"][:, 2 * H * D_K:]
    B, L, _ = iq.shape
    Q = (iq.reshape(-1, D_MODEL) @ Wq).reshape(B, L, H, D_K).transpose(0, 2, 1, 3)
    K = (ik.reshape(-1, D_MODEL) @ Wk).reshape(B, L, H, D_K).transpose(0, 2, 1, 3)
    V = (iv.reshape(-1, D_MODEL) @ Wv).reshape(B, L, H, D_V).transpose(0, 2, 1, 3)
    scores = jnp.einsum("bhqd,bhkd->bhqk", Q, K) / math.sqrt(D_K)
    scores = jnp.where(mask[:, None], jnp.float32(NEG_INF), scores)
    attn = jax.nn.softmax(scores, axis=-1)
    ctx = jnp.einsum("bhqk,bhkd->bhqd", attn, V)
    ctx = ctx.transpose(0, 2, 1, 3).reshape(B, L, H * D_V)
    out = ctx @ params["W_fc_T"] + iq
    mean = out.mean(-1, keepdims=True)
    var = ((out - mean) ** 2).mean(-1, keepdims=True)
    return (out - mean) / jnp.sqrt(var + LN_EPS), attn


if __name__ == "__main__":
    key = jax.random.PRNGKey(0)
    kp, kq, kk, kv = jax.random.split(key, 4)

    B, L = 2, 8
    params_f32 = init_params(kp)
    kparams = prepare_params(params_f32)
    x = jax.random.normal(kq, (B, L, D_MODEL), jnp.float32)
    input_K = jax.random.normal(kk, (B, L, D_MODEL), jnp.float32)
    input_V = jax.random.normal(kv, (B, L, D_MODEL), jnp.float32)
    idx = jnp.arange(L)
    attn_mask = jnp.broadcast_to(idx[None, :] > idx[:, None], (B, L, L))

    # Path 1: self-attention (fused QKV projection)
    out_sa, attn_sa = multi_head_attention(kparams, x, x, x, attn_mask)
    # Path 2: distinct Q/K/V inputs (separate projections)
    out_ca, attn_ca = multi_head_attention(kparams, x, input_K, input_V, attn_mask)
    jax.block_until_ready((out_sa, attn_sa, out_ca, attn_ca))

    assert out_sa.shape == (B, L, D_MODEL) and attn_sa.shape == (B, N_HEADS, L, L)
    assert out_ca.shape == (B, L, D_MODEL) and attn_ca.shape == (B, N_HEADS, L, L)

    # Validate against f32 reference (bf16 MXU + bf16 attn + approx reciprocal
    # => loose tolerances)
    ref_out_sa, ref_attn_sa = reference(params_f32, x, x, x, attn_mask)
    ref_out_ca, ref_attn_ca = reference(params_f32, x, input_K, input_V, attn_mask)
    attn_sa_f32 = attn_sa.astype(jnp.float32)
    attn_ca_f32 = attn_ca.astype(jnp.float32)
    assert float(jnp.max(jnp.abs(out_sa - ref_out_sa))) < 0.2
    assert float(jnp.max(jnp.abs(attn_sa_f32 - ref_attn_sa))) < 0.05
    assert float(jnp.max(jnp.abs(out_ca - ref_out_ca))) < 0.2
    assert float(jnp.max(jnp.abs(attn_ca_f32 - ref_attn_ca))) < 0.05
    assert bool(jnp.all(jnp.isfinite(out_sa))) and bool(jnp.all(jnp.isfinite(out_ca)))

    print("KERNEL_OK")
</pallas_src>

<mosaic_0001>
module attributes {stable_mosaic.version = 11 : i64} {
  func.func @_matmul_kernel(%arg0: i32, %arg1: memref<16x128xf32, #tpu.memory_space<vmem>>, %arg2: memref<128x12288xbf16, #tpu.memory_space<vmem>>, %arg3: memref<16x12288xbf16, #tpu.memory_space<vmem>>) attributes {dimension_semantics = [#tpu.dimension_semantics<parallel>], iteration_bounds = array<i64: 1>, scalar_prefetch = 0 : i64, scratch_operands = 0 : i64, tpu.core_type = #tpu.core_type<tc>, window_params = [{transform_indices = @transform_0, window_bounds = array<i64: 16, 128>}, {pipeline_mode = #tpu.pipeline_mode<synchronous>, transform_indices = @transform_1, window_bounds = array<i64: 128, 12288>}, {transform_indices = @transform_2, window_bounds = array<i64: 16, 12288>}]} {
    %c0 = arith.constant 0 : index
    %c0_0 = arith.constant 0 : index
    %0 = vector.load %arg1[%c0, %c0_0] : memref<16x128xf32, #tpu.memory_space<vmem>>, vector<16x128xf32>
    %1 = arith.truncf %0 : vector<16x128xf32> to vector<16x128xbf16>
    %c0_1 = arith.constant 0 : index
    %c0_2 = arith.constant 0 : index
    %2 = vector.load %arg2[%c0_1, %c0_2] : memref<128x12288xbf16, #tpu.memory_space<vmem>>, vector<128x12288xbf16>
    %cst = arith.constant dense<0.000000e+00> : vector<16x12288xf32>
    %3 = tpu.matmul %1, %2, %cst {dimension_numbers = #tpu.dot_dimension_numbers<[1], [0], [0], [1], [0, 0, 1, 1], [], []>} : vector<16x128xbf16>, vector<128x12288xbf16>, vector<16x12288xf32> -> vector<16x12288xf32>
    %4 = arith.truncf %3 : vector<16x12288xf32> to vector<16x12288xbf16>
    %c0_3 = arith.constant 0 : index
    %c0_4 = arith.constant 0 : index
    %5 = vector.load %arg3[%c0_3, %c0_4] : memref<16x12288xbf16, #tpu.memory_space<vmem>>, vector<16x12288xbf16>
    tpu.vector_store %arg3[%c0_3, %c0_4], %4 {strides = array<i32>} : memref<16x12288xbf16, #tpu.memory_space<vmem>>, vector<16x12288xbf16>,
    return
  }
  func.func @transform_0(%arg0: i32) -> (i32, i32) {
    %c0_i32 = arith.constant 0 : i32
    %c0_i32_0 = arith.constant 0 : i32
    return %arg0, %c0_i32 : i32, i32
  }
  func.func @transform_1(%arg0: i32) -> (i32, i32) {
    %c0_i32 = arith.constant 0 : i32
    %c0_i32_0 = arith.constant 0 : i32
    %c0_i32_1 = arith.constant 0 : i32
    return %c0_i32, %c0_i32_0 : i32, i32
  }
  func.func @transform_2(%arg0: i32) -> (i32, i32) {
    %c0_i32 = arith.constant 0 : i32
    %c0_i32_0 = arith.constant 0 : i32
    return %arg0, %c0_i32 : i32, i32
  }
}

</mosaic_0001>

<llo_original>
// kernel: tpu_custom_call.1
$region0: #{tpu_custom_call.1}
  #allocation0 [shape = 'u32[]', space=smem, size = 0x4, offset = 0x4, fixed_abs, tag = 'smem constant byte address 0x4 - core index']
  #allocation1 [shape = 'u32[144,128]{1,0:T(1,128)}', space=vmem, size = 0x12000, scoped, tag = 'internal scratch']
  %s0 = inlined_call_operand.hbm [shape: f32[16,128], index: 0, kind: input, shape index: {}]
  %s1 = inlined_call_operand.hbm [shape: bf16[128,12288], index: 1, kind: input, shape index: {}]
  %s2 = inlined_call_operand.hbm [shape: bf16[16,12288], index: 2, kind: output, shape index: {}]
  %s3 = sld [smem:[#allocation0]]
  $region26: #{tpu_custom_call.1} parent=0
    _
  %s5 = ssub.s32 1, %s3
  %s6 = scalar_select 0, %s5, %s3
  $region1: #{tpu_custom_call.1} parent=0
    #allocation2 [shape = 'u8[8192]{0}', space=vmem, size = 0x2000, scoped, tag = 'input window, operand 0, single buffered']
    #allocation3 [shape = 's32[1]{0}', space=sflag, size = 0x4, scoped, tag = 'scoped memory for tpu_custom_call.1']
    #allocation4 [shape = 's32[1]{0}', space=sflag, size = 0x4, scoped, tag = 'scoped memory for tpu_custom_call.1']
    #allocation5 [shape = 'u8[3145728]{0}', space=vmem, size = 0x300000, scoped, tag = 'input window, operand 1, single buffered']
    #allocation6 [shape = 's32[1]{0}', space=sflag, size = 0x4, scoped, tag = 'scoped memory for tpu_custom_call.1']
    #allocation7 [shape = 'u8[393216]{0}', space=vmem, size = 0x60000, scoped, tag = 'output window, operand 0, single buffered']
    %7 = vsyncpa [#allocation3], 0
    %8 = vsyncpa [#allocation6], 0
    %9 = vsyncpa [#allocation4], 0
    // Predicated region
    $region2: #{tpu_custom_call.1} parent=1 // pred_check
      _
    $region3: #{tpu_custom_call.1} parent=1 // pred_check_branch
      %11 = sbr.rel (0) target = $region5
    $region4: #{tpu_custom_call.1} parent=1 // pred_region
      %s13 = ssub.s32 256, 256
      %14 = vsyncadd [#allocation3], %s13
      %s15 = sshll.u32 [#allocation2], 4
      %s16 = int_to_ptr.vmem [resolvable:$true] %s15
      %21 = dma.hbm_to_vmem [thread:$0]  %s0, 256, %s16, [#allocation3], 128, 128, 8
    $region5: #{tpu_custom_call.1} parent=1 // pred_fallthru
      _
    // Predicated region
    $region6: #{tpu_custom_call.1} parent=1 // pred_check
      _
    $region7: #{tpu_custom_call.1} parent=1 // pred_check_branch
      %23 = sbr.rel (0) target = $region9
    $region8: #{tpu_custom_call.1} parent=1 // pred_region
      %s25 = ssub.s32 98304, 98304
      %26 = vsyncadd [#allocation6], %s25
      %s27 = sshll.u32 [#allocation5], 4
      %s28 = int_to_ptr.vmem [resolvable:$true] %s27
      %33 = dma.hbm_to_vmem [thread:$0]  %s1, 98304, %s28, [#allocation6], 6144, 6144, 384
    $region9: #{tpu_custom_call.1} parent=1 // pred_fallthru
      _
    // Predicated region
    $region10: #{tpu_custom_call.1} parent=1 // pred_check
      _
    $region11: #{tpu_custom_call.1} parent=1 // pred_check_branch
      %35 = sbr.rel (0) target = $region13
    $region12: #{tpu_custom_call.1} parent=1 // pred_region
      %36 = dma.done [#allocation3], 256
    $region13: #{tpu_custom_call.1} parent=1 // pred_fallthru
      _
    // Predicated region
    $region14: #{tpu_custom_call.1} parent=1 // pred_check
      _
    $region15: #{tpu_custom_call.1} parent=1 // pred_check_branch
      %38 = sbr.rel (0) target = $region17
    $region16: #{tpu_custom_call.1} parent=1 // pred_region
      %39 = dma.done [#allocation6], 98304
    $region17: #{tpu_custom_call.1} parent=1 // pred_fallthru
      _
    %v41 = vld [vmem:[#allocation2] sm:$0xff]
    %v42 = vld [vmem:[#allocation2 + $0x8] sm:$0xff]
    %v43 = vpack.c.bf16 %v42, %v41
    %v44 = vld [vmem:[#allocation5] sm:$0xff]
    %v45 = vld [vmem:[#allocation5 + $0x8] sm:$0xff]
    %v46 = vld [vmem:[#allocation5 + $0x10] sm:$0xff]
    %v47 = vld [vmem:[#allocation5 + $0x18] sm:$0xff]
    %v48 = vld [vmem:[#allocation5 + $0x20] sm:$0xff]
    %v49 = vld [vmem:[#allocation5 + $0x28] sm:$0xff]
    %v50 = vld [vmem:[#allocation5 + $0x30] sm:$0xff]
    %v51 = vld [vmem:[#allocation5 + $0x38] sm:$0xff]
    %v52 = vld [vmem:[#allocation5 + $0x40] sm:$0xff]
    %v53 = vld [vmem:[#allocation5 + $0x48] sm:$0xff]
    %v54 = vld [vmem:[#allocation5 + $0x50] sm:$0xff]
    %v55 = vld [vmem:[#allocation5 + $0x58] sm:$0xff]
    %v56 = vld [vmem:[#allocation5 + $0x60] sm:$0xff]
    %v57 = vld [vmem:[#allocation5 + $0x68] sm:$0xff]
    %v58 = vld [vmem:[#allocation5 + $0x70] sm:$0xff]
    %v59 = vld [vmem:[#allocation5 + $0x78] sm:$0xff]
    %v60 = vld [vmem:[#allocation5 + $0x80] sm:$0xff]
    %v61 = vld [vmem:[#allocation5 + $0x88] sm:$0xff]
    %v62 = vld [vmem:[#allocation5 + $0x90] sm:$0xff]
    %v63 = vld [vmem:[#allocation5 + $0x98] sm:$0xff]
    %v64 = vld [vmem:[#allocation5 + $0xa0] sm:$0xff]
    %v65 = vld [vmem:[#allocation5 + $0xa8] sm:$0xff]
    %v66 = vld [vmem:[#allocation5 + $0xb0] sm:$0xff]
    %v67 = vld [vmem:[#allocation5 + $0xb8] sm:$0xff]
    %v68 = vld [vmem:[#allocation5 + $0xc0] sm:$0xff]
    %v69 = vld [vmem:[#allocation5 + $0xc8] sm:$0xff]
    %v70 = vld [vmem:[#allocation5 + $0xd0] sm:$0xff]
    %v71 = vld [vmem:[#allocation5 + $0xd8] sm:$0xff]
    %v72 = vld [vmem:[#allocation5 + $0xe0] sm:$0xff]
    %v73 = vld [vmem:[#allocation5 + $0xe8] sm:$0xff]
    %v74 = vld [vmem:[#allocation5 + $0xf0] sm:$0xff]
    %v75 = vld [vmem:[#allocation5 + $0xf8] sm:$0xff]
    %v76 = vld [vmem:[#allocation5 + $0x100] sm:$0xff]
    %v77 = vld [vmem:[#allocation5 + $0x108] sm:$0xff]
    %v78 = vld [vmem:[#allocation5 + $0x110] sm:$0xff]
    %v79 = vld [vmem:[#allocation5 + $0x118] sm:$0xff]
    %v80 = vld [vmem:[#allocation5 + $0x120] sm:$0xff]
    %v81 = vld [vmem:[#allocation5 + $0x128] sm:$0xff]
    %v82 = vld [vmem:[#allocation5 + $0x130] sm:$0xff]
    %v83 = vld [vmem:[#allocation5 + $0x138] sm:$0xff]
    %v84 = vld [vmem:[#allocation5 + $0x140] sm:$0xff]
    %v85 = vld [vmem:[#allocation5 + $0x148] sm:$0xff]
    %v86 = vld [vmem:[#allocation5 + $0x150] sm:$0xff]
    %v87 = vld [vmem:[#allocation5 + $0x158] sm:$0xff]
    %v88 = vld [vmem:[#allocation5 + $0x160] sm:$0xff]
    %v89 = vld [vmem:[#allocation5 + $0x168] sm:$0xff]
    %v90 = vld [vmem:[#allocation5 + $0x170] sm:$0xff]
    %v91 = vld [vmem:[#allocation5 + $0x178] sm:$0xff]
    %v92 = vld [vmem:[#allocation5 + $0x180] sm:$0xff]
    %v93 = vld [vmem:[#allocation5 + $0x188] sm:$0xff]
    %v94 = vld [vmem:[#allocation5 + $0x190] sm:$0xff]
    %v95 = vld [vmem:[#allocation5 + $0x198] sm:$0xff]
    %v96 = vld [vmem:[#allocation5 + $0x1a0] sm:$0xff]
    %v97 = vld [vmem:[#allocation5 + $0x1a8] sm:$0xff]
    %v98 = vld [vmem:[#allocation5 + $0x1b0] sm:$0xff]
    %v99 = vld [vmem:[#allocation5 + $0x1b8] sm:$0xff]
    %v100 = vld [vmem:[#allocation5 + $0x1c0] sm:$0xff]
    %v101 = vld [vmem:[#allocation5 + $0x1c8] sm:$0xff]
    %v102 = vld [vmem:[#allocation5 + $0x1d0] sm:$0xff]
    %v103 = vld [vmem:[#allocation5 + $0x1d8] sm:$0xff]
    %v104 = vld [vmem:[#allocation5 + $0x1e0] sm:$0xff]
    %v105 = vld [vmem:[#allocation5 + $0x1e8] sm:$0xff]
    %v106 = vld [vmem:[#allocation5 + $0x1f0] sm:$0xff]
    %v107 = vld [vmem:[#allocation5 + $0x1f8] sm:$0xff]
    %v108 = vld [vmem:[#allocation5 + $0x200] sm:$0xff]
    %v109 = vld [vmem:[#allocation5 + $0x208] sm:$0xff]
    %v110 = vld [vmem:[#allocation5 + $0x210] sm:$0xff]
    %v111 = vld [vmem:[#allocation5 + $0x218] sm:$0xff]
    %v112 = vld [vmem:[#allocation5 + $0x220] sm:$0xff]
    %v113 = vld [vmem:[#allocation5 + $0x228] sm:$0xff]
    %v114 = vld [vmem:[#allocation5 + $0x230] sm:$0xff]
    %v115 = vld [vmem:[#allocation5 + $0x238] sm:$0xff]
    %v116 = vld [vmem:[#allocation5 + $0x240] sm:$0xff]
    %v117 = vld [vmem:[#allocation5 + $0x248] sm:$0xff]
    %v118 = vld [vmem:[#allocation5 + $0x250] sm:$0xff]
    %v119 = vld [vmem:[#allocation5 + $0x258] sm:$0xff]
    %v120 = vld [vmem:[#allocation5 + $0x260] sm:$0xff]
    %v121 = vld [vmem:[#allocation5 + $0x268] sm:$0xff]
    %v122 = vld [vmem:[#allocation5 + $0x270] sm:$0xff]
    %v123 = vld [vmem:[#allocation5 + $0x278] sm:$0xff]
    %v124 = vld [vmem:[#allocation5 + $0x280] sm:$0xff]
    %v125 = vld [vmem:[#allocation5 + $0x288] sm:$0xff]
    %v126 = vld [vmem:[#allocation5 + $0x290] sm:$0xff]
    %v127 = vld [vmem:[#allocation5 + $0x298] sm:$0xff]
    %v128 = vld [vmem:[#allocation5 + $0x2a0] sm:$0xff]
    %v129 = vld [vmem:[#allocation5 + $0x2a8] sm:$0xff]
    %v130 = vld [vmem:[#allocation5 + $0x2b0] sm:$0xff]
    %v131 = vld [vmem:[#allocation5 + $0x2b8] sm:$0xff]
    %v132 = vld [vmem:[#allocation5 + $0x2c0] sm:$0xff]
    %v133 = vld [vmem:[#allocation5 + $0x2c8] sm:$0xff]
    %v134 = vld [vmem:[#allocation5 + $0x2d0] sm:$0xff]
    %v135 = vld [vmem:[#allocation5 + $0x2d8] sm:$0xff]
    %v136 = vld [vmem:[#allocation5 + $0x2e0] sm:$0xff]
    %v137 = vld [vmem:[#allocation5 + $0x2e8] sm:$0xff]
    %v138 = vld [vmem:[#allocation5 + $0x2f0] sm:$0xff]
    %v139 = vld [vmem:[#allocation5 + $0x2f8] sm:$0xff]
    %v140 = vld [vmem:[#allocation5 + $0x300] sm:$0xff]
    %v141 = vld [vmem:[#allocation5 + $0x308] sm:$0xff]
    %v142 = vld [vmem:[#allocation5 + $0x310] sm:$0xff]
    %v143 = vld [vmem:[#allocation5 + $0x318] sm:$0xff]
    %v144 = vld [vmem:[#allocation5 + $0x320] sm:$0xff]
    %v145 = vld [vmem:[#allocation5 + $0x328] sm:$0xff]
    %v146 = vld [vmem:[#allocation5 + $0x330] sm:$0xff]
    %v147 = vld [vmem:[#allocation5 + $0x338] sm:$0xff]
    %v148 = vld [vmem:[#allocation5 + $0x340] sm:$0xff]
    %v149 = vld [vmem:[#allocation5 + $0x348] sm:$0xff]
    %v150 = vld [vmem:[#allocation5 + $0x350] sm:$0xff]
    %v151 = vld [vmem:[#allocation5 + $0x358] sm:$0xff]
    %v152 = vld [vmem:[#allocation5 + $0x360] sm:$0xff]
    %v153 = vld [vmem:[#allocation5 + $0x368] sm:$0xff]
    %v154 = vld [vmem:[#allocation5 + $0x370] sm:$0xff]
    %v155 = vld [vmem:[#allocation5 + $0x378] sm:$0xff]
    %v156 = vld [vmem:[#allocation5 + $0x380] sm:$0xff]
    %v157 = vld [vmem:[#allocation5 + $0x388] sm:$0xff]
    %v158 = vld [vmem:[#allocation5 + $0x390] sm:$0xff]
    %v159 = vld [vmem:[#allocation5 + $0x398] sm:$0xff]
    %v160 = vld [vmem:[#allocation5 + $0x3a0] sm:$0xff]
    %v161 = vld [vmem:[#allocation5 + $0x3a8] sm:$0xff]
    %v162 = vld [vmem:[#allocation5 + $0x3b0] sm:$0xff]
    %v163 = vld [vmem:[#allocation5 + $0x3b8] sm:$0xff]
    %v164 = vld [vmem:[#allocation5 + $0x3c0] sm:$0xff]
    %v165 = vld [vmem:[#allocation5 + $0x3c8] sm:$0xff]
    %v166 = vld [vmem:[#allocation5 + $0x3d0] sm:$0xff]
    %v167 = vld [vmem:[#allocation5 + $0x3d8] sm:$0xff]
    %v168 = vld [vmem:[#allocation5 + $0x3e0] sm:$0xff]
    %v169 = vld [vmem:[#allocation5 + $0x3e8] sm:$0xff]
    %v170 = vld [vmem:[#allocation5 + $0x3f0] sm:$0xff]
    %v171 = vld [vmem:[#allocation5 + $0x3f8] sm:$0xff]
    %v172 = vld [vmem:[#allocation5 + $0x400] sm:$0xff]
    %v173 = vld [vmem:[#allocation5 + $0x408] sm:$0xff]
    %v174 = vld [vmem:[#allocation5 + $0x410] sm:$0xff]
    %v175 = vld [vmem:[#allocation5 + $0x418] sm:$0xff]
    %v176 = vld [vmem:[#allocation5 + $0x420] sm:$0xff]
    %v177 = vld [vmem:[#allocation5 + $0x428] sm:$0xff]
    %v178 = vld [vmem:[#allocation5 + $0x430] sm:$0xff]
    %v179 = vld [vmem:[#allocation5 + $0x438] sm:$0xff]
    %v180 = vld [vmem:[#allocation5 + $0x440] sm:$0xff]
    %v181 = vld [vmem:[#allocation5 + $0x448] sm:$0xff]
    %v182 = vld [vmem:[#allocation5 + $0x450] sm:$0xff]
    %v183 = vld [vmem:[#allocation5 + $0x458] sm:$0xff]
    %v184 = vld [vmem:[#allocation5 + $0x460] sm:$0xff]
    %v185 = vld [vmem:[#allocation5 + $0x468] sm:$0xff]
    %v186 = vld [vmem:[#allocation5 + $0x470] sm:$0xff]
    %v187 = vld [vmem:[#allocation5 + $0x478] sm:$0xff]
    %v188 = vld [vmem:[#allocation5 + $0x480] sm:$0xff]
    %v189 = vld [vmem:[#allocation5 + $0x488] sm:$0xff]
    %v190 = vld [vmem:[#allocation5 + $0x490] sm:$0xff]
    %v191 = vld [vmem:[#allocation5 + $0x498] sm:$0xff]
    %v192 = vld [vmem:[#allocation5 + $0x4a0] sm:$0xff]
    %v193 = vld [vmem:[#allocation5 + $0x4a8] sm:$0xff]
    %v194 = vld [vmem:[#allocation5 + $0x4b0] sm:$0xff]
    %v195 = vld [vmem:[#allocation5 + $0x4b8] sm:$0xff]
    %v196 = vld [vmem:[#allocation5 + $0x4c0] sm:$0xff]
    %v197 = vld [vmem:[#allocation5 + $0x4c8] sm:$0xff]
    %v198 = vld [vmem:[#allocation5 + $0x4d0] sm:$0xff]
    %v199 = vld [vmem:[#allocation5 + $0x4d8] sm:$0xff]
    %v200 = vld [vmem:[#allocation5 + $0x4e0] sm:$0xff]
    %v201 = vld [vmem:[#allocation5 + $0x4e8] sm:$0xff]
    %v202 = vld [vmem:[#allocation5 + $0x4f0] sm:$0xff]
    %v203 = vld [vmem:[#allocation5 + $0x4f8] sm:$0xff]
    %v204 = vld [vmem:[#allocation5 + $0x500] sm:$0xff]
    %v205 = vld [vmem:[#allocation5 + $0x508] sm:$0xff]
    %v206 = vld [vmem:[#allocation5 + $0x510] sm:$0xff]
    %v207 = vld [vmem:[#allocation5 + $0x518] sm:$0xff]
    %v208 = vld [vmem:[#allocation5 + $0x520] sm:$0xff]
    %v209 = vld [vmem:[#allocation5 + $0x528] sm:$0xff]
    %v210 = vld [vmem:[#allocation5 + $0x530] sm:$0xff]
    %v211 = vld [vmem:[#allocation5 + $0x538] sm:$0xff]
    %v212 = vld [vmem:[#allocation5 + $0x540] sm:$0xff]
    %v213 = vld [vmem:[#allocation5 + $0x548] sm:$0xff]
    %v214 = vld [vmem:[#allocation5 + $0x550] sm:$0xff]
    %v215 = vld [vmem:[#allocation5 + $0x558] sm:$0xff]
    %v216 = vld [vmem:[#allocation5 + $0x560] sm:$0xff]
    %v217 = vld [vmem:[#allocation5 + $0x568] sm:$0xff]
    %v218 = vld [vmem:[#allocation5 + $0x570] sm:$0xff]
    %v219 = vld [vmem:[#allocation5 + $0x578] sm:$0xff]
    %v220 = vld [vmem:[#allocation5 + $0x580] sm:$0xff]
    %v221 = vld [vmem:[#allocation5 + $0x588] sm:$0xff]
    %v222 = vld [vmem:[#allocation5 + $0x590] sm:$0xff]
    %v223 = vld [vmem:[#allocation5 + $0x598] sm:$0xff]
    %v224 = vld [vmem:[#allocation5 + $0x5a0] sm:$0xff]
    %v225 = vld [vmem:[#allocation5 + $0x5a8] sm:$0xff]
    %v226 = vld [vmem:[#allocation5 + $0x5b0] sm:$0xff]
    %v227 = vld [vmem:[#allocation5 + $0x5b8] sm:$0xff]
    %v228 = vld [vmem:[#allocation5 + $0x5c0] sm:$0xff]
    %v229 = vld [vmem:[#allocation5 + $0x5c8] sm:$0xff]
    %v230 = vld [vmem:[#allocation5 + $0x5d0] sm:$0xff]
    %v231 = vld [vmem:[#allocation5 + $0x5d8] sm:$0xff]
    %v232 = vld [vmem:[#allocation5 + $0x5e0] sm:$0xff]
    %v233 = vld [vmem:[#allocation5 + $0x5e8] sm:$0xff]
    %v234 = vld [vmem:[#allocation5 + $0x5f0] sm:$0xff]
    %v235 = vld [vmem:[#allocation5 + $0x5f8] sm:$0xff]
    %v236 = vld [vmem:[#allocation5 + $0x600] sm:$0xff]
    %v237 = vld [vmem:[#allocation5 + $0x608] sm:$0xff]
    %v238 = vld [vmem:[#allocation5 + $0x610] sm:$0xff]
    %v239 = vld [vmem:[#allocation5 + $0x618] sm:$0xff]
    %v240 = vld [vmem:[#allocation5 + $0x620] sm:$0xff]
    %v241 = vld [vmem:[#allocation5 + $0x628] sm:$0xff]
    %v242 = vld [vmem:[#allocation5 + $0x630] sm:$0xff]
    %v243 = vld [vmem:[#allocation5 + $0x638] sm:$0xff]
    %v244 = vld [vmem:[#allocation5 + $0x640] sm:$0xff]
    %v245 = vld [vmem:[#allocation5 + $0x648] sm:$0xff]
    %v246 = vld [vmem:[#allocation5 + $0x650] sm:$0xff]
    %v247 = vld [vmem:[#allocation5 + $0x658] sm:$0xff]
    %v248 = vld [vmem:[#allocation5 + $0x660] sm:$0xff]
    %v249 = vld [vmem:[#allocation5 + $0x668] sm:$0xff]
    %v250 = vld [vmem:[#allocation5 + $0x670] sm:$0xff]
    %v251 = vld [vmem:[#allocation5 + $0x678] sm:$0xff]
    %v252 = vld [vmem:[#allocation5 + $0x680] sm:$0xff]
    %v253 = vld [vmem:[#allocation5 + $0x688] sm:$0xff]
    %v254 = vld [vmem:[#allocation5 + $0x690] sm:$0xff]
    %v255 = vld [vmem:[#allocation5 + $0x698] sm:$0xff]
    %v256 = vld [vmem:[#allocation5 + $0x6a0] sm:$0xff]
    %v257 = vld [vmem:[#allocation5 + $0x6a8] sm:$0xff]
    %v258 = vld [vmem:[#allocation5 + $0x6b0] sm:$0xff]
    %v259 = vld [vmem:[#allocation5 + $0x6b8] sm:$0xff]
    %v260 = vld [vmem:[#allocation5 + $0x6c0] sm:$0xff]
    %v261 = vld [vmem:[#allocation5 + $0x6c8] sm:$0xff]
    %v262 = vld [vmem:[#allocation5 + $0x6d0] sm:$0xff]
    %v263 = vld [vmem:[#allocation5 + $0x6d8] sm:$0xff]
    %v264 = vld [vmem:[#allocation5 + $0x6e0] sm:$0xff]
    %v265 = vld [vmem:[#allocation5 + $0x6e8] sm:$0xff]
    %v266 = vld [vmem:[#allocation5 + $0x6f0] sm:$0xff]
    %v267 = vld [vmem:[#allocation5 + $0x6f8] sm:$0xff]
    %v268 = vld [vmem:[#allocation5 + $0x700] sm:$0xff]
    %v269 = vld [vmem:[#allocation5 + $0x708] sm:$0xff]
    %v270 = vld [vmem:[#allocation5 + $0x710] sm:$0xff]
    %v271 = vld [vmem:[#allocation5 + $0x718] sm:$0xff]
    %v272 = vld [vmem:[#allocation5 + $0x720] sm:$0xff]
    %v273 = vld [vmem:[#allocation5 + $0x728] sm:$0xff]
    %v274 = vld [vmem:[#allocation5 + $0x730] sm:$0xff]
    %v275 = vld [vmem:[#allocation5 + $0x738] sm:$0xff]
    %v276 = vld [vmem:[#allocation5 + $0x740] sm:$0xff]
    %v277 = vld [vmem:[#allocation5 + $0x748] sm:$0xff]
    %v278 = vld [vmem:[#allocation5 + $0x750] sm:$0xff]
    %v279 = vld [vmem:[#allocation5 + $0x758] sm:$0xff]
    %v280 = vld [vmem:[#allocation5 + $0x760] sm:$0xff]
    %v281 = vld [vmem:[#allocation5 + $0x768] sm:$0xff]
    %v282 = vld [vmem:[#allocation5 + $0x770] sm:$0xff]
    %v283 = vld [vmem:[#allocation5 + $0x778] sm:$0xff]
    %v284 = vld [vmem:[#allocation5 + $0x780] sm:$0xff]
    %v285 = vld [vmem:[#allocation5 + $0x788] sm:$0xff]
    %v286 = vld [vmem:[#allocation5 + $0x790] sm:$0xff]
    %v287 = vld [vmem:[#allocation5 + $0x798] sm:$0xff]
    %v288 = vld [vmem:[#allocation5 + $0x7a0] sm:$0xff]
    %v289 = vld [vmem:[#allocation5 + $0x7a8] sm:$0xff]
    %v290 = vld [vmem:[#allocation5 + $0x7b0] sm:$0xff]
    %v291 = vld [vmem:[#allocation5 + $0x7b8] sm:$0xff]
    %v292 = vld [vmem:[#allocation5 + $0x7c0] sm:$0xff]
    %v293 = vld [vmem:[#allocation5 + $0x7c8] sm:$0xff]
    %v294 = vld [vmem:[#allocation5 + $0x7d0] sm:$0xff]
    %v295 = vld [vmem:[#allocation5 + $0x7d8] sm:$0xff]
    %v296 = vld [vmem:[#allocation5 + $0x7e0] sm:$0xff]
    %v297 = vld [vmem:[#allocation5 + $0x7e8] sm:$0xff]
    %v298 = vld [vmem:[#allocation5 + $0x7f0] sm:$0xff]
    %v299 = vld [vmem:[#allocation5 + $0x7f8] sm:$0xff]
    %v300 = vld [vmem:[#allocation5 + $0x800] sm:$0xff]
    %v301 = vld [vmem:[#allocation5 + $0x808] sm:$0xff]
    %v302 = vld [vmem:[#allocation5 + $0x810] sm:$0xff]
    %v303 = vld [vmem:[#allocation5 + $0x818] sm:$0xff]
    %v304 = vld [vmem:[#allocation5 + $0x820] sm:$0xff]
    %v305 = vld [vmem:[#allocation5 + $0x828] sm:$0xff]
    %v306 = vld [vmem:[#allocation5 + $0x830] sm:$0xff]
    %v307 = vld [vmem:[#allocation5 + $0x838] sm:$0xff]
    %v308 = vld [vmem:[#allocation5 + $0x840] sm:$0xff]
    %v309 = vld [vmem:[#allocation5 + $0x848] sm:$0xff]
    %v310 = vld [vmem:[#allocation5 + $0x850] sm:$0xff]
    %v311 = vld [vmem:[#allocation5 + $0x858] sm:$0xff]
    %v312 = vld [vmem:[#allocation5 + $0x860] sm:$0xff]
    %v313 = vld [vmem:[#allocation5 + $0x868] sm:$0xff]
    %v314 = vld [vmem:[#allocation5 + $0x870] sm:$0xff]
    %v315 = vld [vmem:[#allocation5 + $0x878] sm:$0xff]
    %v316 = vld [vmem:[#allocation5 + $0x880] sm:$0xff]
    %v317 = vld [vmem:[#allocation5 + $0x888] sm:$0xff]
    %v318 = vld [vmem:[#allocation5 + $0x890] sm:$0xff]
    %v319 = vld [vmem:[#allocation5 + $0x898] sm:$0xff]
    %v320 = vld [vmem:[#allocation5 + $0x8a0] sm:$0xff]
    %v321 = vld [vmem:[#allocation5 + $0x8a8] sm:$0xff]
    %v322 = vld [vmem:[#allocation5 + $0x8b0] sm:$0xff]
    %v323 = vld [vmem:[#allocation5 + $0x8b8] sm:$0xff]
    %v324 = vld [vmem:[#allocation5 + $0x8c0] sm:$0xff]
    %v325 = vld [vmem:[#allocation5 + $0x8c8] sm:$0xff]
    %v326 = vld [vmem:[#allocation5 + $0x8d0] sm:$0xff]
    %v327 = vld [vmem:[#allocation5 + $0x8d8] sm:$0xff]
    %v328 = vld [vmem:[#allocation5 + $0x8e0] sm:$0xff]
    %v329 = vld [vmem:[#allocation5 + $0x8e8] sm:$0xff]
    %v330 = vld [vmem:[#allocation5 + $0x8f0] sm:$0xff]
    %v331 = vld [vmem:[#allocation5 + $0x8f8] sm:$0xff]
    %v332 = vld [vmem:[#allocation5 + $0x900] sm:$0xff]
    %v333 = vld [vmem:[#allocation5 + $0x908] sm:$0xff]
    %v334 = vld [vmem:[#allocation5 + $0x910] sm:$0xff]
    %v335 = vld [vmem:[#allocation5 + $0x918] sm:$0xff]
    %v336 = vld [vmem:[#allocation5 + $0x920] sm:$0xff]
    %v337 = vld [vmem:[#allocation5 + $0x928] sm:$0xff]
    %v338 = vld [vmem:[#allocation5 + $0x930] sm:$0xff]
    %v339 = vld [vmem:[#allocation5 + $0x938] sm:$0xff]
    %v340 = vld [vmem:[#allocation5 + $0x940] sm:$0xff]
    %v341 = vld [vmem:[#allocation5 + $0x948] sm:$0xff]
    %v342 = vld [vmem:[#allocation5 + $0x950] sm:$0xff]
    %v343 = vld [vmem:[#allocation5 + $0x958] sm:$0xff]
    %v344 = vld [vmem:[#allocation5 + $0x960] sm:$0xff]
    %v345 = vld [vmem:[#allocation5 + $0x968] sm:$0xff]
    %v346 = vld [vmem:[#allocation5 + $0x970] sm:$0xff]
    %v347 = vld [vmem:[#allocation5 + $0x978] sm:$0xff]
    %v348 = vld [vmem:[#allocation5 + $0x980] sm:$0xff]
    %v349 = vld [vmem:[#allocation5 + $0x988] sm:$0xff]
    %v350 = vld [vmem:[#allocation5 + $0x990] sm:$0xff]
    %v351 = vld [vmem:[#allocation5 + $0x998] sm:$0xff]
    %v352 = vld [vmem:[#allocation5 + $0x9a0] sm:$0xff]
    %v353 = vld [vmem:[#allocation5 + $0x9a8] sm:$0xff]
    %v354 = vld [vmem:[#allocation5 + $0x9b0] sm:$0xff]
    %v355 = vld [vmem:[#allocation5 + $0x9b8] sm:$0xff]
    %v356 = vld [vmem:[#allocation5 + $0x9c0] sm:$0xff]
    %v357 = vld [vmem:[#allocation5 + $0x9c8] sm:$0xff]
    %v358 = vld [vmem:[#allocation5 + $0x9d0] sm:$0xff]
    %v359 = vld [vmem:[#allocation5 + $0x9d8] sm:$0xff]
    %v360 = vld [vmem:[#allocation5 + $0x9e0] sm:$0xff]
    %v361 = vld [vmem:[#allocation5 + $0x9e8] sm:$0xff]
    %v362 = vld [vmem:[#allocation5 + $0x9f0] sm:$0xff]
    %v363 = vld [vmem:[#allocation5 + $0x9f8] sm:$0xff]
    %v364 = vld [vmem:[#allocation5 + $0xa00] sm:$0xff]
    %v365 = vld [vmem:[#allocation5 + $0xa08] sm:$0xff]
    %v366 = vld [vmem:[#allocation5 + $0xa10] sm:$0xff]
    %v367 = vld [vmem:[#allocation5 + $0xa18] sm:$0xff]
    %v368 = vld [vmem:[#allocation5 + $0xa20] sm:$0xff]
    %v369 = vld [vmem:[#allocation5 + $0xa28] sm:$0xff]
    %v370 = vld [vmem:[#allocation5 + $0xa30] sm:$0xff]
    %v371 = vld [vmem:[#allocation5 + $0xa38] sm:$0xff]
    %v372 = vld [vmem:[#allocation5 + $0xa40] sm:$0xff]
    %v373 = vld [vmem:[#allocation5 + $0xa48] sm:$0xff]
    %v374 = vld [vmem:[#allocation5 + $0xa50] sm:$0xff]
    %v375 = vld [vmem:[#allocation5 + $0xa58] sm:$0xff]
    %v376 = vld [vmem:[#allocation5 + $0xa60] sm:$0xff]
    %v377 = vld [vmem:[#allocation5 + $0xa68] sm:$0xff]
    %v378 = vld [vmem:[#allocation5 + $0xa70] sm:$0xff]
    %v379 = vld [vmem:[#allocation5 + $0xa78] sm:$0xff]
    %v380 = vld [vmem:[#allocation5 + $0xa80] sm:$0xff]
    %v381 = vld [vmem:[#allocation5 + $0xa88] sm:$0xff]
    %v382 = vld [vmem:[#allocation5 + $0xa90] sm:$0xff]
    %v383 = vld [vmem:[#allocation5 + $0xa98] sm:$0xff]
    %v384 = vld [vmem:[#allocation5 + $0xaa0] sm:$0xff]
    %v385 = vld [vmem:[#allocation5 + $0xaa8] sm:$0xff]
    %v386 = vld [vmem:[#allocation5 + $0xab0] sm:$0xff]
    %v387 = vld [vmem:[#allocation5 + $0xab8] sm:$0xff]
    %v388 = vld [vmem:[#allocation5 + $0xac0] sm:$0xff]
    %v389 = vld [vmem:[#allocation5 + $0xac8] sm:$0xff]
    %v390 = vld [vmem:[#allocation5 + $0xad0] sm:$0xff]
    %v391 = vld [vmem:[#allocation5 + $0xad8] sm:$0xff]
    %v392 = vld [vmem:[#allocation5 + $0xae0] sm:$0xff]
    %v393 = vld [vmem:[#allocation5 + $0xae8] sm:$0xff]
    %v394 = vld [vmem:[#allocation5 + $0xaf0] sm:$0xff]
    %v395 = vld [vmem:[#allocation5 + $0xaf8] sm:$0xff]
    %v396 = vld [vmem:[#allocation5 + $0xb00] sm:$0xff]
    %v397 = vld [vmem:[#allocation5 + $0xb08] sm:$0xff]
    %v398 = vld [vmem:[#allocation5 + $0xb10] sm:$0xff]
    %v399 = vld [vmem:[#allocation5 + $0xb18] sm:$0xff]
    %v400 = vld [vmem:[#allocation5 + $0xb20] sm:$0xff]
    %v401 = vld [vmem:[#allocation5 + $0xb28] sm:$0xff]
    %v402 = vld [vmem:[#allocation5 + $0xb30] sm:$0xff]
    %v403 = vld [vmem:[#allocation5 + $0xb38] sm:$0xff]
    %v404 = vld [vmem:[#allocation5 + $0xb40] sm:$0xff]
    %v405 = vld [vmem:[#allocation5 + $0xb48] sm:$0xff]
    %v406 = vld [vmem:[#allocation5 + $0xb50] sm:$0xff]
    %v407 = vld [vmem:[#allocation5 + $0xb58] sm:$0xff]
    %v408 = vld [vmem:[#allocation5 + $0xb60] sm:$0xff]
    %v409 = vld [vmem:[#allocation5 + $0xb68] sm:$0xff]
    %v410 = vld [vmem:[#allocation5 + $0xb70] sm:$0xff]
    %v411 = vld [vmem:[#allocation5 + $0xb78] sm:$0xff]
    %v412 = vld [vmem:[#allocation5 + $0xb80] sm:$0xff]
    %v413 = vld [vmem:[#allocation5 + $0xb88] sm:$0xff]
    %v414 = vld [vmem:[#allocation5 + $0xb90] sm:$0xff]
    %v415 = vld [vmem:[#allocation5 + $0xb98] sm:$0xff]
    %v416 = vld [vmem:[#allocation5 + $0xba0] sm:$0xff]
    %v417 = vld [vmem:[#allocation5 + $0xba8] sm:$0xff]
    %v418 = vld [vmem:[#allocation5 + $0xbb0] sm:$0xff]
    %v419 = vld [vmem:[#allocation5 + $0xbb8] sm:$0xff]
    %v420 = vld [vmem:[#allocation5 + $0xbc0] sm:$0xff]
    %v421 = vld [vmem:[#allocation5 + $0xbc8] sm:$0xff]
    %v422 = vld [vmem:[#allocation5 + $0xbd0] sm:$0xff]
    %v423 = vld [vmem:[#allocation5 + $0xbd8] sm:$0xff]
    %v424 = vld [vmem:[#allocation5 + $0xbe0] sm:$0xff]
    %v425 = vld [vmem:[#allocation5 + $0xbe8] sm:$0xff]
    %v426 = vld [vmem:[#allocation5 + $0xbf0] sm:$0xff]
    %v427 = vld [vmem:[#allocation5 + $0xbf8] sm:$0xff]
    %v428 = vld [vmem:[#allocation5 + $0xc00] sm:$0xff]
    %v429 = vld [vmem:[#allocation5 + $0xc08] sm:$0xff]
    %v430 = vld [vmem:[#allocation5 + $0xc10] sm:$0xff]
    %v431 = vld [vmem:[#allocation5 + $0xc18] sm:$0xff]
    %v432 = vld [vmem:[#allocation5 + $0xc20] sm:$0xff]
    %v433 = vld [vmem:[#allocation5 + $0xc28] sm:$0xff]
    %v434 = vld [vmem:[#allocation5 + $0xc30] sm:$0xff]
    %v435 = vld [vmem:[#allocation5 + $0xc38] sm:$0xff]
    %v436 = vld [vmem:[#allocation5 + $0xc40] sm:$0xff]
    %v437 = vld [vmem:[#allocation5 + $0xc48] sm:$0xff]
    %v438 = vld [vmem:[#allocation5 + $0xc50] sm:$0xff]
    %v439 = vld [vmem:[#allocation5 + $0xc58] sm:$0xff]
    %v440 = vld [vmem:[#allocation5 + $0xc60] sm:$0xff]
    %v441 = vld [vmem:[#allocation5 + $0xc68] sm:$0xff]
    %v442 = vld [vmem:[#allocation5 + $0xc70] sm:$0xff]
    %v443 = vld [vmem:[#allocation5 + $0xc78] sm:$0xff]
    %v444 = vld [vmem:[#allocation5 + $0xc80] sm:$0xff]
    %v445 = vld [vmem:[#allocation5 + $0xc88] sm:$0xff]
    %v446 = vld [vmem:[#allocation5 + $0xc90] sm:$0xff]
    %v447 = vld [vmem:[#allocation5 + $0xc98] sm:$0xff]
    %v448 = vld [vmem:[#allocation5 + $0xca0] sm:$0xff]
    %v449 = vld [vmem:[#allocation5 + $0xca8] sm:$0xff]
    %v450 = vld [vmem:[#allocation5 + $0xcb0] sm:$0xff]
    %v451 = vld [vmem:[#allocation5 + $0xcb8] sm:$0xff]
    %v452 = vld [vmem:[#allocation5 + $0xcc0] sm:$0xff]
    %v453 = vld [vmem:[#allocation5 + $0xcc8] sm:$0xff]
    %v454 = vld [vmem:[#allocation5 + $0xcd0] sm:$0xff]
    %v455 = vld [vmem:[#allocation5 + $0xcd8] sm:$0xff]
    %v456 = vld [vmem:[#allocation5 + $0xce0] sm:$0xff]
    %v457 = vld [vmem:[#allocation5 + $0xce8] sm:$0xff]
    %v458 = vld [vmem:[#allocation5 + $0xcf0] sm:$0xff]
    %v459 = vld [vmem:[#allocation5 + $0xcf8] sm:$0xff]
    %v460 = vld [vmem:[#allocation5 + $0xd00] sm:$0xff]
    %v461 = vld [vmem:[#allocation5 + $0xd08] sm:$0xff]
    %v462 = vld [vmem:[#allocation5 + $0xd10] sm:$0xff]
    %v463 = vld [vmem:[#allocation5 + $0xd18] sm:$0xff]
    %v464 = vld [vmem:[#allocation5 + $0xd20] sm:$0xff]
    %v465 = vld [vmem:[#allocation5 + $0xd28] sm:$0xff]
    %v466 = vld [vmem:[#allocation5 + $0xd30] sm:$0xff]
    %v467 = vld [vmem:[#allocation5 + $0xd38] sm:$0xff]
    %v468 = vld [vmem:[#allocation5 + $0xd40] sm:$0xff]
    %v469 = vld [vmem:[#allocation5 + $0xd48] sm:$0xff]
    %v470 = vld [vmem:[#allocation5 + $0xd50] sm:$0xff]
    %v471 = vld [vmem:[#allocation5 + $0xd58] sm:$0xff]
    %v472 = vld [vmem:[#allocation5 + $0xd60] sm:$0xff]
    %v473 = vld [vmem:[#allocation5 + $0xd68] sm:$0xff]
    %v474 = vld [vmem:[#allocation5 + $0xd70] sm:$0xff]
    %v475 = vld [vmem:[#allocation5 + $0xd78] sm:$0xff]
    %v476 = vld [vmem:[#allocation5 + $0xd80] sm:$0xff]
    %v477 = vld [vmem:[#allocation5 + $0xd88] sm:$0xff]
    %v478 = vld [vmem:[#allocation5 + $0xd90] sm:$0xff]
    %v479 = vld [vmem:[#allocation5 + $0xd98] sm:$0xff]
    %v480 = vld [vmem:[#allocation5 + $0xda0] sm:$0xff]
    %v481 = vld [vmem:[#allocation5 + $0xda8] sm:$0xff]
    %v482 = vld [vmem:[#allocation5 + $0xdb0] sm:$0xff]
    %v483 = vld [vmem:[#allocation5 + $0xdb8] sm:$0xff]
    %v484 = vld [vmem:[#allocation5 + $0xdc0] sm:$0xff]
    %v485 = vld [vmem:[#allocation5 + $0xdc8] sm:$0xff]
    %v486 = vld [vmem:[#allocation5 + $0xdd0] sm:$0xff]
    %v487 = vld [vmem:[#allocation5 + $0xdd8] sm:$0xff]
    %v488 = vld [vmem:[#allocation5 + $0xde0] sm:$0xff]
    %v489 = vld [vmem:[#allocation5 + $0xde8] sm:$0xff]
    %v490 = vld [vmem:[#allocation5 + $0xdf0] sm:$0xff]
    %v491 = vld [vmem:[#allocation5 + $0xdf8] sm:$0xff]
    %v492 = vld [vmem:[#allocation5 + $0xe00] sm:$0xff]
    %v493 = vld [vmem:[#allocation5 + $0xe08] sm:$0xff]
    %v494 = vld [vmem:[#allocation5 + $0xe10] sm:$0xff]
    %v495 = vld [vmem:[#allocation5 + $0xe18] sm:$0xff]
    %v496 = vld [vmem:[#allocation5 + $0xe20] sm:$0xff]
    %v497 = vld [vmem:[#allocation5 + $0xe28] sm:$0xff]
    %v498 = vld [vmem:[#allocation5 + $0xe30] sm:$0xff]
    %v499 = vld [vmem:[#allocation5 + $0xe38] sm:$0xff]
    %v500 = vld [vmem:[#allocation5 + $0xe40] sm:$0xff]
    %v501 = vld [vmem:[#allocation5 + $0xe48] sm:$0xff]
    %v502 = vld [vmem:[#allocation5 + $0xe50] sm:$0xff]
    %v503 = vld [vmem:[#allocation5 + $0xe58] sm:$0xff]
    %v504 = vld [vmem:[#allocation5 + $0xe60] sm:$0xff]
    %v505 = vld [vmem:[#allocation5 + $0xe68] sm:$0xff]
    %v506 = vld [vmem:[#allocation5 + $0xe70] sm:$0xff]
    %v507 = vld [vmem:[#allocation5 + $0xe78] sm:$0xff]
    %v508 = vld [vmem:[#allocation5 + $0xe80] sm:$0xff]
    %v509 = vld [vmem:[#allocation5 + $0xe88] sm:$0xff]
    %v510 = vld [vmem:[#allocation5 + $0xe90] sm:$0xff]
    %v511 = vld [vmem:[#allocation5 + $0xe98] sm:$0xff]
    %v512 = vld [vmem:[#allocation5 + $0xea0] sm:$0xff]
    %v513 = vld [vmem:[#allocation5 + $0xea8] sm:$0xff]
    %v514 = vld [vmem:[#allocation5 + $0xeb0] sm:$0xff]
    %v515 = vld [vmem:[#allocation5 + $0xeb8] sm:$0xff]
    %v516 = vld [vmem:[#allocation5 + $0xec0] sm:$0xff]
    %v517 = vld [vmem:[#allocation5 + $0xec8] sm:$0xff]
    %v518 = vld [vmem:[#allocation5 + $0xed0] sm:$0xff]
    %v519 = vld [vmem:[#allocation5 + $0xed8] sm:$0xff]
    %v520 = vld [vmem:[#allocation5 + $0xee0] sm:$0xff]
    %v521 = vld [vmem:[#allocation5 + $0xee8] sm:$0xff]
    %v522 = vld [vmem:[#allocation5 + $0xef0] sm:$0xff]
    %v523 = vld [vmem:[#allocation5 + $0xef8] sm:$0xff]
    %v524 = vld [vmem:[#allocation5 + $0xf00] sm:$0xff]
    %v525 = vld [vmem:[#allocation5 + $0xf08] sm:$0xff]
    %v526 = vld [vmem:[#allocation5 + $0xf10] sm:$0xff]
    %v527 = vld [vmem:[#allocation5 + $0xf18] sm:$0xff]
    %v528 = vld [vmem:[#allocation5 + $0xf20] sm:$0xff]
    %v529 = vld [vmem:[#allocation5 + $0xf28] sm:$0xff]
    %v530 = vld [vmem:[#allocation5 + $0xf30] sm:$0xff]
    %v531 = vld [vmem:[#allocation5 + $0xf38] sm:$0xff]
    %v532 = vld [vmem:[#allocation5 + $0xf40] sm:$0xff]
    %v533 = vld [vmem:[#allocation5 + $0xf48] sm:$0xff]
    %v534 = vld [vmem:[#allocation5 + $0xf50] sm:$0xff]
    %v535 = vld [vmem:[#allocation5 + $0xf58] sm:$0xff]
    %v536 = vld [vmem:[#allocation5 + $0xf60] sm:$0xff]
    %v537 = vld [vmem:[#allocation5 + $0xf68] sm:$0xff]
    %v538 = vld [vmem:[#allocation5 + $0xf70] sm:$0xff]
    %v539 = vld [vmem:[#allocation5 + $0xf78] sm:$0xff]
    %v540 = vld [vmem:[#allocation5 + $0xf80] sm:$0xff]
    %v541 = vld [vmem:[#allocation5 + $0xf88] sm:$0xff]
    %v542 = vld [vmem:[#allocation5 + $0xf90] sm:$0xff]
    %v543 = vld [vmem:[#allocation5 + $0xf98] sm:$0xff]
    %v544 = vld [vmem:[#allocation5 + $0xfa0] sm:$0xff]
    %v545 = vld [vmem:[#allocation5 + $0xfa8] sm:$0xff]
    %v546 = vld [vmem:[#allocation5 + $0xfb0] sm:$0xff]
    %v547 = vld [vmem:[#allocation5 + $0xfb8] sm:$0xff]
    %v548 = vld [vmem:[#allocation5 + $0xfc0] sm:$0xff]
    %v549 = vld [vmem:[#allocation5 + $0xfc8] sm:$0xff]
    %v550 = vld [vmem:[#allocation5 + $0xfd0] sm:$0xff]
    %v551 = vld [vmem:[#allocation5 + $0xfd8] sm:$0xff]
    %v552 = vld [vmem:[#allocation5 + $0xfe0] sm:$0xff]
    %v553 = vld [vmem:[#allocation5 + $0xfe8] sm:$0xff]
    %v554 = vld [vmem:[#allocation5 + $0xff0] sm:$0xff]
    %v555 = vld [vmem:[#allocation5 + $0xff8] sm:$0xff]
    %v556 = vld [vmem:[#allocation5 + $0x1000] sm:$0xff]
    %v557 = vld [vmem:[#allocation5 + $0x1008] sm:$0xff]
    %v558 = vld [vmem:[#allocation5 + $0x1010] sm:$0xff]
    %v559 = vld [vmem:[#allocation5 + $0x1018] sm:$0xff]
    %v560 = vld [vmem:[#allocation5 + $0x1020] sm:$0xff]
    %v561 = vld [vmem:[#allocation5 + $0x1028] sm:$0xff]
    %v562 = vld [vmem:[#allocation5 + $0x1030] sm:$0xff]
    %v563 = vld [vmem:[#allocation5 + $0x1038] sm:$0xff]
    %v564 = vld [vmem:[#allocation5 + $0x1040] sm:$0xff]
    %v565 = vld [vmem:[#allocation5 + $0x1048] sm:$0xff]
    %v566 = vld [vmem:[#allocation5 + $0x1050] sm:$0xff]
    %v567 = vld [vmem:[#allocation5 + $0x1058] sm:$0xff]
    %v568 = vld [vmem:[#allocation5 + $0x1060] sm:$0xff]
    %v569 = vld [vmem:[#allocation5 + $0x1068] sm:$0xff]
    %v570 = vld [vmem:[#allocation5 + $0x1070] sm:$0xff]
    %v571 = vld [vmem:[#allocation5 + $0x1078] sm:$0xff]
    %v572 = vld [vmem:[#allocation5 + $0x1080] sm:$0xff]
    %v573 = vld [vmem:[#allocation5 + $0x1088] sm:$0xff]
    %v574 = vld [vmem:[#allocation5 + $0x1090] sm:$0xff]
    %v575 = vld [vmem:[#allocation5 + $0x1098] sm:$0xff]
    %v576 = vld [vmem:[#allocation5 + $0x10a0] sm:$0xff]
    %v577 = vld [vmem:[#allocation5 + $0x10a8] sm:$0xff]
    %v578 = vld [vmem:[#allocation5 + $0x10b0] sm:$0xff]
    %v579 = vld [vmem:[#allocation5 + $0x10b8] sm:$0xff]
    %v580 = vld [vmem:[#allocation5 + $0x10c0] sm:$0xff]
    %v581 = vld [vmem:[#allocation5 + $0x10c8] sm:$0xff]
    %v582 = vld [vmem:[#allocation5 + $0x10d0] sm:$0xff]
    %v583 = vld [vmem:[#allocation5 + $0x10d8] sm:$0xff]
    %v584 = vld [vmem:[#allocation5 + $0x10e0] sm:$0xff]
    %v585 = vld [vmem:[#allocation5 + $0x10e8] sm:$0xff]
    %v586 = vld [vmem:[#allocation5 + $0x10f0] sm:$0xff]
    %v587 = vld [vmem:[#allocation5 + $0x10f8] sm:$0xff]
    %v588 = vld [vmem:[#allocation5 + $0x1100] sm:$0xff]
    %v589 = vld [vmem:[#allocation5 + $0x1108] sm:$0xff]
    %v590 = vld [vmem:[#allocation5 + $0x1110] sm:$0xff]
    %v591 = vld [vmem:[#allocation5 + $0x1118] sm:$0xff]
    %v592 = vld [vmem:[#allocation5 + $0x1120] sm:$0xff]
    %v593 = vld [vmem:[#allocation5 + $0x1128] sm:$0xff]
    %v594 = vld [vmem:[#allocation5 + $0x1130] sm:$0xff]
    %v595 = vld [vmem:[#allocation5 + $0x1138] sm:$0xff]
    %v596 = vld [vmem:[#allocation5 + $0x1140] sm:$0xff]
    %v597 = vld [vmem:[#allocation5 + $0x1148] sm:$0xff]
    %v598 = vld [vmem:[#allocation5 + $0x1150] sm:$0xff]
    %v599 = vld [vmem:[#allocation5 + $0x1158] sm:$0xff]
    %v600 = vld [vmem:[#allocation5 + $0x1160] sm:$0xff]
    %v601 = vld [vmem:[#allocation5 + $0x1168] sm:$0xff]
    %v602 = vld [vmem:[#allocation5 + $0x1170] sm:$0xff]
    %v603 = vld [vmem:[#allocation5 + $0x1178] sm:$0xff]
    %v604 = vld [vmem:[#allocation5 + $0x1180] sm:$0xff]
    %v605 = vld [vmem:[#allocation5 + $0x1188] sm:$0xff]
    %v606 = vld [vmem:[#allocation5 + $0x1190] sm:$0xff]
    %v607 = vld [vmem:[#allocation5 + $0x1198] sm:$0xff]
    %v608 = vld [vmem:[#allocation5 + $0x11a0] sm:$0xff]
    %v609 = vld [vmem:[#allocation5 + $0x11a8] sm:$0xff]
    %v610 = vld [vmem:[#allocation5 + $0x11b0] sm:$0xff]
    %v611 = vld [vmem:[#allocation5 + $0x11b8] sm:$0xff]
    %v612 = vld [vmem:[#allocation5 + $0x11c0] sm:$0xff]
    %v613 = vld [vmem:[#allocation5 + $0x11c8] sm:$0xff]
    %v614 = vld [vmem:[#allocation5 + $0x11d0] sm:$0xff]
    %v615 = vld [vmem:[#allocation5 + $0x11d8] sm:$0xff]
    %v616 = vld [vmem:[#allocation5 + $0x11e0] sm:$0xff]
    %v617 = vld [vmem:[#allocation5 + $0x11e8] sm:$0xff]
    %v618 = vld [vmem:[#allocation5 + $0x11f0] sm:$0xff]
    %v619 = vld [vmem:[#allocation5 + $0x11f8] sm:$0xff]
    %v620 = vld [vmem:[#allocation5 + $0x1200] sm:$0xff]
    %v621 = vld [vmem:[#allocation5 + $0x1208] sm:$0xff]
    %v622 = vld [vmem:[#allocation5 + $0x1210] sm:$0xff]
    %v623 = vld [vmem:[#allocation5 + $0x1218] sm:$0xff]
    %v624 = vld [vmem:[#allocation5 + $0x1220] sm:$0xff]
    %v625 = vld [vmem:[#allocation5 + $0x1228] sm:$0xff]
    %v626 = vld [vmem:[#allocation5 + $0x1230] sm:$0xff]
    %v627 = vld [vmem:[#allocation5 + $0x1238] sm:$0xff]
    %v628 = vld [vmem:[#allocation5 + $0x1240] sm:$0xff]
    %v629 = vld [vmem:[#allocation5 + $0x1248] sm:$0xff]
    %v630 = vld [vmem:[#allocation5 + $0x1250] sm:$0xff]
    %v631 = vld [vmem:[#allocation5 + $0x1258] sm:$0xff]
    %v632 = vld [vmem:[#allocation5 + $0x1260] sm:$0xff]
    %v633 = vld [vmem:[#allocation5 + $0x1268] sm:$0xff]
    %v634 = vld [vmem:[#allocation5 + $0x1270] sm:$0xff]
    %v635 = vld [vmem:[#allocation5 + $0x1278] sm:$0xff]
    %v636 = vld [vmem:[#allocation5 + $0x1280] sm:$0xff]
    %v637 = vld [vmem:[#allocation5 + $0x1288] sm:$0xff]
    %v638 = vld [vmem:[#allocation5 + $0x1290] sm:$0xff]
    %v639 = vld [vmem:[#allocation5 + $0x1298] sm:$0xff]
    %v640 = vld [vmem:[#allocation5 + $0x12a0] sm:$0xff]
    %v641 = vld [vmem:[#allocation5 + $0x12a8] sm:$0xff]
    %v642 = vld [vmem:[#allocation5 + $0x12b0] sm:$0xff]
    %v643 = vld [vmem:[#allocation5 + $0x12b8] sm:$0xff]
    %v644 = vld [vmem:[#allocation5 + $0x12c0] sm:$0xff]
    %v645 = vld [vmem:[#allocation5 + $0x12c8] sm:$0xff]
    %v646 = vld [vmem:[#allocation5 + $0x12d0] sm:$0xff]
    %v647 = vld [vmem:[#allocation5 + $0x12d8] sm:$0xff]
    %v648 = vld [vmem:[#allocation5 + $0x12e0] sm:$0xff]
    %v649 = vld [vmem:[#allocation5 + $0x12e8] sm:$0xff]
    %v650 = vld [vmem:[#allocation5 + $0x12f0] sm:$0xff]
    %v651 = vld [vmem:[#allocation5 + $0x12f8] sm:$0xff]
    %v652 = vld [vmem:[#allocation5 + $0x1300] sm:$0xff]
    %v653 = vld [vmem:[#allocation5 + $0x1308] sm:$0xff]
    %v654 = vld [vmem:[#allocation5 + $0x1310] sm:$0xff]
    %v655 = vld [vmem:[#allocation5 + $0x1318] sm:$0xff]
    %v656 = vld [vmem:[#allocation5 + $0x1320] sm:$0xff]
    %v657 = vld [vmem:[#allocation5 + $0x1328] sm:$0xff]
    %v658 = vld [vmem:[#allocation5 + $0x1330] sm:$0xff]
    %v659 = vld [vmem:[#allocation5 + $0x1338] sm:$0xff]
    %v660 = vld [vmem:[#allocation5 + $0x1340] sm:$0xff]
    %v661 = vld [vmem:[#allocation5 + $0x1348] sm:$0xff]
    %v662 = vld [vmem:[#allocation5 + $0x1350] sm:$0xff]
    %v663 = vld [vmem:[#allocation5 + $0x1358] sm:$0xff]
    %v664 = vld [vmem:[#allocation5 + $0x1360] sm:$0xff]
    %v665 = vld [vmem:[#allocation5 + $0x1368] sm:$0xff]
    %v666 = vld [vmem:[#allocation5 + $0x1370] sm:$0xff]
    %v667 = vld [vmem:[#allocation5 + $0x1378] sm:$0xff]
    %v668 = vld [vmem:[#allocation5 + $0x1380] sm:$0xff]
    %v669 = vld [vmem:[#allocation5 + $0x1388] sm:$0xff]
    %v670 = vld [vmem:[#allocation5 + $0x1390] sm:$0xff]
    %v671 = vld [vmem:[#allocation5 + $0x1398] sm:$0xff]
    %v672 = vld [vmem:[#allocation5 + $0x13a0] sm:$0xff]
    %v673 = vld [vmem:[#allocation5 + $0x13a8] sm:$0xff]
    %v674 = vld [vmem:[#allocation5 + $0x13b0] sm:$0xff]
    %v675 = vld [vmem:[#allocation5 + $0x13b8] sm:$0xff]
    %v676 = vld [vmem:[#allocation5 + $0x13c0] sm:$0xff]
    %v677 = vld [vmem:[#allocation5 + $0x13c8] sm:$0xff]
    %v678 = vld [vmem:[#allocation5 + $0x13d0] sm:$0xff]
    %v679 = vld [vmem:[#allocation5 + $0x13d8] sm:$0xff]
    %v680 = vld [vmem:[#allocation5 + $0x13e0] sm:$0xff]
    %v681 = vld [vmem:[#allocation5 + $0x13e8] sm:$0xff]
    %v682 = vld [vmem:[#allocation5 + $0x13f0] sm:$0xff]
    %v683 = vld [vmem:[#allocation5 + $0x13f8] sm:$0xff]
    %v684 = vld [vmem:[#allocation5 + $0x1400] sm:$0xff]
    %v685 = vld [vmem:[#allocation5 + $0x1408] sm:$0xff]
    %v686 = vld [vmem:[#allocation5 + $0x1410] sm:$0xff]
    %v687 = vld [vmem:[#allocation5 + $0x1418] sm:$0xff]
    %v688 = vld [vmem:[#allocation5 + $0x1420] sm:$0xff]
    %v689 = vld [vmem:[#allocation5 + $0x1428] sm:$0xff]
    %v690 = vld [vmem:[#allocation5 + $0x1430] sm:$0xff]
    %v691 = vld [vmem:[#allocation5 + $0x1438] sm:$0xff]
    %v692 = vld [vmem:[#allocation5 + $0x1440] sm:$0xff]
    %v693 = vld [vmem:[#allocation5 + $0x1448] sm:$0xff]
    %v694 = vld [vmem:[#allocation5 + $0x1450] sm:$0xff]
    %v695 = vld [vmem:[#allocation5 + $0x1458] sm:$0xff]
    %v696 = vld [vmem:[#allocation5 + $0x1460] sm:$0xff]
    %v697 = vld [vmem:[#allocation5 + $0x1468] sm:$0xff]
    %v698 = vld [vmem:[#allocation5 + $0x1470] sm:$0xff]
    %v699 = vld [vmem:[#allocation5 + $0x1478] sm:$0xff]
    %v700 = vld [vmem:[#allocation5 + $0x1480] sm:$0xff]
    %v701 = vld [vmem:[#allocation5 + $0x1488] sm:$0xff]
    %v702 = vld [vmem:[#allocation5 + $0x1490] sm:$0xff]
    %v703 = vld [vmem:[#allocation5 + $0x1498] sm:$0xff]
    %v704 = vld [vmem:[#allocation5 + $0x14a0] sm:$0xff]
    %v705 = vld [vmem:[#allocation5 + $0x14a8] sm:$0xff]
    %v706 = vld [vmem:[#allocation5 + $0x14b0] sm:$0xff]
    %v707 = vld [vmem:[#allocation5 + $0x14b8] sm:$0xff]
    %v708 = vld [vmem:[#allocation5 + $0x14c0] sm:$0xff]
    %v709 = vld [vmem:[#allocation5 + $0x14c8] sm:$0xff]
    %v710 = vld [vmem:[#allocation5 + $0x14d0] sm:$0xff]
    %v711 = vld [vmem:[#allocation5 + $0x14d8] sm:$0xff]
    %v712 = vld [vmem:[#allocation5 + $0x14e0] sm:$0xff]
    %v713 = vld [vmem:[#allocation5 + $0x14e8] sm:$0xff]
    %v714 = vld [vmem:[#allocation5 + $0x14f0] sm:$0xff]
    %v715 = vld [vmem:[#allocation5 + $0x14f8] sm:$0xff]
    %v716 = vld [vmem:[#allocation5 + $0x1500] sm:$0xff]
    %v717 = vld [vmem:[#allocation5 + $0x1508] sm:$0xff]
    %v718 = vld [vmem:[#allocation5 + $0x1510] sm:$0xff]
    %v719 = vld [vmem:[#allocation5 + $0x1518] sm:$0xff]
    %v720 = vld [vmem:[#allocation5 + $0x1520] sm:$0xff]
    %v721 = vld [vmem:[#allocation5 + $0x1528] sm:$0xff]
    %v722 = vld [vmem:[#allocation5 + $0x1530] sm:$0xff]
    %v723 = vld [vmem:[#allocation5 + $0x1538] sm:$0xff]
    %v724 = vld [vmem:[#allocation5 + $0x1540] sm:$0xff]
    %v725 = vld [vmem:[#allocation5 + $0x1548] sm:$0xff]
    %v726 = vld [vmem:[#allocation5 + $0x1550] sm:$0xff]
    %v727 = vld [vmem:[#allocation5 + $0x1558] sm:$0xff]
    %v728 = vld [vmem:[#allocation5 + $0x1560] sm:$0xff]
    %v729 = vld [vmem:[#allocation5 + $0x1568] sm:$0xff]
    %v730 = vld [vmem:[#allocation5 + $0x1570] sm:$0xff]
    %v731 = vld [vmem:[#allocation5 + $0x1578] sm:$0xff]
    %v732 = vld [vmem:[#allocation5 + $0x1580] sm:$0xff]
    %v733 = vld [vmem:[#allocation5 + $0x1588] sm:$0xff]
    %v734 = vld [vmem:[#allocation5 + $0x1590] sm:$0xff]
    %v735 = vld [vmem:[#allocation5 + $0x1598] sm:$0xff]
    %v736 = vld [vmem:[#allocation5 + $0x15a0] sm:$0xff]
    %v737 = vld [vmem:[#allocation5 + $0x15a8] sm:$0xff]
    %v738 = vld [vmem:[#allocation5 + $0x15b0] sm:$0xff]
    %v739 = vld [vmem:[#allocation5 + $0x15b8] sm:$0xff]
    %v740 = vld [vmem:[#allocation5 + $0x15c0] sm:$0xff]
    %v741 = vld [vmem:[#allocation5 + $0x15c8] sm:$0xff]
    %v742 = vld [vmem:[#allocation5 + $0x15d0] sm:$0xff]
    %v743 = vld [vmem:[#allocation5 + $0x15d8] sm:$0xff]
    %v744 = vld [vmem:[#allocation5 + $0x15e0] sm:$0xff]
    %v745 = vld [vmem:[#allocation5 + $0x15e8] sm:$0xff]
    %v746 = vld [vmem:[#allocation5 + $0x15f0] sm:$0xff]
    %v747 = vld [vmem:[#allocation5 + $0x15f8] sm:$0xff]
    %v748 = vld [vmem:[#allocation5 + $0x1600] sm:$0xff]
    %v749 = vld [vmem:[#allocation5 + $0x1608] sm:$0xff]
    %v750 = vld [vmem:[#allocation5 + $0x1610] sm:$0xff]
    %v751 = vld [vmem:[#allocation5 + $0x1618] sm:$0xff]
    %v752 = vld [vmem:[#allocation5 + $0x1620] sm:$0xff]
    %v753 = vld [vmem:[#allocation5 + $0x1628] sm:$0xff]
    %v754 = vld [vmem:[#allocation5 + $0x1630] sm:$0xff]
    %v755 = vld [vmem:[#allocation5 + $0x1638] sm:$0xff]
    %v756 = vld [vmem:[#allocation5 + $0x1640] sm:$0xff]
    %v757 = vld [vmem:[#allocation5 + $0x1648] sm:$0xff]
    %v758 = vld [vmem:[#allocation5 + $0x1650] sm:$0xff]
    %v759 = vld [vmem:[#allocation5 + $0x1658] sm:$0xff]
    %v760 = vld [vmem:[#allocation5 + $0x1660] sm:$0xff]
    %v761 = vld [vmem:[#allocation5 + $0x1668] sm:$0xff]
    %v762 = vld [vmem:[#allocation5 + $0x1670] sm:$0xff]
    %v763 = vld [vmem:[#allocation5 + $0x1678] sm:$0xff]
    %v764 = vld [vmem:[#allocation5 + $0x1680] sm:$0xff]
    %v765 = vld [vmem:[#allocation5 + $0x1688] sm:$0xff]
    %v766 = vld [vmem:[#allocation5 + $0x1690] sm:$0xff]
    %v767 = vld [vmem:[#allocation5 + $0x1698] sm:$0xff]
    %v768 = vld [vmem:[#allocation5 + $0x16a0] sm:$0xff]
    %v769 = vld [vmem:[#allocation5 + $0x16a8] sm:$0xff]
    %v770 = vld [vmem:[#allocation5 + $0x16b0] sm:$0xff]
    %v771 = vld [vmem:[#allocation5 + $0x16b8] sm:$0xff]
    %v772 = vld [vmem:[#allocation5 + $0x16c0] sm:$0xff]
    %v773 = vld [vmem:[#allocation5 + $0x16c8] sm:$0xff]
    %v774 = vld [vmem:[#allocation5 + $0x16d0] sm:$0xff]
    %v775 = vld [vmem:[#allocation5 + $0x16d8] sm:$0xff]
    %v776 = vld [vmem:[#allocation5 + $0x16e0] sm:$0xff]
    %v777 = vld [vmem:[#allocation5 + $0x16e8] sm:$0xff]
    %v778 = vld [vmem:[#allocation5 + $0x16f0] sm:$0xff]
    %v779 = vld [vmem:[#allocation5 + $0x16f8] sm:$0xff]
    %v780 = vld [vmem:[#allocation5 + $0x1700] sm:$0xff]
    %v781 = vld [vmem:[#allocation5 + $0x1708] sm:$0xff]
    %v782 = vld [vmem:[#allocation5 + $0x1710] sm:$0xff]
    %v783 = vld [vmem:[#allocation5 + $0x1718] sm:$0xff]
    %v784 = vld [vmem:[#allocation5 + $0x1720] sm:$0xff]
    %v785 = vld [vmem:[#allocation5 + $0x1728] sm:$0xff]
    %v786 = vld [vmem:[#allocation5 + $0x1730] sm:$0xff]
    %v787 = vld [vmem:[#allocation5 + $0x1738] sm:$0xff]
    %v788 = vld [vmem:[#allocation5 + $0x1740] sm:$0xff]
    %v789 = vld [vmem:[#allocation5 + $0x1748] sm:$0xff]
    %v790 = vld [vmem:[#allocation5 + $0x1750] sm:$0xff]
    %v791 = vld [vmem:[#allocation5 + $0x1758] sm:$0xff]
    %v792 = vld [vmem:[#allocation5 + $0x1760] sm:$0xff]
    %v793 = vld [vmem:[#allocation5 + $0x1768] sm:$0xff]
    %v794 = vld [vmem:[#allocation5 + $0x1770] sm:$0xff]
    %v795 = vld [vmem:[#allocation5 + $0x1778] sm:$0xff]
    %v796 = vld [vmem:[#allocation5 + $0x1780] sm:$0xff]
    %v797 = vld [vmem:[#allocation5 + $0x1788] sm:$0xff]
    %v798 = vld [vmem:[#allocation5 + $0x1790] sm:$0xff]
    %v799 = vld [vmem:[#allocation5 + $0x1798] sm:$0xff]
    %v800 = vld [vmem:[#allocation5 + $0x17a0] sm:$0xff]
    %v801 = vld [vmem:[#allocation5 + $0x17a8] sm:$0xff]
    %v802 = vld [vmem:[#allocation5 + $0x17b0] sm:$0xff]
    %v803 = vld [vmem:[#allocation5 + $0x17b8] sm:$0xff]
    %v804 = vld [vmem:[#allocation5 + $0x17c0] sm:$0xff]
    %v805 = vld [vmem:[#allocation5 + $0x17c8] sm:$0xff]
    %v806 = vld [vmem:[#allocation5 + $0x17d0] sm:$0xff]
    %v807 = vld [vmem:[#allocation5 + $0x17d8] sm:$0xff]
    %v808 = vld [vmem:[#allocation5 + $0x17e0] sm:$0xff]
    %v809 = vld [vmem:[#allocation5 + $0x17e8] sm:$0xff]
    %v810 = vld [vmem:[#allocation5 + $0x17f0] sm:$0xff]
    %v811 = vld [vmem:[#allocation5 + $0x17f8] sm:$0xff]
    %v1580 = vunpack.c.l.b16 %v44
    %v1581 = vunpack.c.h.b16 %v44
    %v1582 = vunpack.c.l.b16 %v45
    %v1583 = vunpack.c.h.b16 %v45
    %v1584 = vunpack.c.l.b16 %v46
    %v1585 = vunpack.c.h.b16 %v46
    %v1586 = vunpack.c.l.b16 %v47
    %v1587 = vunpack.c.h.b16 %v47
    %v1588 = vunpack.c.l.b16 %v48
    %v1589 = vunpack.c.h.b16 %v48
    %v1590 = vunpack.c.l.b16 %v49
    %v1591 = vunpack.c.h.b16 %v49
    %v1592 = vunpack.c.l.b16 %v50
    %v1593 = vunpack.c.h.b16 %v50
    %v1594 = vunpack.c.l.b16 %v51
    %v1595 = vunpack.c.h.b16 %v51
    %v1596 = vunpack.c.l.b16 %v52
    %v1597 = vunpack.c.h.b16 %v52
    %v1598 = vunpack.c.l.b16 %v53
    %v1599 = vunpack.c.h.b16 %v53
    %v1600 = vunpack.c.l.b16 %v54
    %v1601 = vunpack.c.h.b16 %v54
    %v1602 = vunpack.c.l.b16 %v55
    %v1603 = vunpack.c.h.b16 %v55
    %v1604 = vunpack.c.l.b16 %v56
    %v1605 = vunpack.c.h.b16 %v56
    %v1606 = vunpack.c.l.b16 %v57
    %v1607 = vunpack.c.h.b16 %v57
    %v1608 = vunpack.c.l.b16 %v58
    %v1609 = vunpack.c.h.b16 %v58
    %v1610 = vunpack.c.l.b16 %v59
    %v1611 = vunpack.c.h.b16 %v59
    %v1612 = vunpack.c.l.b16 %v60
    %v1613 = vunpack.c.h.b16 %v60
    %v1614 = vunpack.c.l.b16 %v61
    %v1615 = vunpack.c.h.b16 %v61
    %v1616 = vunpack.c.l.b16 %v62
    %v1617 = vunpack.c.h.b16 %v62
    %v1618 = vunpack.c.l.b16 %v63
    %v1619 = vunpack.c.h.b16 %v63
    %v1620 = vunpack.c.l.b16 %v64
    %v1621 = vunpack.c.h.b16 %v64
    %v1622 = vunpack.c.l.b16 %v65
    %v1623 = vunpack.c.h.b16 %v65
    %v1624 = vunpack.c.l.b16 %v66
    %v1625 = vunpack.c.h.b16 %v66
    %v1626 = vunpack.c.l.b16 %v67
    %v1627 = vunpack.c.h.b16 %v67
    %v1628 = vunpack.c.l.b16 %v68
    %v1629 = vunpack.c.h.b16 %v68
    %v1630 = vunpack.c.l.b16 %v69
    %v1631 = vunpack.c.h.b16 %v69
    %v1632 = vunpack.c.l.b16 %v70
    %v1633 = vunpack.c.h.b16 %v70
    %v1634 = vunpack.c.l.b16 %v71
    %v1635 = vunpack.c.h.b16 %v71
    %v1636 = vunpack.c.l.b16 %v72
    %v1637 = vunpack.c.h.b16 %v72
    %v1638 = vunpack.c.l.b16 %v73
    %v1639 = vunpack.c.h.b16 %v73
    %v1640 = vunpack.c.l.b16 %v74
    %v1641 = vunpack.c.h.b16 %v74
    %v1642 = vunpack.c.l.b16 %v75
    %v1643 = vunpack.c.h.b16 %v75
    %v1644 = vunpack.c.l.b16 %v76
    %v1645 = vunpack.c.h.b16 %v76
    %v1646 = vunpack.c.l.b16 %v77
    %v1647 = vunpack.c.h.b16 %v77
    %v1648 = vunpack.c.l.b16 %v78
    %v1649 = vunpack.c.h.b16 %v78
    %v1650 = vunpack.c.l.b16 %v79
    %v1651 = vunpack.c.h.b16 %v79
    %v1652 = vunpack.c.l.b16 %v80
    %v1653 = vunpack.c.h.b16 %v80
    %v1654 = vunpack.c.l.b16 %v81
    %v1655 = vunpack.c.h.b16 %v81
    %v1656 = vunpack.c.l.b16 %v82
    %v1657 = vunpack.c.h.b16 %v82
    %v1658 = vunpack.c.l.b16 %v83
    %v1659 = vunpack.c.h.b16 %v83
    %v1660 = vunpack.c.l.b16 %v84
    %v1661 = vunpack.c.h.b16 %v84
    %v1662 = vunpack.c.l.b16 %v85
    %v1663 = vunpack.c.h.b16 %v85
    %v1664 = vunpack.c.l.b16 %v86
    %v1665 = vunpack.c.h.b16 %v86
    %v1666 = vunpack.c.l.b16 %v87
    %v1667 = vunpack.c.h.b16 %v87
    %v1668 = vunpack.c.l.b16 %v88
    %v1669 = vunpack.c.h.b16 %v88
    %v1670 = vunpack.c.l.b16 %v89
    %v1671 = vunpack.c.h.b16 %v89
    %v1672 = vunpack.c.l.b16 %v90
    %v1673 = vunpack.c.h.b16 %v90
    %v1674 = vunpack.c.l.b16 %v91
    %v1675 = vunpack.c.h.b16 %v91
    %v1676 = vunpack.c.l.b16 %v92
    %v1677 = vunpack.c.h.b16 %v92
    %v1678 = vunpack.c.l.b16 %v93
    %v1679 = vunpack.c.h.b16 %v93
    %v1680 = vunpack.c.l.b16 %v94
    %v1681 = vunpack.c.h.b16 %v94
    %v1682 = vunpack.c.l.b16 %v95
    %v1683 = vunpack.c.h.b16 %v95
    %v1684 = vunpack.c.l.b16 %v96
    %v1685 = vunpack.c.h.b16 %v96
    %v1686 = vunpack.c.l.b16 %v97
    %v1687 = vunpack.c.h.b16 %v97
    %v1688 = vunpack.c.l.b16 %v98
    %v1689 = vunpack.c.h.b16 %v98
    %v1690 = vunpack.c.l.b16 %v99
    %v1691 = vunpack.c.h.b16 %v99
    %v1692 = vunpack.c.l.b16 %v100
    %v1693 = vunpack.c.h.b16 %v100
    %v1694 = vunpack.c.l.b16 %v101
    %v1695 = vunpack.c.h.b16 %v101
    %v1696 = vunpack.c.l.b16 %v102
    %v1697 = vunpack.c.h.b16 %v102
    %v1698 = vunpack.c.l.b16 %v103
    %v1699 = vunpack.c.h.b16 %v103
    %v1700 = vunpack.c.l.b16 %v104
    %v1701 = vunpack.c.h.b16 %v104
    %v1702 = vunpack.c.l.b16 %v105
    %v1703 = vunpack.c.h.b16 %v105
    %v1704 = vunpack.c.l.b16 %v106
    %v1705 = vunpack.c.h.b16 %v106
    %v1706 = vunpack.c.l.b16 %v107
    %v1707 = vunpack.c.h.b16 %v107
    %v1708 = vunpack.c.l.b16 %v108
    %v1709 = vunpack.c.h.b16 %v108
    %v1710 = vunpack.c.l.b16 %v109
    %v1711 = vunpack.c.h.b16 %v109
    %v1712 = vunpack.c.l.b16 %v110
    %v1713 = vunpack.c.h.b16 %v110
    %v1714 = vunpack.c.l.b16 %v111
    %v1715 = vunpack.c.h.b16 %v111
    %v1716 = vunpack.c.l.b16 %v112
    %v1717 = vunpack.c.h.b16 %v112
    %v1718 = vunpack.c.l.b16 %v113
    %v1719 = vunpack.c.h.b16 %v113
    %v1720 = vunpack.c.l.b16 %v114
    %v1721 = vunpack.c.h.b16 %v114
    %v1722 = vunpack.c.l.b16 %v115
    %v1723 = vunpack.c.h.b16 %v115
    %v1724 = vunpack.c.l.b16 %v116
    %v1725 = vunpack.c.h.b16 %v116
    %v1726 = vunpack.c.l.b16 %v117
    %v1727 = vunpack.c.h.b16 %v117
    %v1728 = vunpack.c.l.b16 %v118
    %v1729 = vunpack.c.h.b16 %v118
    %v1730 = vunpack.c.l.b16 %v119
    %v1731 = vunpack.c.h.b16 %v119
    %v1732 = vunpack.c.l.b16 %v120
    %v1733 = vunpack.c.h.b16 %v120
    %v1734 = vunpack.c.l.b16 %v121
    %v1735 = vunpack.c.h.b16 %v121
    %v1736 = vunpack.c.l.b16 %v122
    %v1737 = vunpack.c.h.b16 %v122
    %v1738 = vunpack.c.l.b16 %v123
    %v1739 = vunpack.c.h.b16 %v123
    %v1740 = vunpack.c.l.b16 %v124
    %v1741 = vunpack.c.h.b16 %v124
    %v1742 = vunpack.c.l.b16 %v125
    %v1743 = vunpack.c.h.b16 %v125
    %v1744 = vunpack.c.l.b16 %v126
    %v1745 = vunpack.c.h.b16 %v126
    %v1746 = vunpack.c.l.b16 %v127
    %v1747 = vunpack.c.h.b16 %v127
    %v1748 = vunpack.c.l.b16 %v128
    %v1749 = vunpack.c.h.b16 %v128
    %v1750 = vunpack.c.l.b16 %v129
    %v1751 = vunpack.c.h.b16 %v129
    %v1752 = vunpack.c.l.b16 %v130
    %v1753 = vunpack.c.h.b16 %v130
    %v1754 = vunpack.c.l.b16 %v131
    %v1755 = vunpack.c.h.b16 %v131
    %v1756 = vunpack.c.l.b16 %v132
    %v1757 = vunpack.c.h.b16 %v132
    %v1758 = vunpack.c.l.b16 %v133
    %v1759 = vunpack.c.h.b16 %v133
    %v1760 = vunpack.c.l.b16 %v134
    %v1761 = vunpack.c.h.b16 %v134
    %v1762 = vunpack.c.l.b16 %v135
    %v1763 = vunpack.c.h.b16 %v135
    %v1764 = vunpack.c.l.b16 %v136
    %v1765 = vunpack.c.h.b16 %v136
    %v1766 = vunpack.c.l.b16 %v137
    %v1767 = vunpack.c.h.b16 %v137
    %v1768 = vunpack.c.l.b16 %v138
    %v1769 = vunpack.c.h.b16 %v138
    %v1770 = vunpack.c.l.b16 %v139
    %v1771 = vunpack.c.h.b16 %v139
    %v1772 = vunpack.c.l.b16 %v140
    %v1773 = vunpack.c.h.b16 %v140
    %v1774 = vunpack.c.l.b16 %v141
    %v1775 = vunpack.c.h.b16 %v141
    %v1776 = vunpack.c.l.b16 %v142
    %v1777 = vunpack.c.h.b16 %v142
    %v1778 = vunpack.c.l.b16 %v143
    %v1779 = vunpack.c.h.b16 %v143
    %v1780 = vunpack.c.l.b16 %v144
    %v1781 = vunpack.c.h.b16 %v144
    %v1782 = vunpack.c.l.b16 %v145
    %v1783 = vunpack.c.h.b16 %v145
    %v1784 = vunpack.c.l.b16 %v146
    %v1785 = vunpack.c.h.b16 %v146
    %v1786 = vunpack.c.l.b16 %v147
    %v1787 = vunpack.c.h.b16 %v147
    %v1788 = vunpack.c.l.b16 %v148
    %v1789 = vunpack.c.h.b16 %v148
    %v1790 = vunpack.c.l.b16 %v149
    %v1791 = vunpack.c.h.b16 %v149
    %v1792 = vunpack.c.l.b16 %v150
    %v1793 = vunpack.c.h.b16 %v150
    %v1794 = vunpack.c.l.b16 %v151
    %v1795 = vunpack.c.h.b16 %v151
    %v1796 = vunpack.c.l.b16 %v152
    %v1797 = vunpack.c.h.b16 %v152
    %v1798 = vunpack.c.l.b16 %v153
    %v1799 = vunpack.c.h.b16 %v153
    %v1800 = vunpack.c.l.b16 %v154
    %v1801 = vunpack.c.h.b16 %v154
    %v1802 = vunpack.c.l.b16 %v155
    %v1803 = vunpack.c.h.b16 %v155
    %v1804 = vunpack.c.l.b16 %v156
    %v1805 = vunpack.c.h.b16 %v156
    %v1806 = vunpack.c.l.b16 %v157
    %v1807 = vunpack.c.h.b16 %v157
    %v1808 = vunpack.c.l.b16 %v158
    %v1809 = vunpack.c.h.b16 %v158
    %v1810 = vunpack.c.l.b16 %v159
    %v1811 = vunpack.c.h.b16 %v159
    %v1812 = vunpack.c.l.b16 %v160
    %v1813 = vunpack.c.h.b16 %v160
    %v1814 = vunpack.c.l.b16 %v161
    %v1815 = vunpack.c.h.b16 %v161
    %v1816 = vunpack.c.l.b16 %v162
    %v1817 = vunpack.c.h.b16 %v162
    %v1818 = vunpack.c.l.b16 %v163
    %v1819 = vunpack.c.h.b16 %v163
    %v1820 = vunpack.c.l.b16 %v164
    %v1821 = vunpack.c.h.b16 %v164
    %v1822 = vunpack.c.l.b16 %v165
    %v1823 = vunpack.c.h.b16 %v165
    %v1824 = vunpack.c.l.b16 %v166
    %v1825 = vunpack.c.h.b16 %v166
    %v1826 = vunpack.c.l.b16 %v167
    %v1827 = vunpack.c.h.b16 %v167
    %v1828 = vunpack.c.l.b16 %v168
    %v1829 = vunpack.c.h.b16 %v168
    %v1830 = vunpack.c.l.b16 %v169
    %v1831 = vunpack.c.h.b16 %v169
    %v1832 = vunpack.c.l.b16 %v170
    %v1833 = vunpack.c.h.b16 %v170
    %v1834 = vunpack.c.l.b16 %v171
    %v1835 = vunpack.c.h.b16 %v171
    %v1836 = vunpack.c.l.b16 %v172
    %v1837 = vunpack.c.h.b16 %v172
    %v1838 = vunpack.c.l.b16 %v173
    %v1839 = vunpack.c.h.b16 %v173
    %v1840 = vunpack.c.l.b16 %v174
    %v1841 = vunpack.c.h.b16 %v174
    %v1842 = vunpack.c.l.b16 %v175
    %v1843 = vunpack.c.h.b16 %v175
    %v1844 = vunpack.c.l.b16 %v176
    %v1845 = vunpack.c.h.b16 %v176
    %v1846 = vunpack.c.l.b16 %v177
    %v1847 = vunpack.c.h.b16 %v177
    %v1848 = vunpack.c.l.b16 %v178
    %v1849 = vunpack.c.h.b16 %v178
    %v1850 = vunpack.c.l.b16 %v179
    %v1851 = vunpack.c.h.b16 %v179
    %v1852 = vunpack.c.l.b16 %v180
    %v1853 = vunpack.c.h.b16 %v180
    %v1854 = vunpack.c.l.b16 %v181
    %v1855 = vunpack.c.h.b16 %v181
    %v1856 = vunpack.c.l.b16 %v182
    %v1857 = vunpack.c.h.b16 %v182
    %v1858 = vunpack.c.l.b16 %v183
    %v1859 = vunpack.c.h.b16 %v183
    %v1860 = vunpack.c.l.b16 %v184
    %v1861 = vunpack.c.h.b16 %v184
    %v1862 = vunpack.c.l.b16 %v185
    %v1863 = vunpack.c.h.b16 %v185
    %v1864 = vunpack.c.l.b16 %v186
    %v1865 = vunpack.c.h.b16 %v186
    %v1866 = vunpack.c.l.b16 %v187
    %v1867 = vunpack.c.h.b16 %v187
    %v1868 = vunpack.c.l.b16 %v188
    %v1869 = vunpack.c.h.b16 %v188
    %v1870 = vunpack.c.l.b16 %v189
    %v1871 = vunpack.c.h.b16 %v189
    %v1872 = vunpack.c.l.b16 %v190
    %v1873 = vunpack.c.h.b16 %v190
    %v1874 = vunpack.c.l.b16 %v191
    %v1875 = vunpack.c.h.b16 %v191
    %v1876 = vunpack.c.l.b16 %v192
    %v1877 = vunpack.c.h.b16 %v192
    %v1878 = vunpack.c.l.b16 %v193
    %v1879 = vunpack.c.h.b16 %v193
    %v1880 = vunpack.c.l.b16 %v194
    %v1881 = vunpack.c.h.b16 %v194
    %v1882 = vunpack.c.l.b16 %v195
    %v1883 = vunpack.c.h.b16 %v195
    %v1884 = vunpack.c.l.b16 %v196
    %v1885 = vunpack.c.h.b16 %v196
    %v1886 = vunpack.c.l.b16 %v197
    %v1887 = vunpack.c.h.b16 %v197
    %v1888 = vunpack.c.l.b16 %v198
    %v1889 = vunpack.c.h.b16 %v198
    %v1890 = vunpack.c.l.b16 %v199
    %v1891 = vunpack.c.h.b16 %v199
    %v1892 = vunpack.c.l.b16 %v200
    %v1893 = vunpack.c.h.b16 %v200
    %v1894 = vunpack.c.l.b16 %v201
    %v1895 = vunpack.c.h.b16 %v201
    %v1896 = vunpack.c.l.b16 %v202
    %v1897 = vunpack.c.h.b16 %v202
    %v1898 = vunpack.c.l.b16 %v203
    %v1899 = vunpack.c.h.b16 %v203
    %v1900 = vunpack.c.l.b16 %v204
    %v1901 = vunpack.c.h.b16 %v204
    %v1902 = vunpack.c.l.b16 %v205
    %v1903 = vunpack.c.h.b16 %v205
    %v1904 = vunpack.c.l.b16 %v206
    %v1905 = vunpack.c.h.b16 %v206
    %v1906 = vunpack.c.l.b16 %v207
    %v1907 = vunpack.c.h.b16 %v207
    %v1908 = vunpack.c.l.b16 %v208
    %v1909 = vunpack.c.h.b16 %v208
    %v1910 = vunpack.c.l.b16 %v209
    %v1911 = vunpack.c.h.b16 %v209
    %v1912 = vunpack.c.l.b16 %v210
    %v1913 = vunpack.c.h.b16 %v210
    %v1914 = vunpack.c.l.b16 %v211
    %v1915 = vunpack.c.h.b16 %v211
    %v1916 = vunpack.c.l.b16 %v212
    %v1917 = vunpack.c.h.b16 %v212
    %v1918 = vunpack.c.l.b16 %v213
    %v1919 = vunpack.c.h.b16 %v213
    %v1920 = vunpack.c.l.b16 %v214
    %v1921 = vunpack.c.h.b16 %v214
    %v1922 = vunpack.c.l.b16 %v215
    %v1923 = vunpack.c.h.b16 %v215
    %v1924 = vunpack.c.l.b16 %v216
    %v1925 = vunpack.c.h.b16 %v216
    %v1926 = vunpack.c.l.b16 %v217
    %v1927 = vunpack.c.h.b16 %v217
    %v1928 = vunpack.c.l.b16 %v218
    %v1929 = vunpack.c.h.b16 %v218
    %v1930 = vunpack.c.l.b16 %v219
    %v1931 = vunpack.c.h.b16 %v219
    %v1932 = vunpack.c.l.b16 %v220
    %v1933 = vunpack.c.h.b16 %v220
    %v1934 = vunpack.c.l.b16 %v221
    %v1935 = vunpack.c.h.b16 %v221
    %v1936 = vunpack.c.l.b16 %v222
    %v1937 = vunpack.c.h.b16 %v222
    %v1938 = vunpack.c.l.b16 %v223
    %v1939 = vunpack.c.h.b16 %v223
    %v1940 = vunpack.c.l.b16 %v224
    %v1941 = vunpack.c.h.b16 %v224
    %v1942 = vunpack.c.l.b16 %v225
    %v1943 = vunpack.c.h.b16 %v225
    %v1944 = vunpack.c.l.b16 %v226
    %v1945 = vunpack.c.h.b16 %v226
    %v1946 = vunpack.c.l.b16 %v227
    %v1947 = vunpack.c.h.b16 %v227
    %v1948 = vunpack.c.l.b16 %v228
    %v1949 = vunpack.c.h.b16 %v228
    %v1950 = vunpack.c.l.b16 %v229
    %v1951 = vunpack.c.h.b16 %v229
    %v1952 = vunpack.c.l.b16 %v230
    %v1953 = vunpack.c.h.b16 %v230
    %v1954 = vunpack.c.l.b16 %v231
    %v1955 = vunpack.c.h.b16 %v231
    %v1956 = vunpack.c.l.b16 %v232
    %v1957 = vunpack.c.h.b16 %v232
    %v1958 = vunpack.c.l.b16 %v233
    %v1959 = vunpack.c.h.b16 %v233
    %v1960 = vunpack.c.l.b16 %v234
    %v1961 = vunpack.c.h.b16 %v234
    %v1962 = vunpack.c.l.b16 %v235
    %v1963 = vunpack.c.h.b16 %v235
    %v1964 = vunpack.c.l.b16 %v236
    %v1965 = vunpack.c.h.b16 %v236
    %v1966 = vunpack.c.l.b16 %v237
    %v1967 = vunpack.c.h.b16 %v237
    %v1968 = vunpack.c.l.b16 %v238
    %v1969 = vunpack.c.h.b16 %v238
    %v1970 = vunpack.c.l.b16 %v239
    %v1971 = vunpack.c.h.b16 %v239
    %v1972 = vunpack.c.l.b16 %v240
    %v1973 = vunpack.c.h.b16 %v240
    %v1974 = vunpack.c.l.b16 %v241
    %v1975 = vunpack.c.h.b16 %v241
    %v1976 = vunpack.c.l.b16 %v242
    %v1977 = vunpack.c.h.b16 %v242
    %v1978 = vunpack.c.l.b16 %v243
    %v1979 = vunpack.c.h.b16 %v243
    %v1980 = vunpack.c.l.b16 %v244
    %v1981 = vunpack.c.h.b16 %v244
    %v1982 = vunpack.c.l.b16 %v245
    %v1983 = vunpack.c.h.b16 %v245
    %v1984 = vunpack.c.l.b16 %v246
    %v1985 = vunpack.c.h.b16 %v246
    %v1986 = vunpack.c.l.b16 %v247
    %v1987 = vunpack.c.h.b16 %v247
    %v1988 = vunpack.c.l.b16 %v248
    %v1989 = vunpack.c.h.b16 %v248
    %v1990 = vunpack.c.l.b16 %v249
    %v1991 = vunpack.c.h.b16 %v249
    %v1992 = vunpack.c.l.b16 %v250
    %v1993 = vunpack.c.h.b16 %v250
    %v1994 = vunpack.c.l.b16 %v251
    %v1995 = vunpack.c.h.b16 %v251
    %v1996 = vunpack.c.l.b16 %v252
    %v1997 = vunpack.c.h.b16 %v252
    %v1998 = vunpack.c.l.b16 %v253
    %v1999 = vunpack.c.h.b16 %v253
    %v2000 = vunpack.c.l.b16 %v254
    %v2001 = vunpack.c.h.b16 %v254
    %v2002 = vunpack.c.l.b16 %v255
    %v2003 = vunpack.c.h.b16 %v255
    %v2004 = vunpack.c.l.b16 %v256
    %v2005 = vunpack.c.h.b16 %v256
    %v2006 = vunpack.c.l.b16 %v257
    %v2007 = vunpack.c.h.b16 %v257
    %v2008 = vunpack.c.l.b16 %v258
    %v2009 = vunpack.c.h.b16 %v258
    %v2010 = vunpack.c.l.b16 %v259
    %v2011 = vunpack.c.h.b16 %v259
    %v2012 = vunpack.c.l.b16 %v260
    %v2013 = vunpack.c.h.b16 %v260
    %v2014 = vunpack.c.l.b16 %v261
    %v2015 = vunpack.c.h.b16 %v261
    %v2016 = vunpack.c.l.b16 %v262
    %v2017 = vunpack.c.h.b16 %v262
    %v2018 = vunpack.c.l.b16 %v263
    %v2019 = vunpack.c.h.b16 %v263
    %v2020 = vunpack.c.l.b16 %v264
    %v2021 = vunpack.c.h.b16 %v264
    %v2022 = vunpack.c.l.b16 %v265
    %v2023 = vunpack.c.h.b16 %v265
    %v2024 = vunpack.c.l.b16 %v266
    %v2025 = vunpack.c.h.b16 %v266
    %v2026 = vunpack.c.l.b16 %v267
    %v2027 = vunpack.c.h.b16 %v267
    %v2028 = vunpack.c.l.b16 %v268
    %v2029 = vunpack.c.h.b16 %v268
    %v2030 = vunpack.c.l.b16 %v269
    %v2031 = vunpack.c.h.b16 %v269
    %v2032 = vunpack.c.l.b16 %v270
    %v2033 = vunpack.c.h.b16 %v270
    %v2034 = vunpack.c.l.b16 %v271
    %v2035 = vunpack.c.h.b16 %v271
    %v2036 = vunpack.c.l.b16 %v272
    %v2037 = vunpack.c.h.b16 %v272
    %v2038 = vunpack.c.l.b16 %v273
    %v2039 = vunpack.c.h.b16 %v273
    %v2040 = vunpack.c.l.b16 %v274
    %v2041 = vunpack.c.h.b16 %v274
    %v2042 = vunpack.c.l.b16 %v275
    %v2043 = vunpack.c.h.b16 %v275
    %v2044 = vunpack.c.l.b16 %v276
    %v2045 = vunpack.c.h.b16 %v276
    %v2046 = vunpack.c.l.b16 %v277
    %v2047 = vunpack.c.h.b16 %v277
    %v2048 = vunpack.c.l.b16 %v278
    %v2049 = vunpack.c.h.b16 %v278
    %v2050 = vunpack.c.l.b16 %v279
    %v2051 = vunpack.c.h.b16 %v279
    %v2052 = vunpack.c.l.b16 %v280
    %v2053 = vunpack.c.h.b16 %v280
    %v2054 = vunpack.c.l.b16 %v281
    %v2055 = vunpack.c.h.b16 %v281
    %v2056 = vunpack.c.l.b16 %v282
    %v2057 = vunpack.c.h.b16 %v282
    %v2058 = vunpack.c.l.b16 %v283
    %v2059 = vunpack.c.h.b16 %v283
    %v2060 = vunpack.c.l.b16 %v284
    %v2061 = vunpack.c.h.b16 %v284
    %v2062 = vunpack.c.l.b16 %v285
    %v2063 = vunpack.c.h.b16 %v285
    %v2064 = vunpack.c.l.b16 %v286
    %v2065 = vunpack.c.h.b16 %v286
    %v2066 = vunpack.c.l.b16 %v287
    %v2067 = vunpack.c.h.b16 %v287
    %v2068 = vunpack.c.l.b16 %v288
    %v2069 = vunpack.c.h.b16 %v288
    %v2070 = vunpack.c.l.b16 %v289
    %v2071 = vunpack.c.h.b16 %v289
    %v2072 = vunpack.c.l.b16 %v290
    %v2073 = vunpack.c.h.b16 %v290
    %v2074 = vunpack.c.l.b16 %v291
    %v2075 = vunpack.c.h.b16 %v291
    %v2076 = vunpack.c.l.b16 %v292
    %v2077 = vunpack.c.h.b16 %v292
    %v2078 = vunpack.c.l.b16 %v293
    %v2079 = vunpack.c.h.b16 %v293
    %v2080 = vunpack.c.l.b16 %v294
    %v2081 = vunpack.c.h.b16 %v294
    %v2082 = vunpack.c.l.b16 %v295
    %v2083 = vunpack.c.h.b16 %v295
    %v2084 = vunpack.c.l.b16 %v296
    %v2085 = vunpack.c.h.b16 %v296
    %v2086 = vunpack.c.l.b16 %v297
    %v2087 = vunpack.c.h.b16 %v297
    %v2088 = vunpack.c.l.b16 %v298
    %v2089 = vunpack.c.h.b16 %v298
    %v2090 = vunpack.c.l.b16 %v299
    %v2091 = vunpack.c.h.b16 %v299
    %v2092 = vunpack.c.l.b16 %v300
    %v2093 = vunpack.c.h.b16 %v300
    %v2094 = vunpack.c.l.b16 %v301
    %v2095 = vunpack.c.h.b16 %v301
    %v2096 = vunpack.c.l.b16 %v302
    %v2097 = vunpack.c.h.b16 %v302
    %v2098 = vunpack.c.l.b16 %v303
    %v2099 = vunpack.c.h.b16 %v303
    %v2100 = vunpack.c.l.b16 %v304
    %v2101 = vunpack.c.h.b16 %v304
    %v2102 = vunpack.c.l.b16 %v305
    %v2103 = vunpack.c.h.b16 %v305
    %v2104 = vunpack.c.l.b16 %v306
    %v2105 = vunpack.c.h.b16 %v306
    %v2106 = vunpack.c.l.b16 %v307
    %v2107 = vunpack.c.h.b16 %v307
    %v2108 = vunpack.c.l.b16 %v308
    %v2109 = vunpack.c.h.b16 %v308
    %v2110 = vunpack.c.l.b16 %v309
    %v2111 = vunpack.c.h.b16 %v309
    %v2112 = vunpack.c.l.b16 %v310
    %v2113 = vunpack.c.h.b16 %v310
    %v2114 = vunpack.c.l.b16 %v311
    %v2115 = vunpack.c.h.b16 %v311
    %v2116 = vunpack.c.l.b16 %v312
    %v2117 = vunpack.c.h.b16 %v312
    %v2118 = vunpack.c.l.b16 %v313
    %v2119 = vunpack.c.h.b16 %v313
    %v2120 = vunpack.c.l.b16 %v314
    %v2121 = vunpack.c.h.b16 %v314
    %v2122 = vunpack.c.l.b16 %v315
    %v2123 = vunpack.c.h.b16 %v315
    %v2124 = vunpack.c.l.b16 %v316
    %v2125 = vunpack.c.h.b16 %v316
    %v2126 = vunpack.c.l.b16 %v317
    %v2127 = vunpack.c.h.b16 %v317
    %v2128 = vunpack.c.l.b16 %v318
    %v2129 = vunpack.c.h.b16 %v318
    %v2130 = vunpack.c.l.b16 %v319
    %v2131 = vunpack.c.h.b16 %v319
    %v2132 = vunpack.c.l.b16 %v320
    %v2133 = vunpack.c.h.b16 %v320
    %v2134 = vunpack.c.l.b16 %v321
    %v2135 = vunpack.c.h.b16 %v321
    %v2136 = vunpack.c.l.b16 %v322
    %v2137 = vunpack.c.h.b16 %v322
    %v2138 = vunpack.c.l.b16 %v323
    %v2139 = vunpack.c.h.b16 %v323
    %v2140 = vunpack.c.l.b16 %v324
    %v2141 = vunpack.c.h.b16 %v324
    %v2142 = vunpack.c.l.b16 %v325
    %v2143 = vunpack.c.h.b16 %v325
    %v2144 = vunpack.c.l.b16 %v326
    %v2145 = vunpack.c.h.b16 %v326
    %v2146 = vunpack.c.l.b16 %v327
    %v2147 = vunpack.c.h.b16 %v327
    %v2148 = vunpack.c.l.b16 %v328
    %v2149 = vunpack.c.h.b16 %v328
    %v2150 = vunpack.c.l.b16 %v329
    %v2151 = vunpack.c.h.b16 %v329
    %v2152 = vunpack.c.l.b16 %v330
    %v2153 = vunpack.c.h.b16 %v330
    %v2154 = vunpack.c.l.b16 %v331
    %v2155 = vunpack.c.h.b16 %v331
    %v2156 = vunpack.c.l.b16 %v332
    %v2157 = vunpack.c.h.b16 %v332
    %v2158 = vunpack.c.l.b16 %v333
    %v2159 = vunpack.c.h.b16 %v333
    %v2160 = vunpack.c.l.b16 %v334
    %v2161 = vunpack.c.h.b16 %v334
    %v2162 = vunpack.c.l.b16 %v335
    %v2163 = vunpack.c.h.b16 %v335
    %v2164 = vunpack.c.l.b16 %v336
    %v2165 = vunpack.c.h.b16 %v336
    %v2166 = vunpack.c.l.b16 %v337
    %v2167 = vunpack.c.h.b16 %v337
    %v2168 = vunpack.c.l.b16 %v338
    %v2169 = vunpack.c.h.b16 %v338
    %v2170 = vunpack.c.l.b16 %v339
    %v2171 = vunpack.c.h.b16 %v339
    %v2172 = vunpack.c.l.b16 %v340
    %v2173 = vunpack.c.h.b16 %v340
    %v2174 = vunpack.c.l.b16 %v341
    %v2175 = vunpack.c.h.b16 %v341
    %v2176 = vunpack.c.l.b16 %v342
    %v2177 = vunpack.c.h.b16 %v342
    %v2178 = vunpack.c.l.b16 %v343
    %v2179 = vunpack.c.h.b16 %v343
    %v2180 = vunpack.c.l.b16 %v344
    %v2181 = vunpack.c.h.b16 %v344
    %v2182 = vunpack.c.l.b16 %v345
    %v2183 = vunpack.c.h.b16 %v345
    %v2184 = vunpack.c.l.b16 %v346
    %v2185 = vunpack.c.h.b16 %v346
    %v2186 = vunpack.c.l.b16 %v347
    %v2187 = vunpack.c.h.b16 %v347
    %v2188 = vunpack.c.l.b16 %v348
    %v2189 = vunpack.c.h.b16 %v348
    %v2190 = vunpack.c.l.b16 %v349
    %v2191 = vunpack.c.h.b16 %v349
    %v2192 = vunpack.c.l.b16 %v350
    %v2193 = vunpack.c.h.b16 %v350
    %v2194 = vunpack.c.l.b16 %v351
    %v2195 = vunpack.c.h.b16 %v351
    %v2196 = vunpack.c.l.b16 %v352
    %v2197 = vunpack.c.h.b16 %v352
    %v2198 = vunpack.c.l.b16 %v353
    %v2199 = vunpack.c.h.b16 %v353
    %v2200 = vunpack.c.l.b16 %v354
    %v2201 = vunpack.c.h.b16 %v354
    %v2202 = vunpack.c.l.b16 %v355
    %v2203 = vunpack.c.h.b16 %v355
    %v2204 = vunpack.c.l.b16 %v356
    %v2205 = vunpack.c.h.b16 %v356
    %v2206 = vunpack.c.l.b16 %v357
    %v2207 = vunpack.c.h.b16 %v357
    %v2208 = vunpack.c.l.b16 %v358
    %v2209 = vunpack.c.h.b16 %v358
    %v2210 = vunpack.c.l.b16 %v359
    %v2211 = vunpack.c.h.b16 %v359
    %v2212 = vunpack.c.l.b16 %v360
    %v2213 = vunpack.c.h.b16 %v360
    %v2214 = vunpack.c.l.b16 %v361
    %v2215 = vunpack.c.h.b16 %v361
    %v2216 = vunpack.c.l.b16 %v362
    %v2217 = vunpack.c.h.b16 %v362
    %v2218 = vunpack.c.l.b16 %v363
    %v2219 = vunpack.c.h.b16 %v363
    %v2220 = vunpack.c.l.b16 %v364
    %v2221 = vunpack.c.h.b16 %v364
    %v2222 = vunpack.c.l.b16 %v365
    %v2223 = vunpack.c.h.b16 %v365
    %v2224 = vunpack.c.l.b16 %v366
    %v2225 = vunpack.c.h.b16 %v366
    %v2226 = vunpack.c.l.b16 %v367
    %v2227 = vunpack.c.h.b16 %v367
    %v2228 = vunpack.c.l.b16 %v368
    %v2229 = vunpack.c.h.b16 %v368
    %v2230 = vunpack.c.l.b16 %v369
    %v2231 = vunpack.c.h.b16 %v369
    %v2232 = vunpack.c.l.b16 %v370
    %v2233 = vunpack.c.h.b16 %v370
    %v2234 = vunpack.c.l.b16 %v371
    %v2235 = vunpack.c.h.b16 %v371
    %v2236 = vunpack.c.l.b16 %v372
    %v2237 = vunpack.c.h.b16 %v372
    %v2238 = vunpack.c.l.b16 %v373
    %v2239 = vunpack.c.h.b16 %v373
    %v2240 = vunpack.c.l.b16 %v374
    %v2241 = vunpack.c.h.b16 %v374
    %v2242 = vunpack.c.l.b16 %v375
    %v2243 = vunpack.c.h.b16 %v375
    %v2244 = vunpack.c.l.b16 %v376
    %v2245 = vunpack.c.h.b16 %v376
    %v2246 = vunpack.c.l.b16 %v377
    %v2247 = vunpack.c.h.b16 %v377
    %v2248 = vunpack.c.l.b16 %v378
    %v2249 = vunpack.c.h.b16 %v378
    %v2250 = vunpack.c.l.b16 %v379
    %v2251 = vunpack.c.h.b16 %v379
    %v2252 = vunpack.c.l.b16 %v380
    %v2253 = vunpack.c.h.b16 %v380
    %v2254 = vunpack.c.l.b16 %v381
    %v2255 = vunpack.c.h.b16 %v381
    %v2256 = vunpack.c.l.b16 %v382
    %v2257 = vunpack.c.h.b16 %v382
    %v2258 = vunpack.c.l.b16 %v383
    %v2259 = vunpack.c.h.b16 %v383
    %v2260 = vunpack.c.l.b16 %v384
    %v2261 = vunpack.c.h.b16 %v384
    %v2262 = vunpack.c.l.b16 %v385
    %v2263 = vunpack.c.h.b16 %v385
    %v2264 = vunpack.c.l.b16 %v386
    %v2265 = vunpack.c.h.b16 %v386
    %v2266 = vunpack.c.l.b16 %v387
    %v2267 = vunpack.c.h.b16 %v387
    %v2268 = vunpack.c.l.b16 %v388
    %v2269 = vunpack.c.h.b16 %v388
    %v2270 = vunpack.c.l.b16 %v389
    %v2271 = vunpack.c.h.b16 %v389
    %v2272 = vunpack.c.l.b16 %v390
    %v2273 = vunpack.c.h.b16 %v390
    %v2274 = vunpack.c.l.b16 %v391
    %v2275 = vunpack.c.h.b16 %v391
    %v2276 = vunpack.c.l.b16 %v392
    %v2277 = vunpack.c.h.b16 %v392
    %v2278 = vunpack.c.l.b16 %v393
    %v2279 = vunpack.c.h.b16 %v393
    %v2280 = vunpack.c.l.b16 %v394
    %v2281 = vunpack.c.h.b16 %v394
    %v2282 = vunpack.c.l.b16 %v395
    %v2283 = vunpack.c.h.b16 %v395
    %v2284 = vunpack.c.l.b16 %v396
    %v2285 = vunpack.c.h.b16 %v396
    %v2286 = vunpack.c.l.b16 %v397
    %v2287 = vunpack.c.h.b16 %v397
    %v2288 = vunpack.c.l.b16 %v398
    %v2289 = vunpack.c.h.b16 %v398
    %v2290 = vunpack.c.l.b16 %v399
    %v2291 = vunpack.c.h.b16 %v399
    %v2292 = vunpack.c.l.b16 %v400
    %v2293 = vunpack.c.h.b16 %v400
    %v2294 = vunpack.c.l.b16 %v401
    %v2295 = vunpack.c.h.b16 %v401
    %v2296 = vunpack.c.l.b16 %v402
    %v2297 = vunpack.c.h.b16 %v402
    %v2298 = vunpack.c.l.b16 %v403
    %v2299 = vunpack.c.h.b16 %v403
    %v2300 = vunpack.c.l.b16 %v404
    %v2301 = vunpack.c.h.b16 %v404
    %v2302 = vunpack.c.l.b16 %v405
    %v2303 = vunpack.c.h.b16 %v405
    %v2304 = vunpack.c.l.b16 %v406
    %v2305 = vunpack.c.h.b16 %v406
    %v2306 = vunpack.c.l.b16 %v407
    %v2307 = vunpack.c.h.b16 %v407
    %v2308 = vunpack.c.l.b16 %v408
    %v2309 = vunpack.c.h.b16 %v408
    %v2310 = vunpack.c.l.b16 %v409
    %v2311 = vunpack.c.h.b16 %v409
    %v2312 = vunpack.c.l.b16 %v410
    %v2313 = vunpack.c.h.b16 %v410
    %v2314 = vunpack.c.l.b16 %v411
    %v2315 = vunpack.c.h.b16 %v411
    %v2316 = vunpack.c.l.b16 %v412
    %v2317 = vunpack.c.h.b16 %v412
    %v2318 = vunpack.c.l.b16 %v413
    %v2319 = vunpack.c.h.b16 %v413
    %v2320 = vunpack.c.l.b16 %v414
    %v2321 = vunpack.c.h.b16 %v414
    %v2322 = vunpack.c.l.b16 %v415
    %v2323 = vunpack.c.h.b16 %v415
    %v2324 = vunpack.c.l.b16 %v416
    %v2325 = vunpack.c.h.b16 %v416
    %v2326 = vunpack.c.l.b16 %v417
    %v2327 = vunpack.c.h.b16 %v417
    %v2328 = vunpack.c.l.b16 %v418
    %v2329 = vunpack.c.h.b16 %v418
    %v2330 = vunpack.c.l.b16 %v419
    %v2331 = vunpack.c.h.b16 %v419
    %v2332 = vunpack.c.l.b16 %v420
    %v2333 = vunpack.c.h.b16 %v420
    %v2334 = vunpack.c.l.b16 %v421
    %v2335 = vunpack.c.h.b16 %v421
    %v2336 = vunpack.c.l.b16 %v422
    %v2337 = vunpack.c.h.b16 %v422
    %v2338 = vunpack.c.l.b16 %v423
    %v2339 = vunpack.c.h.b16 %v423
    %v2340 = vunpack.c.l.b16 %v424
    %v2341 = vunpack.c.h.b16 %v424
    %v2342 = vunpack.c.l.b16 %v425
    %v2343 = vunpack.c.h.b16 %v425
    %v2344 = vunpack.c.l.b16 %v426
    %v2345 = vunpack.c.h.b16 %v426
    %v2346 = vunpack.c.l.b16 %v427
    %v2347 = vunpack.c.h.b16 %v427
    %v2348 = vunpack.c.l.b16 %v428
    %v2349 = vunpack.c.h.b16 %v428
    %v2350 = vunpack.c.l.b16 %v429
    %v2351 = vunpack.c.h.b16 %v429
    %v2352 = vunpack.c.l.b16 %v430
    %v2353 = vunpack.c.h.b16 %v430
    %v2354 = vunpack.c.l.b16 %v431
    %v2355 = vunpack.c.h.b16 %v431
    %v2356 = vunpack.c.l.b16 %v432
    %v2357 = vunpack.c.h.b16 %v432
    %v2358 = vunpack.c.l.b16 %v433
    %v2359 = vunpack.c.h.b16 %v433
    %v2360 = vunpack.c.l.b16 %v434
    %v2361 = vunpack.c.h.b16 %v434
    %v2362 = vunpack.c.l.b16 %v435
    %v2363 = vunpack.c.h.b16 %v435
    %v2364 = vunpack.c.l.b16 %v436
    %v2365 = vunpack.c.h.b16 %v436
    %v2366 = vunpack.c.l.b16 %v437
    %v2367 = vunpack.c.h.b16 %v437
    %v2368 = vunpack.c.l.b16 %v438
    %v2369 = vunpack.c.h.b16 %v438
    %v2370 = vunpack.c.l.b16 %v439
    %v2371 = vunpack.c.h.b16 %v439
    %v2372 = vunpack.c.l.b16 %v440
    %v2373 = vunpack.c.h.b16 %v440
    %v2374 = vunpack.c.l.b16 %v441
    %v2375 = vunpack.c.h.b16 %v441
    %v2376 = vunpack.c.l.b16 %v442
    %v2377 = vunpack.c.h.b16 %v442
    %v2378 = vunpack.c.l.b16 %v443
    %v2379 = vunpack.c.h.b16 %v443
    %v2380 = vunpack.c.l.b16 %v444
    %v2381 = vunpack.c.h.b16 %v444
    %v2382 = vunpack.c.l.b16 %v445
    %v2383 = vunpack.c.h.b16 %v445
    %v2384 = vunpack.c.l.b16 %v446
    %v2385 = vunpack.c.h.b16 %v446
    %v2386 = vunpack.c.l.b16 %v447
    %v2387 = vunpack.c.h.b16 %v447
    %v2388 = vunpack.c.l.b16 %v448
    %v2389 = vunpack.c.h.b16 %v448
    %v2390 = vunpack.c.l.b16 %v449
    %v2391 = vunpack.c.h.b16 %v449
    %v2392 = vunpack.c.l.b16 %v450
    %v2393 = vunpack.c.h.b16 %v450
    %v2394 = vunpack.c.l.b16 %v451
    %v2395 = vunpack.c.h.b16 %v451
    %v2396 = vunpack.c.l.b16 %v452
    %v2397 = vunpack.c.h.b16 %v452
    %v2398 = vunpack.c.l.b16 %v453
    %v2399 = vunpack.c.h.b16 %v453
    %v2400 = vunpack.c.l.b16 %v454
    %v2401 = vunpack.c.h.b16 %v454
    %v2402 = vunpack.c.l.b16 %v455
    %v2403 = vunpack.c.h.b16 %v455
    %v2404 = vunpack.c.l.b16 %v456
    %v2405 = vunpack.c.h.b16 %v456
    %v2406 = vunpack.c.l.b16 %v457
    %v2407 = vunpack.c.h.b16 %v457
    %v2408 = vunpack.c.l.b16 %v458
    %v2409 = vunpack.c.h.b16 %v458
    %v2410 = vunpack.c.l.b16 %v459
    %v2411 = vunpack.c.h.b16 %v459
    %v2412 = vunpack.c.l.b16 %v460
    %v2413 = vunpack.c.h.b16 %v460
    %v2414 = vunpack.c.l.b16 %v461
    %v2415 = vunpack.c.h.b16 %v461
    %v2416 = vunpack.c.l.b16 %v462
    %v2417 = vunpack.c.h.b16 %v462
    %v2418 = vunpack.c.l.b16 %v463
    %v2419 = vunpack.c.h.b16 %v463
    %v2420 = vunpack.c.l.b16 %v464
    %v2421 = vunpack.c.h.b16 %v464
    %v2422 = vunpack.c.l.b16 %v465
    %v2423 = vunpack.c.h.b16 %v465
    %v2424 = vunpack.c.l.b16 %v466
    %v2425 = vunpack.c.h.b16 %v466
    %v2426 = vunpack.c.l.b16 %v467
    %v2427 = vunpack.c.h.b16 %v467
    %v2428 = vunpack.c.l.b16 %v468
    %v2429 = vunpack.c.h.b16 %v468
    %v2430 = vunpack.c.l.b16 %v469
    %v2431 = vunpack.c.h.b16 %v469
    %v2432 = vunpack.c.l.b16 %v470
    %v2433 = vunpack.c.h.b16 %v470
    %v2434 = vunpack.c.l.b16 %v471
    %v2435 = vunpack.c.h.b16 %v471
    %v2436 = vunpack.c.l.b16 %v472
    %v2437 = vunpack.c.h.b16 %v472
    %v2438 = vunpack.c.l.b16 %v473
    %v2439 = vunpack.c.h.b16 %v473
    %v2440 = vunpack.c.l.b16 %v474
    %v2441 = vunpack.c.h.b16 %v474
    %v2442 = vunpack.c.l.b16 %v475
    %v2443 = vunpack.c.h.b16 %v475
    %v2444 = vunpack.c.l.b16 %v476
    %v2445 = vunpack.c.h.b16 %v476
    %v2446 = vunpack.c.l.b16 %v477
    %v2447 = vunpack.c.h.b16 %v477
    %v2448 = vunpack.c.l.b16 %v478
    %v2449 = vunpack.c.h.b16 %v478
    %v2450 = vunpack.c.l.b16 %v479
    %v2451 = vunpack.c.h.b16 %v479
    %v2452 = vunpack.c.l.b16 %v480
    %v2453 = vunpack.c.h.b16 %v480
    %v2454 = vunpack.c.l.b16 %v481
    %v2455 = vunpack.c.h.b16 %v481
    %v2456 = vunpack.c.l.b16 %v482
    %v2457 = vunpack.c.h.b16 %v482
    %v2458 = vunpack.c.l.b16 %v483
    %v2459 = vunpack.c.h.b16 %v483
    %v2460 = vunpack.c.l.b16 %v484
    %v2461 = vunpack.c.h.b16 %v484
    %v2462 = vunpack.c.l.b16 %v485
    %v2463 = vunpack.c.h.b16 %v485
    %v2464 = vunpack.c.l.b16 %v486
    %v2465 = vunpack.c.h.b16 %v486
    %v2466 = vunpack.c.l.b16 %v487
    %v2467 = vunpack.c.h.b16 %v487
    %v2468 = vunpack.c.l.b16 %v488
    %v2469 = vunpack.c.h.b16 %v488
    %v2470 = vunpack.c.l.b16 %v489
    %v2471 = vunpack.c.h.b16 %v489
    %v2472 = vunpack.c.l.b16 %v490
    %v2473 = vunpack.c.h.b16 %v490
    %v2474 = vunpack.c.l.b16 %v491
    %v2475 = vunpack.c.h.b16 %v491
    %v2476 = vunpack.c.l.b16 %v492
    %v2477 = vunpack.c.h.b16 %v492
    %v2478 = vunpack.c.l.b16 %v493
    %v2479 = vunpack.c.h.b16 %v493
    %v2480 = vunpack.c.l.b16 %v494
    %v2481 = vunpack.c.h.b16 %v494
    %v2482 = vunpack.c.l.b16 %v495
    %v2483 = vunpack.c.h.b16 %v495
    %v2484 = vunpack.c.l.b16 %v496
    %v2485 = vunpack.c.h.b16 %v496
    %v2486 = vunpack.c.l.b16 %v497
    %v2487 = vunpack.c.h.b16 %v497
    %v2488 = vunpack.c.l.b16 %v498
    %v2489 = vunpack.c.h.b16 %v498
    %v2490 = vunpack.c.l.b16 %v499
    %v2491 = vunpack.c.h.b16 %v499
    %v2492 = vunpack.c.l.b16 %v500
    %v2493 = vunpack.c.h.b16 %v500
    %v2494 = vunpack.c.l.b16 %v501
    %v2495 = vunpack.c.h.b16 %v501
    %v2496 = vunpack.c.l.b16 %v502
    %v2497 = vunpack.c.h.b16 %v502
    %v2498 = vunpack.c.l.b16 %v503
    %v2499 = vunpack.c.h.b16 %v503
    %v2500 = vunpack.c.l.b16 %v504
    %v2501 = vunpack.c.h.b16 %v504
    %v2502 = vunpack.c.l.b16 %v505
    %v2503 = vunpack.c.h.b16 %v505
    %v2504 = vunpack.c.l.b16 %v506
    %v2505 = vunpack.c.h.b16 %v506
    %v2506 = vunpack.c.l.b16 %v507
    %v2507 = vunpack.c.h.b16 %v507
    %v2508 = vunpack.c.l.b16 %v508
    %v2509 = vunpack.c.h.b16 %v508
    %v2510 = vunpack.c.l.b16 %v509
    %v2511 = vunpack.c.h.b16 %v509
    %v2512 = vunpack.c.l.b16 %v510
    %v2513 = vunpack.c.h.b16 %v510
    %v2514 = vunpack.c.l.b16 %v511
    %v2515 = vunpack.c.h.b16 %v511
    %v2516 = vunpack.c.l.b16 %v512
    %v2517 = vunpack.c.h.b16 %v512
    %v2518 = vunpack.c.l.b16 %v513
    %v2519 = vunpack.c.h.b16 %v513
    %v2520 = vunpack.c.l.b16 %v514
    %v2521 = vunpack.c.h.b16 %v514
    %v2522 = vunpack.c.l.b16 %v515
    %v2523 = vunpack.c.h.b16 %v515
    %v2524 = vunpack.c.l.b16 %v516
    %v2525 = vunpack.c.h.b16 %v516
    %v2526 = vunpack.c.l.b16 %v517
    %v2527 = vunpack.c.h.b16 %v517
    %v2528 = vunpack.c.l.b16 %v518
    %v2529 = vunpack.c.h.b16 %v518
    %v2530 = vunpack.c.l.b16 %v519
    %v2531 = vunpack.c.h.b16 %v519
    %v2532 = vunpack.c.l.b16 %v520
    %v2533 = vunpack.c.h.b16 %v520
    %v2534 = vunpack.c.l.b16 %v521
    %v2535 = vunpack.c.h.b16 %v521
    %v2536 = vunpack.c.l.b16 %v522
    %v2537 = vunpack.c.h.b16 %v522
    %v2538 = vunpack.c.l.b16 %v523
    %v2539 = vunpack.c.h.b16 %v523
    %v2540 = vunpack.c.l.b16 %v524
    %v2541 = vunpack.c.h.b16 %v524
    %v2542 = vunpack.c.l.b16 %v525
    %v2543 = vunpack.c.h.b16 %v525
    %v2544 = vunpack.c.l.b16 %v526
    %v2545 = vunpack.c.h.b16 %v526
    %v2546 = vunpack.c.l.b16 %v527
    %v2547 = vunpack.c.h.b16 %v527
    %v2548 = vunpack.c.l.b16 %v528
    %v2549 = vunpack.c.h.b16 %v528
    %v2550 = vunpack.c.l.b16 %v529
    %v2551 = vunpack.c.h.b16 %v529
    %v2552 = vunpack.c.l.b16 %v530
    %v2553 = vunpack.c.h.b16 %v530
    %v2554 = vunpack.c.l.b16 %v531
    %v2555 = vunpack.c.h.b16 %v531
    %v2556 = vunpack.c.l.b16 %v532
    %v2557 = vunpack.c.h.b16 %v532
    %v2558 = vunpack.c.l.b16 %v533
    %v2559 = vunpack.c.h.b16 %v533
    %v2560 = vunpack.c.l.b16 %v534
    %v2561 = vunpack.c.h.b16 %v534
    %v2562 = vunpack.c.l.b16 %v535
    %v2563 = vunpack.c.h.b16 %v535
    %v2564 = vunpack.c.l.b16 %v536
    %v2565 = vunpack.c.h.b16 %v536
    %v2566 = vunpack.c.l.b16 %v537
    %v2567 = vunpack.c.h.b16 %v537
    %v2568 = vunpack.c.l.b16 %v538
    %v2569 = vunpack.c.h.b16 %v538
    %v2570 = vunpack.c.l.b16 %v539
    %v2571 = vunpack.c.h.b16 %v539
    %v2572 = vunpack.c.l.b16 %v540
    %v2573 = vunpack.c.h.b16 %v540
    %v2574 = vunpack.c.l.b16 %v541
    %v2575 = vunpack.c.h.b16 %v541
    %v2576 = vunpack.c.l.b16 %v542
    %v2577 = vunpack.c.h.b16 %v542
    %v2578 = vunpack.c.l.b16 %v543
    %v2579 = vunpack.c.h.b16 %v543
    %v2580 = vunpack.c.l.b16 %v544
    %v2581 = vunpack.c.h.b16 %v544
    %v2582 = vunpack.c.l.b16 %v545
    %v2583 = vunpack.c.h.b16 %v545
    %v2584 = vunpack.c.l.b16 %v546
    %v2585 = vunpack.c.h.b16 %v546
    %v2586 = vunpack.c.l.b16 %v547
    %v2587 = vunpack.c.h.b16 %v547
    %v2588 = vunpack.c.l.b16 %v548
    %v2589 = vunpack.c.h.b16 %v548
    %v2590 = vunpack.c.l.b16 %v549
    %v2591 = vunpack.c.h.b16 %v549
    %v2592 = vunpack.c.l.b16 %v550
    %v2593 = vunpack.c.h.b16 %v550
    %v2594 = vunpack.c.l.b16 %v551
    %v2595 = vunpack.c.h.b16 %v551
    %v2596 = vunpack.c.l.b16 %v552
    %v2597 = vunpack.c.h.b16 %v552
    %v2598 = vunpack.c.l.b16 %v553
    %v2599 = vunpack.c.h.b16 %v553
    %v2600 = vunpack.c.l.b16 %v554
    %v2601 = vunpack.c.h.b16 %v554
    %v2602 = vunpack.c.l.b16 %v555
    %v2603 = vunpack.c.h.b16 %v555
    %v2604 = vunpack.c.l.b16 %v556
    %v2605 = vunpack.c.h.b16 %v556
    %v2606 = vunpack.c.l.b16 %v557
    %v2607 = vunpack.c.h.b16 %v557
    %v2608 = vunpack.c.l.b16 %v558
    %v2609 = vunpack.c.h.b16 %v558
    %v2610 = vunpack.c.l.b16 %v559
    %v2611 = vunpack.c.h.b16 %v559
    %v2612 = vunpack.c.l.b16 %v560
    %v2613 = vunpack.c.h.b16 %v560
    %v2614 = vunpack.c.l.b16 %v561
    %v2615 = vunpack.c.h.b16 %v561
    %v2616 = vunpack.c.l.b16 %v562
    %v2617 = vunpack.c.h.b16 %v562
    %v2618 = vunpack.c.l.b16 %v563
    %v2619 = vunpack.c.h.b16 %v563
    %v2620 = vunpack.c.l.b16 %v564
    %v2621 = vunpack.c.h.b16 %v564
    %v2622 = vunpack.c.l.b16 %v565
    %v2623 = vunpack.c.h.b16 %v565
    %v2624 = vunpack.c.l.b16 %v566
    %v2625 = vunpack.c.h.b16 %v566
    %v2626 = vunpack.c.l.b16 %v567
    %v2627 = vunpack.c.h.b16 %v567
    %v2628 = vunpack.c.l.b16 %v568
    %v2629 = vunpack.c.h.b16 %v568
    %v2630 = vunpack.c.l.b16 %v569
    %v2631 = vunpack.c.h.b16 %v569
    %v2632 = vunpack.c.l.b16 %v570
    %v2633 = vunpack.c.h.b16 %v570
    %v2634 = vunpack.c.l.b16 %v571
    %v2635 = vunpack.c.h.b16 %v571
    %v2636 = vunpack.c.l.b16 %v572
    %v2637 = vunpack.c.h.b16 %v572
    %v2638 = vunpack.c.l.b16 %v573
    %v2639 = vunpack.c.h.b16 %v573
    %v2640 = vunpack.c.l.b16 %v574
    %v2641 = vunpack.c.h.b16 %v574
    %v2642 = vunpack.c.l.b16 %v575
    %v2643 = vunpack.c.h.b16 %v575
    %v2644 = vunpack.c.l.b16 %v576
    %v2645 = vunpack.c.h.b16 %v576
    %v2646 = vunpack.c.l.b16 %v577
    %v2647 = vunpack.c.h.b16 %v577
    %v2648 = vunpack.c.l.b16 %v578
    %v2649 = vunpack.c.h.b16 %v578
    %v2650 = vunpack.c.l.b16 %v579
    %v2651 = vunpack.c.h.b16 %v579
    %v2652 = vunpack.c.l.b16 %v580
    %v2653 = vunpack.c.h.b16 %v580
    %v2654 = vunpack.c.l.b16 %v581
    %v2655 = vunpack.c.h.b16 %v581
    %v2656 = vunpack.c.l.b16 %v582
    %v2657 = vunpack.c.h.b16 %v582
    %v2658 = vunpack.c.l.b16 %v583
    %v2659 = vunpack.c.h.b16 %v583
    %v2660 = vunpack.c.l.b16 %v584
    %v2661 = vunpack.c.h.b16 %v584
    %v2662 = vunpack.c.l.b16 %v585
    %v2663 = vunpack.c.h.b16 %v585
    %v2664 = vunpack.c.l.b16 %v586
    %v2665 = vunpack.c.h.b16 %v586
    %v2666 = vunpack.c.l.b16 %v587
    %v2667 = vunpack.c.h.b16 %v587
    %v2668 = vunpack.c.l.b16 %v588
    %v2669 = vunpack.c.h.b16 %v588
    %v2670 = vunpack.c.l.b16 %v589
    %v2671 = vunpack.c.h.b16 %v589
    %v2672 = vunpack.c.l.b16 %v590
    %v2673 = vunpack.c.h.b16 %v590
    %v2674 = vunpack.c.l.b16 %v591
    %v2675 = vunpack.c.h.b16 %v591
    %v2676 = vunpack.c.l.b16 %v592
    %v2677 = vunpack.c.h.b16 %v592
    %v2678 = vunpack.c.l.b16 %v593
    %v2679 = vunpack.c.h.b16 %v593
    %v2680 = vunpack.c.l.b16 %v594
    %v2681 = vunpack.c.h.b16 %v594
    %v2682 = vunpack.c.l.b16 %v595
    %v2683 = vunpack.c.h.b16 %v595
    %v2684 = vunpack.c.l.b16 %v596
    %v2685 = vunpack.c.h.b16 %v596
    %v2686 = vunpack.c.l.b16 %v597
    %v2687 = vunpack.c.h.b16 %v597
    %v2688 = vunpack.c.l.b16 %v598
    %v2689 = vunpack.c.h.b16 %v598
    %v2690 = vunpack.c.l.b16 %v599
    %v2691 = vunpack.c.h.b16 %v599
    %v2692 = vunpack.c.l.b16 %v600
    %v2693 = vunpack.c.h.b16 %v600
    %v2694 = vunpack.c.l.b16 %v601
    %v2695 = vunpack.c.h.b16 %v601
    %v2696 = vunpack.c.l.b16 %v602
    %v2697 = vunpack.c.h.b16 %v602
    %v2698 = vunpack.c.l.b16 %v603
    %v2699 = vunpack.c.h.b16 %v603
    %v2700 = vunpack.c.l.b16 %v604
    %v2701 = vunpack.c.h.b16 %v604
    %v2702 = vunpack.c.l.b16 %v605
    %v2703 = vunpack.c.h.b16 %v605
    %v2704 = vunpack.c.l.b16 %v606
    %v2705 = vunpack.c.h.b16 %v606
    %v2706 = vunpack.c.l.b16 %v607
    %v2707 = vunpack.c.h.b16 %v607
    %v2708 = vunpack.c.l.b16 %v608
    %v2709 = vunpack.c.h.b16 %v608
    %v2710 = vunpack.c.l.b16 %v609
    %v2711 = vunpack.c.h.b16 %v609
    %v2712 = vunpack.c.l.b16 %v610
    %v2713 = vunpack.c.h.b16 %v610
    %v2714 = vunpack.c.l.b16 %v611
    %v2715 = vunpack.c.h.b16 %v611
    %v2716 = vunpack.c.l.b16 %v612
    %v2717 = vunpack.c.h.b16 %v612
    %v2718 = vunpack.c.l.b16 %v613
    %v2719 = vunpack.c.h.b16 %v613
    %v2720 = vunpack.c.l.b16 %v614
    %v2721 = vunpack.c.h.b16 %v614
    %v2722 = vunpack.c.l.b16 %v615
    %v2723 = vunpack.c.h.b16 %v615
    %v2724 = vunpack.c.l.b16 %v616
    %v2725 = vunpack.c.h.b16 %v616
    %v2726 = vunpack.c.l.b16 %v617
    %v2727 = vunpack.c.h.b16 %v617
    %v2728 = vunpack.c.l.b16 %v618
    %v2729 = vunpack.c.h.b16 %v618
    %v2730 = vunpack.c.l.b16 %v619
    %v2731 = vunpack.c.h.b16 %v619
    %v2732 = vunpack.c.l.b16 %v620
    %v2733 = vunpack.c.h.b16 %v620
    %v2734 = vunpack.c.l.b16 %v621
    %v2735 = vunpack.c.h.b16 %v621
    %v2736 = vunpack.c.l.b16 %v622
    %v2737 = vunpack.c.h.b16 %v622
    %v2738 = vunpack.c.l.b16 %v623
    %v2739 = vunpack.c.h.b16 %v623
    %v2740 = vunpack.c.l.b16 %v624
    %v2741 = vunpack.c.h.b16 %v624
    %v2742 = vunpack.c.l.b16 %v625
    %v2743 = vunpack.c.h.b16 %v625
    %v2744 = vunpack.c.l.b16 %v626
    %v2745 = vunpack.c.h.b16 %v626
    %v2746 = vunpack.c.l.b16 %v627
    %v2747 = vunpack.c.h.b16 %v627
    %v2748 = vunpack.c.l.b16 %v628
    %v2749 = vunpack.c.h.b16 %v628
    %v2750 = vunpack.c.l.b16 %v629
    %v2751 = vunpack.c.h.b16 %v629
    %v2752 = vunpack.c.l.b16 %v630
    %v2753 = vunpack.c.h.b16 %v630
    %v2754 = vunpack.c.l.b16 %v631
    %v2755 = vunpack.c.h.b16 %v631
    %v2756 = vunpack.c.l.b16 %v632
    %v2757 = vunpack.c.h.b16 %v632
    %v2758 = vunpack.c.l.b16 %v633
    %v2759 = vunpack.c.h.b16 %v633
    %v2760 = vunpack.c.l.b16 %v634
    %v2761 = vunpack.c.h.b16 %v634
    %v2762 = vunpack.c.l.b16 %v635
    %v2763 = vunpack.c.h.b16 %v635
    %v2764 = vunpack.c.l.b16 %v636
    %v2765 = vunpack.c.h.b16 %v636
    %v2766 = vunpack.c.l.b16 %v637
    %v2767 = vunpack.c.h.b16 %v637
    %v2768 = vunpack.c.l.b16 %v638
    %v2769 = vunpack.c.h.b16 %v638
    %v2770 = vunpack.c.l.b16 %v639
    %v2771 = vunpack.c.h.b16 %v639
    %v2772 = vunpack.c.l.b16 %v640
    %v2773 = vunpack.c.h.b16 %v640
    %v2774 = vunpack.c.l.b16 %v641
    %v2775 = vunpack.c.h.b16 %v641
    %v2776 = vunpack.c.l.b16 %v642
    %v2777 = vunpack.c.h.b16 %v642
    %v2778 = vunpack.c.l.b16 %v643
    %v2779 = vunpack.c.h.b16 %v643
    %v2780 = vunpack.c.l.b16 %v644
    %v2781 = vunpack.c.h.b16 %v644
    %v2782 = vunpack.c.l.b16 %v645
    %v2783 = vunpack.c.h.b16 %v645
    %v2784 = vunpack.c.l.b16 %v646
    %v2785 = vunpack.c.h.b16 %v646
    %v2786 = vunpack.c.l.b16 %v647
    %v2787 = vunpack.c.h.b16 %v647
    %v2788 = vunpack.c.l.b16 %v648
    %v2789 = vunpack.c.h.b16 %v648
    %v2790 = vunpack.c.l.b16 %v649
    %v2791 = vunpack.c.h.b16 %v649
    %v2792 = vunpack.c.l.b16 %v650
    %v2793 = vunpack.c.h.b16 %v650
    %v2794 = vunpack.c.l.b16 %v651
    %v2795 = vunpack.c.h.b16 %v651
    %v2796 = vunpack.c.l.b16 %v652
    %v2797 = vunpack.c.h.b16 %v652
    %v2798 = vunpack.c.l.b16 %v653
    %v2799 = vunpack.c.h.b16 %v653
    %v2800 = vunpack.c.l.b16 %v654
    %v2801 = vunpack.c.h.b16 %v654
    %v2802 = vunpack.c.l.b16 %v655
    %v2803 = vunpack.c.h.b16 %v655
    %v2804 = vunpack.c.l.b16 %v656
    %v2805 = vunpack.c.h.b16 %v656
    %v2806 = vunpack.c.l.b16 %v657
    %v2807 = vunpack.c.h.b16 %v657
    %v2808 = vunpack.c.l.b16 %v658
    %v2809 = vunpack.c.h.b16 %v658
    %v2810 = vunpack.c.l.b16 %v659
    %v2811 = vunpack.c.h.b16 %v659
    %v2812 = vunpack.c.l.b16 %v660
    %v2813 = vunpack.c.h.b16 %v660
    %v2814 = vunpack.c.l.b16 %v661
    %v2815 = vunpack.c.h.b16 %v661
    %v2816 = vunpack.c.l.b16 %v662
    %v2817 = vunpack.c.h.b16 %v662
    %v2818 = vunpack.c.l.b16 %v663
    %v2819 = vunpack.c.h.b16 %v663
    %v2820 = vunpack.c.l.b16 %v664
    %v2821 = vunpack.c.h.b16 %v664
    %v2822 = vunpack.c.l.b16 %v665
    %v2823 = vunpack.c.h.b16 %v665
    %v2824 = vunpack.c.l.b16 %v666
    %v2825 = vunpack.c.h.b16 %v666
    %v2826 = vunpack.c.l.b16 %v667
    %v2827 = vunpack.c.h.b16 %v667
    %v2828 = vunpack.c.l.b16 %v668
    %v2829 = vunpack.c.h.b16 %v668
    %v2830 = vunpack.c.l.b16 %v669
    %v2831 = vunpack.c.h.b16 %v669
    %v2832 = vunpack.c.l.b16 %v670
    %v2833 = vunpack.c.h.b16 %v670
    %v2834 = vunpack.c.l.b16 %v671
    %v2835 = vunpack.c.h.b16 %v671
    %v2836 = vunpack.c.l.b16 %v672
    %v2837 = vunpack.c.h.b16 %v672
    %v2838 = vunpack.c.l.b16 %v673
    %v2839 = vunpack.c.h.b16 %v673
    %v2840 = vunpack.c.l.b16 %v674
    %v2841 = vunpack.c.h.b16 %v674
    %v2842 = vunpack.c.l.b16 %v675
    %v2843 = vunpack.c.h.b16 %v675
    %v2844 = vunpack.c.l.b16 %v676
    %v2845 = vunpack.c.h.b16 %v676
    %v2846 = vunpack.c.l.b16 %v677
    %v2847 = vunpack.c.h.b16 %v677
    %v2848 = vunpack.c.l.b16 %v678
    %v2849 = vunpack.c.h.b16 %v678
    %v2850 = vunpack.c.l.b16 %v679
    %v2851 = vunpack.c.h.b16 %v679
    %v2852 = vunpack.c.l.b16 %v680
    %v2853 = vunpack.c.h.b16 %v680
    %v2854 = vunpack.c.l.b16 %v681
    %v2855 = vunpack.c.h.b16 %v681
    %v2856 = vunpack.c.l.b16 %v682
    %v2857 = vunpack.c.h.b16 %v682
    %v2858 = vunpack.c.l.b16 %v683
    %v2859 = vunpack.c.h.b16 %v683
    %v2860 = vunpack.c.l.b16 %v684
    %v2861 = vunpack.c.h.b16 %v684
    %v2862 = vunpack.c.l.b16 %v685
    %v2863 = vunpack.c.h.b16 %v685
    %v2864 = vunpack.c.l.b16 %v686
    %v2865 = vunpack.c.h.b16 %v686
    %v2866 = vunpack.c.l.b16 %v687
    %v2867 = vunpack.c.h.b16 %v687
    %v2868 = vunpack.c.l.b16 %v688
    %v2869 = vunpack.c.h.b16 %v688
    %v2870 = vunpack.c.l.b16 %v689
    %v2871 = vunpack.c.h.b16 %v689
    %v2872 = vunpack.c.l.b16 %v690
    %v2873 = vunpack.c.h.b16 %v690
    %v2874 = vunpack.c.l.b16 %v691
    %v2875 = vunpack.c.h.b16 %v691
    %v2876 = vunpack.c.l.b16 %v692
    %v2877 = vunpack.c.h.b16 %v692
    %v2878 = vunpack.c.l.b16 %v693
    %v2879 = vunpack.c.h.b16 %v693
    %v2880 = vunpack.c.l.b16 %v694
    %v2881 = vunpack.c.h.b16 %v694
    %v2882 = vunpack.c.l.b16 %v695
    %v2883 = vunpack.c.h.b16 %v695
    %v2884 = vunpack.c.l.b16 %v696
    %v2885 = vunpack.c.h.b16 %v696
    %v2886 = vunpack.c.l.b16 %v697
    %v2887 = vunpack.c.h.b16 %v697
    %v2888 = vunpack.c.l.b16 %v698
    %v2889 = vunpack.c.h.b16 %v698
    %v2890 = vunpack.c.l.b16 %v699
    %v2891 = vunpack.c.h.b16 %v699
    %v2892 = vunpack.c.l.b16 %v700
    %v2893 = vunpack.c.h.b16 %v700
    %v2894 = vunpack.c.l.b16 %v701
    %v2895 = vunpack.c.h.b16 %v701
    %v2896 = vunpack.c.l.b16 %v702
    %v2897 = vunpack.c.h.b16 %v702
    %v2898 = vunpack.c.l.b16 %v703
    %v2899 = vunpack.c.h.b16 %v703
    %v2900 = vunpack.c.l.b16 %v704
    %v2901 = vunpack.c.h.b16 %v704
    %v2902 = vunpack.c.l.b16 %v705
    %v2903 = vunpack.c.h.b16 %v705
    %v2904 = vunpack.c.l.b16 %v706
    %v2905 = vunpack.c.h.b16 %v706
    %v2906 = vunpack.c.l.b16 %v707
    %v2907 = vunpack.c.h.b16 %v707
    %v2908 = vunpack.c.l.b16 %v708
    %v2909 = vunpack.c.h.b16 %v708
    %v2910 = vunpack.c.l.b16 %v709
    %v2911 = vunpack.c.h.b16 %v709
    %v2912 = vunpack.c.l.b16 %v710
    %v2913 = vunpack.c.h.b16 %v710
    %v2914 = vunpack.c.l.b16 %v711
    %v2915 = vunpack.c.h.b16 %v711
    %v2916 = vunpack.c.l.b16 %v712
    %v2917 = vunpack.c.h.b16 %v712
    %v2918 = vunpack.c.l.b16 %v713
    %v2919 = vunpack.c.h.b16 %v713
    %v2920 = vunpack.c.l.b16 %v714
    %v2921 = vunpack.c.h.b16 %v714
    %v2922 = vunpack.c.l.b16 %v715
    %v2923 = vunpack.c.h.b16 %v715
    %v2924 = vunpack.c.l.b16 %v716
    %v2925 = vunpack.c.h.b16 %v716
    %v2926 = vunpack.c.l.b16 %v717
    %v2927 = vunpack.c.h.b16 %v717
    %v2928 = vunpack.c.l.b16 %v718
    %v2929 = vunpack.c.h.b16 %v718
    %v2930 = vunpack.c.l.b16 %v719
    %v2931 = vunpack.c.h.b16 %v719
    %v2932 = vunpack.c.l.b16 %v720
    %v2933 = vunpack.c.h.b16 %v720
    %v2934 = vunpack.c.l.b16 %v721
    %v2935 = vunpack.c.h.b16 %v721
    %v2936 = vunpack.c.l.b16 %v722
    %v2937 = vunpack.c.h.b16 %v722
    %v2938 = vunpack.c.l.b16 %v723
    %v2939 = vunpack.c.h.b16 %v723
    %v2940 = vunpack.c.l.b16 %v724
    %v2941 = vunpack.c.h.b16 %v724
    %v2942 = vunpack.c.l.b16 %v725
    %v2943 = vunpack.c.h.b16 %v725
    %v2944 = vunpack.c.l.b16 %v726
    %v2945 = vunpack.c.h.b16 %v726
    %v2946 = vunpack.c.l.b16 %v727
    %v2947 = vunpack.c.h.b16 %v727
    %v2948 = vunpack.c.l.b16 %v728
    %v2949 = vunpack.c.h.b16 %v728
    %v2950 = vunpack.c.l.b16 %v729
    %v2951 = vunpack.c.h.b16 %v729
    %v2952 = vunpack.c.l.b16 %v730
    %v2953 = vunpack.c.h.b16 %v730
    %v2954 = vunpack.c.l.b16 %v731
    %v2955 = vunpack.c.h.b16 %v731
    %v2956 = vunpack.c.l.b16 %v732
    %v2957 = vunpack.c.h.b16 %v732
    %v2958 = vunpack.c.l.b16 %v733
    %v2959 = vunpack.c.h.b16 %v733
    %v2960 = vunpack.c.l.b16 %v734
    %v2961 = vunpack.c.h.b16 %v734
    %v2962 = vunpack.c.l.b16 %v735
    %v2963 = vunpack.c.h.b16 %v735
    %v2964 = vunpack.c.l.b16 %v736
    %v2965 = vunpack.c.h.b16 %v736
    %v2966 = vunpack.c.l.b16 %v737
    %v2967 = vunpack.c.h.b16 %v737
    %v2968 = vunpack.c.l.b16 %v738
    %v2969 = vunpack.c.h.b16 %v738
    %v2970 = vunpack.c.l.b16 %v739
    %v2971 = vunpack.c.h.b16 %v739
    %v2972 = vunpack.c.l.b16 %v740
    %v2973 = vunpack.c.h.b16 %v740
    %v2974 = vunpack.c.l.b16 %v741
    %v2975 = vunpack.c.h.b16 %v741
    %v2976 = vunpack.c.l.b16 %v742
    %v2977 = vunpack.c.h.b16 %v742
    %v2978 = vunpack.c.l.b16 %v743
    %v2979 = vunpack.c.h.b16 %v743
    %v2980 = vunpack.c.l.b16 %v744
    %v2981 = vunpack.c.h.b16 %v744
    %v2982 = vunpack.c.l.b16 %v745
    %v2983 = vunpack.c.h.b16 %v745
    %v2984 = vunpack.c.l.b16 %v746
    %v2985 = vunpack.c.h.b16 %v746
    %v2986 = vunpack.c.l.b16 %v747
    %v2987 = vunpack.c.h.b16 %v747
    %v2988 = vunpack.c.l.b16 %v748
    %v2989 = vunpack.c.h.b16 %v748
    %v2990 = vunpack.c.l.b16 %v749
    %v2991 = vunpack.c.h.b16 %v749
    %v2992 = vunpack.c.l.b16 %v750
    %v2993 = vunpack.c.h.b16 %v750
    %v2994 = vunpack.c.l.b16 %v751
    %v2995 = vunpack.c.h.b16 %v751
    %v2996 = vunpack.c.l.b16 %v752
    %v2997 = vunpack.c.h.b16 %v752
    %v2998 = vunpack.c.l.b16 %v753
    %v2999 = vunpack.c.h.b16 %v753
    %v3000 = vunpack.c.l.b16 %v754
    %v3001 = vunpack.c.h.b16 %v754
    %v3002 = vunpack.c.l.b16 %v755
    %v3003 = vunpack.c.h.b16 %v755
    %v3004 = vunpack.c.l.b16 %v756
    %v3005 = vunpack.c.h.b16 %v756
    %v3006 = vunpack.c.l.b16 %v757
    %v3007 = vunpack.c.h.b16 %v757
    %v3008 = vunpack.c.l.b16 %v758
    %v3009 = vunpack.c.h.b16 %v758
    %v3010 = vunpack.c.l.b16 %v759
    %v3011 = vunpack.c.h.b16 %v759
    %v3012 = vunpack.c.l.b16 %v760
    %v3013 = vunpack.c.h.b16 %v760
    %v3014 = vunpack.c.l.b16 %v761
    %v3015 = vunpack.c.h.b16 %v761
    %v3016 = vunpack.c.l.b16 %v762
    %v3017 = vunpack.c.h.b16 %v762
    %v3018 = vunpack.c.l.b16 %v763
    %v3019 = vunpack.c.h.b16 %v763
    %v3020 = vunpack.c.l.b16 %v764
    %v3021 = vunpack.c.h.b16 %v764
    %v3022 = vunpack.c.l.b16 %v765
    %v3023 = vunpack.c.h.b16 %v765
    %v3024 = vunpack.c.l.b16 %v766
    %v3025 = vunpack.c.h.b16 %v766
    %v3026 = vunpack.c.l.b16 %v767
    %v3027 = vunpack.c.h.b16 %v767
    %v3028 = vunpack.c.l.b16 %v768
    %v3029 = vunpack.c.h.b16 %v768
    %v3030 = vunpack.c.l.b16 %v769
    %v3031 = vunpack.c.h.b16 %v769
    %v3032 = vunpack.c.l.b16 %v770
    %v3033 = vunpack.c.h.b16 %v770
    %v3034 = vunpack.c.l.b16 %v771
    %v3035 = vunpack.c.h.b16 %v771
    %v3036 = vunpack.c.l.b16 %v772
    %v3037 = vunpack.c.h.b16 %v772
    %v3038 = vunpack.c.l.b16 %v773
    %v3039 = vunpack.c.h.b16 %v773
    %v3040 = vunpack.c.l.b16 %v774
    %v3041 = vunpack.c.h.b16 %v774
    %v3042 = vunpack.c.l.b16 %v775
    %v3043 = vunpack.c.h.b16 %v775
    %v3044 = vunpack.c.l.b16 %v776
    %v3045 = vunpack.c.h.b16 %v776
    %v3046 = vunpack.c.l.b16 %v777
    %v3047 = vunpack.c.h.b16 %v777
    %v3048 = vunpack.c.l.b16 %v778
    %v3049 = vunpack.c.h.b16 %v778
    %v3050 = vunpack.c.l.b16 %v779
    %v3051 = vunpack.c.h.b16 %v779
    %v3052 = vunpack.c.l.b16 %v780
    %v3053 = vunpack.c.h.b16 %v780
    %v3054 = vunpack.c.l.b16 %v781
    %v3055 = vunpack.c.h.b16 %v781
    %v3056 = vunpack.c.l.b16 %v782
    %v3057 = vunpack.c.h.b16 %v782
    %v3058 = vunpack.c.l.b16 %v783
    %v3059 = vunpack.c.h.b16 %v783
    %v3060 = vunpack.c.l.b16 %v784
    %v3061 = vunpack.c.h.b16 %v784
    %v3062 = vunpack.c.l.b16 %v785
    %v3063 = vunpack.c.h.b16 %v785
    %v3064 = vunpack.c.l.b16 %v786
    %v3065 = vunpack.c.h.b16 %v786
    %v3066 = vunpack.c.l.b16 %v787
    %v3067 = vunpack.c.h.b16 %v787
    %v3068 = vunpack.c.l.b16 %v788
    %v3069 = vunpack.c.h.b16 %v788
    %v3070 = vunpack.c.l.b16 %v789
    %v3071 = vunpack.c.h.b16 %v789
    %v3072 = vunpack.c.l.b16 %v790
    %v3073 = vunpack.c.h.b16 %v790
    %v3074 = vunpack.c.l.b16 %v791
    %v3075 = vunpack.c.h.b16 %v791
    %v3076 = vunpack.c.l.b16 %v792
    %v3077 = vunpack.c.h.b16 %v792
    %v3078 = vunpack.c.l.b16 %v793
    %v3079 = vunpack.c.h.b16 %v793
    %v3080 = vunpack.c.l.b16 %v794
    %v3081 = vunpack.c.h.b16 %v794
    %v3082 = vunpack.c.l.b16 %v795
    %v3083 = vunpack.c.h.b16 %v795
    %v3084 = vunpack.c.l.b16 %v796
    %v3085 = vunpack.c.h.b16 %v796
    %v3086 = vunpack.c.l.b16 %v797
    %v3087 = vunpack.c.h.b16 %v797
    %v3088 = vunpack.c.l.b16 %v798
    %v3089 = vunpack.c.h.b16 %v798
    %v3090 = vunpack.c.l.b16 %v799
    %v3091 = vunpack.c.h.b16 %v799
    %v3092 = vunpack.c.l.b16 %v800
    %v3093 = vunpack.c.h.b16 %v800
    %v3094 = vunpack.c.l.b16 %v801
    %v3095 = vunpack.c.h.b16 %v801
    %v3096 = vunpack.c.l.b16 %v802
    %v3097 = vunpack.c.h.b16 %v802
    %v3098 = vunpack.c.l.b16 %v803
    %v3099 = vunpack.c.h.b16 %v803
    %v3100 = vunpack.c.l.b16 %v804
    %v3101 = vunpack.c.h.b16 %v804
    %v3102 = vunpack.c.l.b16 %v805
    %v3103 = vunpack.c.h.b16 %v805
    %v3104 = vunpack.c.l.b16 %v806
    %v3105 = vunpack.c.h.b16 %v806
    %v3106 = vunpack.c.l.b16 %v807
    %v3107 = vunpack.c.h.b16 %v807
    %v3108 = vunpack.c.l.b16 %v808
    %v3109 = vunpack.c.h.b16 %v808
    %v3110 = vunpack.c.l.b16 %v809
    %v3111 = vunpack.c.h.b16 %v809
    %v3112 = vunpack.c.l.b16 %v810
    %v3113 = vunpack.c.h.b16 %v810
    %v3114 = vunpack.c.l.b16 %v811
    %v3115 = vunpack.c.h.b16 %v811
    %v3116 = vpack.c.b16 %v1676, %v1580
    %v3117 = vpack.c.b16 %v1677, %v1581
    %v3118 = vpack.c.b16 %v1678, %v1582
    %v3119 = vpack.c.b16 %v1679, %v1583
    %v3120 = vpack.c.b16 %v1680, %v1584
    %v3121 = vpack.c.b16 %v1681, %v1585
    %v3122 = vpack.c.b16 %v1682, %v1586
    %v3123 = vpack.c.b16 %v1683, %v1587
    %v3124 = vpack.c.b16 %v1684, %v1588
    %v3125 = vpack.c.b16 %v1685, %v1589
    %v3126 = vpack.c.b16 %v1686, %v1590
    %v3127 = vpack.c.b16 %v1687, %v1591
    %v3128 = vpack.c.b16 %v1688, %v1592
    %v3129 = vpack.c.b16 %v1689, %v1593
    %v3130 = vpack.c.b16 %v1690, %v1594
    %v3131 = vpack.c.b16 %v1691, %v1595
    %v3132 = vpack.c.b16 %v1692, %v1596
    %v3133 = vpack.c.b16 %v1693, %v1597
    %v3134 = vpack.c.b16 %v1694, %v1598
    %v3135 = vpack.c.b16 %v1695, %v1599
    %v3136 = vpack.c.b16 %v1696, %v1600
    %v3137 = vpack.c.b16 %v1697, %v1601
    %v3138 = vpack.c.b16 %v1698, %v1602
    %v3139 = vpack.c.b16 %v1699, %v1603
    %v3140 = vpack.c.b16 %v1700, %v1604
    %v3141 = vpack.c.b16 %v1701, %v1605
    %v3142 = vpack.c.b16 %v1702, %v1606
    %v3143 = vpack.c.b16 %v1703, %v1607
    %v3144 = vpack.c.b16 %v1704, %v1608
    %v3145 = vpack.c.b16 %v1705, %v1609
    %v3146 = vpack.c.b16 %v1706, %v1610
    %v3147 = vpack.c.b16 %v1707, %v1611
    %v3148 = vpack.c.b16 %v1708, %v1612
    %v3149 = vpack.c.b16 %v1709, %v1613
    %v3150 = vpack.c.b16 %v1710, %v1614
    %v3151 = vpack.c.b16 %v1711, %v1615
    %v3152 = vpack.c.b16 %v1712, %v1616
    %v3153 = vpack.c.b16 %v1713, %v1617
    %v3154 = vpack.c.b16 %v1714, %v1618
    %v3155 = vpack.c.b16 %v1715, %v1619
    %v3156 = vpack.c.b16 %v1716, %v1620
    %v3157 = vpack.c.b16 %v1717, %v1621
    %v3158 = vpack.c.b16 %v1718, %v1622
    %v3159 = vpack.c.b16 %v1719, %v1623
    %v3160 = vpack.c.b16 %v1720, %v1624
    %v3161 = vpack.c.b16 %v1721, %v1625
    %v3162 = vpack.c.b16 %v1722, %v1626
    %v3163 = vpack.c.b16 %v1723, %v1627
    %v3164 = vpack.c.b16 %v1724, %v1628
    %v3165 = vpack.c.b16 %v1725, %v1629
    %v3166 = vpack.c.b16 %v1726, %v1630
    %v3167 = vpack.c.b16 %v1727, %v1631
    %v3168 = vpack.c.b16 %v1728, %v1632
    %v3169 = vpack.c.b16 %v1729, %v1633
    %v3170 = vpack.c.b16 %v1730, %v1634
    %v3171 = vpack.c.b16 %v1731, %v1635
    %v3172 = vpack.c.b16 %v1732, %v1636
    %v3173 = vpack.c.b16 %v1733, %v1637
    %v3174 = vpack.c.b16 %v1734, %v1638
    %v3175 = vpack.c.b16 %v1735, %v1639
    %v3176 = vpack.c.b16 %v1736, %v1640
    %v3177 = vpack.c.b16 %v1737, %v1641
    %v3178 = vpack.c.b16 %v1738, %v1642
    %v3179 = vpack.c.b16 %v1739, %v1643
    %v3180 = vpack.c.b16 %v1740, %v1644
    %v3181 = vpack.c.b16 %v1741, %v1645
    %v3182 = vpack.c.b16 %v1742, %v1646
    %v3183 = vpack.c.b16 %v1743, %v1647
    %v3184 = vpack.c.b16 %v1744, %v1648
    %v3185 = vpack.c.b16 %v1745, %v1649
    %v3186 = vpack.c.b16 %v1746, %v1650
    %v3187 = vpack.c.b16 %v1747, %v1651
    %v3188 = vpack.c.b16 %v1748, %v1652
    %v3189 = vpack.c.b16 %v1749, %v1653
    %v3190 = vpack.c.b16 %v1750, %v1654
    %v3191 = vpack.c.b16 %v1751, %v1655
    %v3192 = vpack.c.b16 %v1752, %v1656
    %v3193 = vpack.c.b16 %v1753, %v1657
    %v3194 = vpack.c.b16 %v1754, %v1658
    %v3195 = vpack.c.b16 %v1755, %v1659
    %v3196 = vpack.c.b16 %v1756, %v1660
    %v3197 = vpack.c.b16 %v1757, %v1661
    %v3198 = vpack.c.b16 %v1758, %v1662
    %v3199 = vpack.c.b16 %v1759, %v1663
    %v3200 = vpack.c.b16 %v1760, %v1664
    %v3201 = vpack.c.b16 %v1761, %v1665
    %v3202 = vpack.c.b16 %v1762, %v1666
    %v3203 = vpack.c.b16 %v1763, %v1667
    %v3204 = vpack.c.b16 %v1764, %v1668
    %v3205 = vpack.c.b16 %v1765, %v1669
    %v3206 = vpack.c.b16 %v1766, %v1670
    %v3207 = vpack.c.b16 %v1767, %v1671
    %v3208 = vpack.c.b16 %v1768, %v1672
    %v3209 = vpack.c.b16 %v1769, %v1673
    %v3210 = vpack.c.b16 %v1770, %v1674
    %v3211 = vpack.c.b16 %v1771, %v1675
    %v3212 = vpack.c.b16 %v1868, %v1772
    %v3213 = vpack.c.b16 %v1869, %v1773
    %v3214 = vpack.c.b16 %v1870, %v1774
    %v3215 = vpack.c.b16 %v1871, %v1775
    %v3216 = vpack.c.b16 %v1872, %v1776
    %v3217 = vpack.c.b16 %v1873, %v1777
    %v3218 = vpack.c.b16 %v1874, %v1778
    %v3219 = vpack.c.b16 %v1875, %v1779
    %v3220 = vpack.c.b16 %v1876, %v1780
    %v3221 = vpack.c.b16 %v1877, %v1781
    %v3222 = vpack.c.b16 %v1878, %v1782
    %v3223 = vpack.c.b16 %v1879, %v1783
    %v3224 = vpack.c.b16 %v1880, %v1784
    %v3225 = vpack.c.b16 %v1881, %v1785
    %v3226 = vpack.c.b16 %v1882, %v1786
    %v3227 = vpack.c.b16 %v1883, %v1787
    %v3228 = vpack.c.b16 %v1884, %v1788
    %v3229 = vpack.c.b16 %v1885, %v1789
    %v3230 = vpack.c.b16 %v1886, %v1790
    %v3231 = vpack.c.b16 %v1887, %v1791
    %v3232 = vpack.c.b16 %v1888, %v1792
    %v3233 = vpack.c.b16 %v1889, %v1793
    %v3234 = vpack.c.b16 %v1890, %v1794
    %v3235 = vpack.c.b16 %v1891, %v1795
    %v3236 = vpack.c.b16 %v1892, %v1796
    %v3237 = vpack.c.b16 %v1893, %v1797
    %v3238 = vpack.c.b16 %v1894, %v1798
    %v3239 = vpack.c.b16 %v1895, %v1799
    %v3240 = vpack.c.b16 %v1896, %v1800
    %v3241 = vpack.c.b16 %v1897, %v1801
    %v3242 = vpack.c.b16 %v1898, %v1802
    %v3243 = vpack.c.b16 %v1899, %v1803
    %v3244 = vpack.c.b16 %v1900, %v1804
    %v3245 = vpack.c.b16 %v1901, %v1805
    %v3246 = vpack.c.b16 %v1902, %v1806
    %v3247 = vpack.c.b16 %v1903, %v1807
    %v3248 = vpack.c.b16 %v1904, %v1808
    %v3249 = vpack.c.b16 %v1905, %v1809
    %v3250 = vpack.c.b16 %v1906, %v1810
    %v3251 = vpack.c.b16 %v1907, %v1811
    %v3252 = vpack.c.b16 %v1908, %v1812
    %v3253 = vpack.c.b16 %v1909, %v1813
    %v3254 = vpack.c.b16 %v1910, %v1814
    %v3255 = vpack.c.b16 %v1911, %v1815
    %v3256 = vpack.c.b16 %v1912, %v1816
    %v3257 = vpack.c.b16 %v1913, %v1817
    %v3258 = vpack.c.b16 %v1914, %v1818
    %v3259 = vpack.c.b16 %v1915, %v1819
    %v3260 = vpack.c.b16 %v1916, %v1820
    %v3261 = vpack.c.b16 %v1917, %v1821
    %v3262 = vpack.c.b16 %v1918, %v1822
    %v3263 = vpack.c.b16 %v1919, %v1823
    %v3264 = vpack.c.b16 %v1920, %v1824
    %v3265 = vpack.c.b16 %v1921, %v1825
    %v3266 = vpack.c.b16 %v1922, %v1826
    %v3267 = vpack.c.b16 %v1923, %v1827
    %v3268 = vpack.c.b16 %v1924, %v1828
    %v3269 = vpack.c.b16 %v1925, %v1829
    %v3270 = vpack.c.b16 %v1926, %v1830
    %v3271 = vpack.c.b16 %v1927, %v1831
    %v3272 = vpack.c.b16 %v1928, %v1832
    %v3273 = vpack.c.b16 %v1929, %v1833
    %v3274 = vpack.c.b16 %v1930, %v1834
    %v3275 = vpack.c.b16 %v1931, %v1835
    %v3276 = vpack.c.b16 %v1932, %v1836
    %v3277 = vpack.c.b16 %v1933, %v1837
    %v3278 = vpack.c.b16 %v1934, %v1838
    %v3279 = vpack.c.b16 %v1935, %v1839
    %v3280 = vpack.c.b16 %v1936, %v1840
    %v3281 = vpack.c.b16 %v1937, %v1841
    %v3282 = vpack.c.b16 %v1938, %v1842
    %v3283 = vpack.c.b16 %v1939, %v1843
    %v3284 = vpack.c.b16 %v1940, %v1844
    %v3285 = vpack.c.b16 %v1941, %v1845
    %v3286 = vpack.c.b16 %v1942, %v1846
    %v3287 = vpack.c.b16 %v1943, %v1847
    %v3288 = vpack.c.b16 %v1944, %v1848
    %v3289 = vpack.c.b16 %v1945, %v1849
    %v3290 = vpack.c.b16 %v1946, %v1850
    %v3291 = vpack.c.b16 %v1947, %v1851
    %v3292 = vpack.c.b16 %v1948, %v1852
    %v3293 = vpack.c.b16 %v1949, %v1853
    %v3294 = vpack.c.b16 %v1950, %v1854
    %v3295 = vpack.c.b16 %v1951, %v1855
    %v3296 = vpack.c.b16 %v1952, %v1856
    %v3297 = vpack.c.b16 %v1953, %v1857
    %v3298 = vpack.c.b16 %v1954, %v1858
    %v3299 = vpack.c.b16 %v1955, %v1859
    %v3300 = vpack.c.b16 %v1956, %v1860
    %v3301 = vpack.c.b16 %v1957, %v1861
    %v3302 = vpack.c.b16 %v1958, %v1862
    %v3303 = vpack.c.b16 %v1959, %v1863
    %v3304 = vpack.c.b16 %v1960, %v1864
    %v3305 = vpack.c.b16 %v1961, %v1865
    %v3306 = vpack.c.b16 %v1962, %v1866
    %v3307 = vpack.c.b16 %v1963, %v1867
    %v3308 = vpack.c.b16 %v2060, %v1964
    %v3309 = vpack.c.b16 %v2061, %v1965
    %v3310 = vpack.c.b16 %v2062, %v1966
    %v3311 = vpack.c.b16 %v2063, %v1967
    %v3312 = vpack.c.b16 %v2064, %v1968
    %v3313 = vpack.c.b16 %v2065, %v1969
    %v3314 = vpack.c.b16 %v2066, %v1970
    %v3315 = vpack.c.b16 %v2067, %v1971
    %v3316 = vpack.c.b16 %v2068, %v1972
    %v3317 = vpack.c.b16 %v2069, %v1973
    %v3318 = vpack.c.b16 %v2070, %v1974
    %v3319 = vpack.c.b16 %v2071, %v1975
    %v3320 = vpack.c.b16 %v2072, %v1976
    %v3321 = vpack.c.b16 %v2073, %v1977
    %v3322 = vpack.c.b16 %v2074, %v1978
    %v3323 = vpack.c.b16 %v2075, %v1979
    %v3324 = vpack.c.b16 %v2076, %v1980
    %v3325 = vpack.c.b16 %v2077, %v1981
    %v3326 = vpack.c.b16 %v2078, %v1982
    %v3327 = vpack.c.b16 %v2079, %v1983
    %v3328 = vpack.c.b16 %v2080, %v1984
    %v3329 = vpack.c.b16 %v2081, %v1985
    %v3330 = vpack.c.b16 %v2082, %v1986
    %v3331 = vpack.c.b16 %v2083, %v1987
    %v3332 = vpack.c.b16 %v2084, %v1988
    %v3333 = vpack.c.b16 %v2085, %v1989
    %v3334 = vpack.c.b16 %v2086, %v1990
    %v3335 = vpack.c.b16 %v2087, %v1991
    %v3336 = vpack.c.b16 %v2088, %v1992
    %v3337 = vpack.c.b16 %v2089, %v1993
    %v3338 = vpack.c.b16 %v2090, %v1994
    %v3339 = vpack.c.b16 %v2091, %v1995
    %v3340 = vpack.c.b16 %v2092, %v1996
    %v3341 = vpack.c.b16 %v2093, %v1997
    %v3342 = vpack.c.b16 %v2094, %v1998
    %v3343 = vpack.c.b16 %v2095, %v1999
    %v3344 = vpack.c.b16 %v2096, %v2000
    %v3345 = vpack.c.b16 %v2097, %v2001
    %v3346 = vpack.c.b16 %v2098, %v2002
    %v3347 = vpack.c.b16 %v2099, %v2003
    %v3348 = vpack.c.b16 %v2100, %v2004
    %v3349 = vpack.c.b16 %v2101, %v2005
    %v3350 = vpack.c.b16 %v2102, %v2006
    %v3351 = vpack.c.b16 %v2103, %v2007
    %v3352 = vpack.c.b16 %v2104, %v2008
    %v3353 = vpack.c.b16 %v2105, %v2009
    %v3354 = vpack.c.b16 %v2106, %v2010
    %v3355 = vpack.c.b16 %v2107, %v2011
    %v3356 = vpack.c.b16 %v2108, %v2012
    %v3357 = vpack.c.b16 %v2109, %v2013
    %v3358 = vpack.c.b16 %v2110, %v2014
    %v3359 = vpack.c.b16 %v2111, %v2015
    %v3360 = vpack.c.b16 %v2112, %v2016
    %v3361 = vpack.c.b16 %v2113, %v2017
    %v3362 = vpack.c.b16 %v2114, %v2018
    %v3363 = vpack.c.b16 %v2115, %v2019
    %v3364 = vpack.c.b16 %v2116, %v2020
    %v3365 = vpack.c.b16 %v2117, %v2021
    %v3366 = vpack.c.b16 %v2118, %v2022
    %v3367 = vpack.c.b16 %v2119, %v2023
    %v3368 = vpack.c.b16 %v2120, %v2024
    %v3369 = vpack.c.b16 %v2121, %v2025
    %v3370 = vpack.c.b16 %v2122, %v2026
    %v3371 = vpack.c.b16 %v2123, %v2027
    %v3372 = vpack.c.b16 %v2124, %v2028
    %v3373 = vpack.c.b16 %v2125, %v2029
    %v3374 = vpack.c.b16 %v2126, %v2030
    %v3375 = vpack.c.b16 %v2127, %v2031
    %v3376 = vpack.c.b16 %v2128, %v2032
    %v3377 = vpack.c.b16 %v2129, %v2033
    %v3378 = vpack.c.b16 %v2130, %v2034
    %v3379 = vpack.c.b16 %v2131, %v2035
    %v3380 = vpack.c.b16 %v2132, %v2036
    %v3381 = vpack.c.b16 %v2133, %v2037
    %v3382 = vpack.c.b16 %v2134, %v2038
    %v3383 = vpack.c.b16 %v2135, %v2039
    %v3384 = vpack.c.b16 %v2136, %v2040
    %v3385 = vpack.c.b16 %v2137, %v2041
    %v3386 = vpack.c.b16 %v2138, %v2042
    %v3387 = vpack.c.b16 %v2139, %v2043
    %v3388 = vpack.c.b16 %v2140, %v2044
    %v3389 = vpack.c.b16 %v2141, %v2045
    %v3390 = vpack.c.b16 %v2142, %v2046
    %v3391 = vpack.c.b16 %v2143, %v2047
    %v3392 = vpack.c.b16 %v2144, %v2048
    %v3393 = vpack.c.b16 %v2145, %v2049
    %v3394 = vpack.c.b16 %v2146, %v2050
    %v3395 = vpack.c.b16 %v2147, %v2051
    %v3396 = vpack.c.b16 %v2148, %v2052
    %v3397 = vpack.c.b16 %v2149, %v2053
    %v3398 = vpack.c.b16 %v2150, %v2054
    %v3399 = vpack.c.b16 %v2151, %v2055
    %v3400 = vpack.c.b16 %v2152, %v2056
    %v3401 = vpack.c.b16 %v2153, %v2057
    %v3402 = vpack.c.b16 %v2154, %v2058
    %v3403 = vpack.c.b16 %v2155, %v2059
    %v3404 = vpack.c.b16 %v2252, %v2156
    %v3405 = vpack.c.b16 %v2253, %v2157
    %v3406 = vpack.c.b16 %v2254, %v2158
    %v3407 = vpack.c.b16 %v2255, %v2159
    %v3408 = vpack.c.b16 %v2256, %v2160
    %v3409 = vpack.c.b16 %v2257, %v2161
    %v3410 = vpack.c.b16 %v2258, %v2162
    %v3411 = vpack.c.b16 %v2259, %v2163
    %v3412 = vpack.c.b16 %v2260, %v2164
    %v3413 = vpack.c.b16 %v2261, %v2165
    %v3414 = vpack.c.b16 %v2262, %v2166
    %v3415 = vpack.c.b16 %v2263, %v2167
    %v3416 = vpack.c.b16 %v2264, %v2168
    %v3417 = vpack.c.b16 %v2265, %v2169
    %v3418 = vpack.c.b16 %v2266, %v2170
    %v3419 = vpack.c.b16 %v2267, %v2171
    %v3420 = vpack.c.b16 %v2268, %v2172
    %v3421 = vpack.c.b16 %v2269, %v2173
    %v3422 = vpack.c.b16 %v2270, %v2174
    %v3423 = vpack.c.b16 %v2271, %v2175
    %v3424 = vpack.c.b16 %v2272, %v2176
    %v3425 = vpack.c.b16 %v2273, %v2177
    %v3426 = vpack.c.b16 %v2274, %v2178
    %v3427 = vpack.c.b16 %v2275, %v2179
    %v3428 = vpack.c.b16 %v2276, %v2180
    %v3429 = vpack.c.b16 %v2277, %v2181
    %v3430 = vpack.c.b16 %v2278, %v2182
    %v3431 = vpack.c.b16 %v2279, %v2183
    %v3432 = vpack.c.b16 %v2280, %v2184
    %v3433 = vpack.c.b16 %v2281, %v2185
    %v3434 = vpack.c.b16 %v2282, %v2186
    %v3435 = vpack.c.b16 %v2283, %v2187
    %v3436 = vpack.c.b16 %v2284, %v2188
    %v3437 = vpack.c.b16 %v2285, %v2189
    %v3438 = vpack.c.b16 %v2286, %v2190
    %v3439 = vpack.c.b16 %v2287, %v2191
    %v3440 = vpack.c.b16 %v2288, %v2192
    %v3441 = vpack.c.b16 %v2289, %v2193
    %v3442 = vpack.c.b16 %v2290, %v2194
    %v3443 = vpack.c.b16 %v2291, %v2195
    %v3444 = vpack.c.b16 %v2292, %v2196
    %v3445 = vpack.c.b16 %v2293, %v2197
    %v3446 = vpack.c.b16 %v2294, %v2198
    %v3447 = vpack.c.b16 %v2295, %v2199
    %v3448 = vpack.c.b16 %v2296, %v2200
    %v3449 = vpack.c.b16 %v2297, %v2201
    %v3450 = vpack.c.b16 %v2298, %v2202
    %v3451 = vpack.c.b16 %v2299, %v2203
    %v3452 = vpack.c.b16 %v2300, %v2204
    %v3453 = vpack.c.b16 %v2301, %v2205
    %v3454 = vpack.c.b16 %v2302, %v2206
    %v3455 = vpack.c.b16 %v2303, %v2207
    %v3456 = vpack.c.b16 %v2304, %v2208
    %v3457 = vpack.c.b16 %v2305, %v2209
    %v3458 = vpack.c.b16 %v2306, %v2210
    %v3459 = vpack.c.b16 %v2307, %v2211
    %v3460 = vpack.c.b16 %v2308, %v2212
    %v3461 = vpack.c.b16 %v2309, %v2213
    %v3462 = vpack.c.b16 %v2310, %v2214
    %v3463 = vpack.c.b16 %v2311, %v2215
    %v3464 = vpack.c.b16 %v2312, %v2216
    %v3465 = vpack.c.b16 %v2313, %v2217
    %v3466 = vpack.c.b16 %v2314, %v2218
    %v3467 = vpack.c.b16 %v2315, %v2219
    %v3468 = vpack.c.b16 %v2316, %v2220
    %v3469 = vpack.c.b16 %v2317, %v2221
    %v3470 = vpack.c.b16 %v2318, %v2222
    %v3471 = vpack.c.b16 %v2319, %v2223
    %v3472 = vpack.c.b16 %v2320, %v2224
    %v3473 = vpack.c.b16 %v2321, %v2225
    %v3474 = vpack.c.b16 %v2322, %v2226
    %v3475 = vpack.c.b16 %v2323, %v2227
    %v3476 = vpack.c.b16 %v2324, %v2228
    %v3477 = vpack.c.b16 %v2325, %v2229
    %v3478 = vpack.c.b16 %v2326, %v2230
    %v3479 = vpack.c.b16 %v2327, %v2231
    %v3480 = vpack.c.b16 %v2328, %v2232
    %v3481 = vpack.c.b16 %v2329, %v2233
    %v3482 = vpack.c.b16 %v2330, %v2234
    %v3483 = vpack.c.b16 %v2331, %v2235
    %v3484 = vpack.c.b16 %v2332, %v2236
    %v3485 = vpack.c.b16 %v2333, %v2237
    %v3486 = vpack.c.b16 %v2334, %v2238
    %v3487 = vpack.c.b16 %v2335, %v2239
    %v3488 = vpack.c.b16 %v2336, %v2240
    %v3489 = vpack.c.b16 %v2337, %v2241
    %v3490 = vpack.c.b16 %v2338, %v2242
    %v3491 = vpack.c.b16 %v2339, %v2243
    %v3492 = vpack.c.b16 %v2340, %v2244
    %v3493 = vpack.c.b16 %v2341, %v2245
    %v3494 = vpack.c.b16 %v2342, %v2246
    %v3495 = vpack.c.b16 %v2343, %v2247
    %v3496 = vpack.c.b16 %v2344, %v2248
    %v3497 = vpack.c.b16 %v2345, %v2249
    %v3498 = vpack.c.b16 %v2346, %v2250
    %v3499 = vpack.c.b16 %v2347, %v2251
    %v3500 = vpack.c.b16 %v2444, %v2348
    %v3501 = vpack.c.b16 %v2445, %v2349
    %v3502 = vpack.c.b16 %v2446, %v2350
    %v3503 = vpack.c.b16 %v2447, %v2351
    %v3504 = vpack.c.b16 %v2448, %v2352
    %v3505 = vpack.c.b16 %v2449, %v2353
    %v3506 = vpack.c.b16 %v2450, %v2354
    %v3507 = vpack.c.b16 %v2451, %v2355
    %v3508 = vpack.c.b16 %v2452, %v2356
    %v3509 = vpack.c.b16 %v2453, %v2357
    %v3510 = vpack.c.b16 %v2454, %v2358
    %v3511 = vpack.c.b16 %v2455, %v2359
    %v3512 = vpack.c.b16 %v2456, %v2360
    %v3513 = vpack.c.b16 %v2457, %v2361
    %v3514 = vpack.c.b16 %v2458, %v2362
    %v3515 = vpack.c.b16 %v2459, %v2363
    %v3516 = vpack.c.b16 %v2460, %v2364
    %v3517 = vpack.c.b16 %v2461, %v2365
    %v3518 = vpack.c.b16 %v2462, %v2366
    %v3519 = vpack.c.b16 %v2463, %v2367
    %v3520 = vpack.c.b16 %v2464, %v2368
    %v3521 = vpack.c.b16 %v2465, %v2369
    %v3522 = vpack.c.b16 %v2466, %v2370
    %v3523 = vpack.c.b16 %v2467, %v2371
    %v3524 = vpack.c.b16 %v2468, %v2372
    %v3525 = vpack.c.b16 %v2469, %v2373
    %v3526 = vpack.c.b16 %v2470, %v2374
    %v3527 = vpack.c.b16 %v2471, %v2375
    %v3528 = vpack.c.b16 %v2472, %v2376
    %v3529 = vpack.c.b16 %v2473, %v2377
    %v3530 = vpack.c.b16 %v2474, %v2378
    %v3531 = vpack.c.b16 %v2475, %v2379
    %v3532 = vpack.c.b16 %v2476, %v2380
    %v3533 = vpack.c.b16 %v2477, %v2381
    %v3534 = vpack.c.b16 %v2478, %v2382
    %v3535 = vpack.c.b16 %v2479, %v2383
    %v3536 = vpack.c.b16 %v2480, %v2384
    %v3537 = vpack.c.b16 %v2481, %v2385
    %v3538 = vpack.c.b16 %v2482, %v2386
    %v3539 = vpack.c.b16 %v2483, %v2387
    %v3540 = vpack.c.b16 %v2484, %v2388
    %v3541 = vpack.c.b16 %v2485, %v2389
    %v3542 = vpack.c.b16 %v2486, %v2390
    %v3543 = vpack.c.b16 %v2487, %v2391
    %v3544 = vpack.c.b16 %v2488, %v2392
    %v3545 = vpack.c.b16 %v2489, %v2393
    %v3546 = vpack.c.b16 %v2490, %v2394
    %v3547 = vpack.c.b16 %v2491, %v2395
    %v3548 = vpack.c.b16 %v2492, %v2396
    %v3549 = vpack.c.b16 %v2493, %v2397
    %v3550 = vpack.c.b16 %v2494, %v2398
    %v3551 = vpack.c.b16 %v2495, %v2399
    %v3552 = vpack.c.b16 %v2496, %v2400
    %v3553 = vpack.c.b16 %v2497, %v2401
    %v3554 = vpack.c.b16 %v2498, %v2402
    %v3555 = vpack.c.b16 %v2499, %v2403
    %v3556 = vpack.c.b16 %v2500, %v2404
    %v3557 = vpack.c.b16 %v2501, %v2405
    %v3558 = vpack.c.b16 %v2502, %v2406
    %v3559 = vpack.c.b16 %v2503, %v2407
    %v3560 = vpack.c.b16 %v2504, %v2408
    %v3561 = vpack.c.b16 %v2505, %v2409
    %v3562 = vpack.c.b16 %v2506, %v2410
    %v3563 = vpack.c.b16 %v2507, %v2411
    %v3564 = vpack.c.b16 %v2508, %v2412
    %v3565 = vpack.c.b16 %v2509, %v2413
    %v3566 = vpack.c.b16 %v2510, %v2414
    %v3567 = vpack.c.b16 %v2511, %v2415
    %v3568 = vpack.c.b16 %v2512, %v2416
    %v3569 = vpack.c.b16 %v2513, %v2417
    %v3570 = vpack.c.b16 %v2514, %v2418
    %v3571 = vpack.c.b16 %v2515, %v2419
    %v3572 = vpack.c.b16 %v2516, %v2420
    %v3573 = vpack.c.b16 %v2517, %v2421
    %v3574 = vpack.c.b16 %v2518, %v2422
    %v3575 = vpack.c.b16 %v2519, %v2423
    %v3576 = vpack.c.b16 %v2520, %v2424
    %v3577 = vpack.c.b16 %v2521, %v2425
    %v3578 = vpack.c.b16 %v2522, %v2426
    %v3579 = vpack.c.b16 %v2523, %v2427
    %v3580 = vpack.c.b16 %v2524, %v2428
    %v3581 = vpack.c.b16 %v2525, %v2429
    %v3582 = vpack.c.b16 %v2526, %v2430
    %v3583 = vpack.c.b16 %v2527, %v2431
    %v3584 = vpack.c.b16 %v2528, %v2432
    %v3585 = vpack.c.b16 %v2529, %v2433
    %v3586 = vpack.c.b16 %v2530, %v2434
    %v3587 = vpack.c.b16 %v2531, %v2435
    %v3588 = vpack.c.b16 %v2532, %v2436
    %v3589 = vpack.c.b16 %v2533, %v2437
    %v3590 = vpack.c.b16 %v2534, %v2438
    %v3591 = vpack.c.b16 %v2535, %v2439
    %v3592 = vpack.c.b16 %v2536, %v2440
    %v3593 = vpack.c.b16 %v2537, %v2441
    %v3594 = vpack.c.b16 %v2538, %v2442
    %v3595 = vpack.c.b16 %v2539, %v2443
    %v3596 = vpack.c.b16 %v2636, %v2540
    %v3597 = vpack.c.b16 %v2637, %v2541
    %v3598 = vpack.c.b16 %v2638, %v2542
    %v3599 = vpack.c.b16 %v2639, %v2543
    %v3600 = vpack.c.b16 %v2640, %v2544
    %v3601 = vpack.c.b16 %v2641, %v2545
    %v3602 = vpack.c.b16 %v2642, %v2546
    %v3603 = vpack.c.b16 %v2643, %v2547
    %v3604 = vpack.c.b16 %v2644, %v2548
    %v3605 = vpack.c.b16 %v2645, %v2549
    %v3606 = vpack.c.b16 %v2646, %v2550
    %v3607 = vpack.c.b16 %v2647, %v2551
    %v3608 = vpack.c.b16 %v2648, %v2552
    %v3609 = vpack.c.b16 %v2649, %v2553
    %v3610 = vpack.c.b16 %v2650, %v2554
    %v3611 = vpack.c.b16 %v2651, %v2555
    %v3612 = vpack.c.b16 %v2652, %v2556
    %v3613 = vpack.c.b16 %v2653, %v2557
    %v3614 = vpack.c.b16 %v2654, %v2558
    %v3615 = vpack.c.b16 %v2655, %v2559
    %v3616 = vpack.c.b16 %v2656, %v2560
    %v3617 = vpack.c.b16 %v2657, %v2561
    %v3618 = vpack.c.b16 %v2658, %v2562
    %v3619 = vpack.c.b16 %v2659, %v2563
    %v3620 = vpack.c.b16 %v2660, %v2564
    %v3621 = vpack.c.b16 %v2661, %v2565
    %v3622 = vpack.c.b16 %v2662, %v2566
    %v3623 = vpack.c.b16 %v2663, %v2567
    %v3624 = vpack.c.b16 %v2664, %v2568
    %v3625 = vpack.c.b16 %v2665, %v2569
    %v3626 = vpack.c.b16 %v2666, %v2570
    %v3627 = vpack.c.b16 %v2667, %v2571
    %v3628 = vpack.c.b16 %v2668, %v2572
    %v3629 = vpack.c.b16 %v2669, %v2573
    %v3630 = vpack.c.b16 %v2670, %v2574
    %v3631 = vpack.c.b16 %v2671, %v2575
    %v3632 = vpack.c.b16 %v2672, %v2576
    %v3633 = vpack.c.b16 %v2673, %v2577
    %v3634 = vpack.c.b16 %v2674, %v2578
    %v3635 = vpack.c.b16 %v2675, %v2579
    %v3636 = vpack.c.b16 %v2676, %v2580
    %v3637 = vpack.c.b16 %v2677, %v2581
    %v3638 = vpack.c.b16 %v2678, %v2582
    %v3639 = vpack.c.b16 %v2679, %v2583
    %v3640 = vpack.c.b16 %v2680, %v2584
    %v3641 = vpack.c.b16 %v2681, %v2585
    %v3642 = vpack.c.b16 %v2682, %v2586
    %v3643 = vpack.c.b16 %v2683, %v2587
    %v3644 = vpack.c.b16 %v2684, %v2588
    %v3645 = vpack.c.b16 %v2685, %v2589
    %v3646 = vpack.c.b16 %v2686, %v2590
    %v3647 = vpack.c.b16 %v2687, %v2591
    %v3648 = vpack.c.b16 %v2688, %v2592
    %v3649 = vpack.c.b16 %v2689, %v2593
    %v3650 = vpack.c.b16 %v2690, %v2594
    %v3651 = vpack.c.b16 %v2691, %v2595
    %v3652 = vpack.c.b16 %v2692, %v2596
    %v3653 = vpack.c.b16 %v2693, %v2597
    %v3654 = vpack.c.b16 %v2694, %v2598
    %v3655 = vpack.c.b16 %v2695, %v2599
    %v3656 = vpack.c.b16 %v2696, %v2600
    %v3657 = vpack.c.b16 %v2697, %v2601
    %v3658 = vpack.c.b16 %v2698, %v2602
    %v3659 = vpack.c.b16 %v2699, %v2603
    %v3660 = vpack.c.b16 %v2700, %v2604
    %v3661 = vpack.c.b16 %v2701, %v2605
    %v3662 = vpack.c.b16 %v2702, %v2606
    %v3663 = vpack.c.b16 %v2703, %v2607
    %v3664 = vpack.c.b16 %v2704, %v2608
    %v3665 = vpack.c.b16 %v2705, %v2609
    %v3666 = vpack.c.b16 %v2706, %v2610
    %v3667 = vpack.c.b16 %v2707, %v2611
    %v3668 = vpack.c.b16 %v2708, %v2612
    %v3669 = vpack.c.b16 %v2709, %v2613
    %v3670 = vpack.c.b16 %v2710, %v2614
    %v3671 = vpack.c.b16 %v2711, %v2615
    %v3672 = vpack.c.b16 %v2712, %v2616
    %v3673 = vpack.c.b16 %v2713, %v2617
    %v3674 = vpack.c.b16 %v2714, %v2618
    %v3675 = vpack.c.b16 %v2715, %v2619
    %v3676 = vpack.c.b16 %v2716, %v2620
    %v3677 = vpack.c.b16 %v2717, %v2621
    %v3678 = vpack.c.b16 %v2718, %v2622
    %v3679 = vpack.c.b16 %v2719, %v2623
    %v3680 = vpack.c.b16 %v2720, %v2624
    %v3681 = vpack.c.b16 %v2721, %v2625
    %v3682 = vpack.c.b16 %v2722, %v2626
    %v3683 = vpack.c.b16 %v2723, %v2627
    %v3684 = vpack.c.b16 %v2724, %v2628
    %v3685 = vpack.c.b16 %v2725, %v2629
    %v3686 = vpack.c.b16 %v2726, %v2630
    %v3687 = vpack.c.b16 %v2727, %v2631
    %v3688 = vpack.c.b16 %v2728, %v2632
    %v3689 = vpack.c.b16 %v2729, %v2633
    %v3690 = vpack.c.b16 %v2730, %v2634
    %v3691 = vpack.c.b16 %v2731, %v2635
    %v3692 = vpack.c.b16 %v2828, %v2732
    %v3693 = vpack.c.b16 %v2829, %v2733
    %v3694 = vpack.c.b16 %v2830, %v2734
    %v3695 = vpack.c.b16 %v2831, %v2735
    %v3696 = vpack.c.b16 %v2832, %v2736
    %v3697 = vpack.c.b16 %v2833, %v2737
    %v3698 = vpack.c.b16 %v2834, %v2738
    %v3699 = vpack.c.b16 %v2835, %v2739
    %v3700 = vpack.c.b16 %v2836, %v2740
    %v3701 = vpack.c.b16 %v2837, %v2741
    %v3702 = vpack.c.b16 %v2838, %v2742
    %v3703 = vpack.c.b16 %v2839, %v2743
    %v3704 = vpack.c.b16 %v2840, %v2744
    %v3705 = vpack.c.b16 %v2841, %v2745
    %v3706 = vpack.c.b16 %v2842, %v2746
    %v3707 = vpack.c.b16 %v2843, %v2747
    %v3708 = vpack.c.b16 %v2844, %v2748
    %v3709 = vpack.c.b16 %v2845, %v2749
    %v3710 = vpack.c.b16 %v2846, %v2750
    %v3711 = vpack.c.b16 %v2847, %v2751
    %v3712 = vpack.c.b16 %v2848, %v2752
    %v3713 = vpack.c.b16 %v2849, %v2753
    %v3714 = vpack.c.b16 %v2850, %v2754
    %v3715 = vpack.c.b16 %v2851, %v2755
    %v3716 = vpack.c.b16 %v2852, %v2756
    %v3717 = vpack.c.b16 %v2853, %v2757
    %v3718 = vpack.c.b16 %v2854, %v2758
    %v3719 = vpack.c.b16 %v2855, %v2759
    %v3720 = vpack.c.b16 %v2856, %v2760
    %v3721 = vpack.c.b16 %v2857, %v2761
    %v3722 = vpack.c.b16 %v2858, %v2762
    %v3723 = vpack.c.b16 %v2859, %v2763
    %v3724 = vpack.c.b16 %v2860, %v2764
    %v3725 = vpack.c.b16 %v2861, %v2765
    %v3726 = vpack.c.b16 %v2862, %v2766
    %v3727 = vpack.c.b16 %v2863, %v2767
    %v3728 = vpack.c.b16 %v2864, %v2768
    %v3729 = vpack.c.b16 %v2865, %v2769
    %v3730 = vpack.c.b16 %v2866, %v2770
    %v3731 = vpack.c.b16 %v2867, %v2771
    %v3732 = vpack.c.b16 %v2868, %v2772
    %v3733 = vpack.c.b16 %v2869, %v2773
    %v3734 = vpack.c.b16 %v2870, %v2774
    %v3735 = vpack.c.b16 %v2871, %v2775
    %v3736 = vpack.c.b16 %v2872, %v2776
    %v3737 = vpack.c.b16 %v2873, %v2777
    %v3738 = vpack.c.b16 %v2874, %v2778
    %v3739 = vpack.c.b16 %v2875, %v2779
    %v3740 = vpack.c.b16 %v2876, %v2780
    %v3741 = vpack.c.b16 %v2877, %v2781
    %v3742 = vpack.c.b16 %v2878, %v2782
    %v3743 = vpack.c.b16 %v2879, %v2783
    %v3744 = vpack.c.b16 %v2880, %v2784
    %v3745 = vpack.c.b16 %v2881, %v2785
    %v3746 = vpack.c.b16 %v2882, %v2786
    %v3747 = vpack.c.b16 %v2883, %v2787
    %v3748 = vpack.c.b16 %v2884, %v2788
    %v3749 = vpack.c.b16 %v2885, %v2789
    %v3750 = vpack.c.b16 %v2886, %v2790
    %v3751 = vpack.c.b16 %v2887, %v2791
    %v3752 = vpack.c.b16 %v2888, %v2792
    %v3753 = vpack.c.b16 %v2889, %v2793
    %v3754 = vpack.c.b16 %v2890, %v2794
    %v3755 = vpack.c.b16 %v2891, %v2795
    %v3756 = vpack.c.b16 %v2892, %v2796
    %v3757 = vpack.c.b16 %v2893, %v2797
    %v3758 = vpack.c.b16 %v2894, %v2798
    %v3759 = vpack.c.b16 %v2895, %v2799
    %v3760 = vpack.c.b16 %v2896, %v2800
    %v3761 = vpack.c.b16 %v2897, %v2801
    %v3762 = vpack.c.b16 %v2898, %v2802
    %v3763 = vpack.c.b16 %v2899, %v2803
    %v3764 = vpack.c.b16 %v2900, %v2804
    %v3765 = vpack.c.b16 %v2901, %v2805
    %v3766 = vpack.c.b16 %v2902, %v2806
    %v3767 = vpack.c.b16 %v2903, %v2807
    %v3768 = vpack.c.b16 %v2904, %v2808
    %v3769 = vpack.c.b16 %v2905, %v2809
    %v3770 = vpack.c.b16 %v2906, %v2810
    %v3771 = vpack.c.b16 %v2907, %v2811
    %v3772 = vpack.c.b16 %v2908, %v2812
    %v3773 = vpack.c.b16 %v2909, %v2813
    %v3774 = vpack.c.b16 %v2910, %v2814
    %v3775 = vpack.c.b16 %v2911, %v2815
    %v3776 = vpack.c.b16 %v2912, %v2816
    %v3777 = vpack.c.b16 %v2913, %v2817
    %v3778 = vpack.c.b16 %v2914, %v2818
    %v3779 = vpack.c.b16 %v2915, %v2819
    %v3780 = vpack.c.b16 %v2916, %v2820
    %v3781 = vpack.c.b16 %v2917, %v2821
    %v3782 = vpack.c.b16 %v2918, %v2822
    %v3783 = vpack.c.b16 %v2919, %v2823
    %v3784 = vpack.c.b16 %v2920, %v2824
    %v3785 = vpack.c.b16 %v2921, %v2825
    %v3786 = vpack.c.b16 %v2922, %v2826
    %v3787 = vpack.c.b16 %v2923, %v2827
    %v3788 = vpack.c.b16 %v3020, %v2924
    %v3789 = vpack.c.b16 %v3021, %v2925
    %v3790 = vpack.c.b16 %v3022, %v2926
    %v3791 = vpack.c.b16 %v3023, %v2927
    %v3792 = vpack.c.b16 %v3024, %v2928
    %v3793 = vpack.c.b16 %v3025, %v2929
    %v3794 = vpack.c.b16 %v3026, %v2930
    %v3795 = vpack.c.b16 %v3027, %v2931
    %v3796 = vpack.c.b16 %v3028, %v2932
    %v3797 = vpack.c.b16 %v3029, %v2933
    %v3798 = vpack.c.b16 %v3030, %v2934
    %v3799 = vpack.c.b16 %v3031, %v2935
    %v3800 = vpack.c.b16 %v3032, %v2936
    %v3801 = vpack.c.b16 %v3033, %v2937
    %v3802 = vpack.c.b16 %v3034, %v2938
    %v3803 = vpack.c.b16 %v3035, %v2939
    %v3804 = vpack.c.b16 %v3036, %v2940
    %v3805 = vpack.c.b16 %v3037, %v2941
    %v3806 = vpack.c.b16 %v3038, %v2942
    %v3807 = vpack.c.b16 %v3039, %v2943
    %v3808 = vpack.c.b16 %v3040, %v2944
    %v3809 = vpack.c.b16 %v3041, %v2945
    %v3810 = vpack.c.b16 %v3042, %v2946
    %v3811 = vpack.c.b16 %v3043, %v2947
    %v3812 = vpack.c.b16 %v3044, %v2948
    %v3813 = vpack.c.b16 %v3045, %v2949
    %v3814 = vpack.c.b16 %v3046, %v2950
    %v3815 = vpack.c.b16 %v3047, %v2951
    %v3816 = vpack.c.b16 %v3048, %v2952
    %v3817 = vpack.c.b16 %v3049, %v2953
    %v3818 = vpack.c.b16 %v3050, %v2954
    %v3819 = vpack.c.b16 %v3051, %v2955
    %v3820 = vpack.c.b16 %v3052, %v2956
    %v3821 = vpack.c.b16 %v3053, %v2957
    %v3822 = vpack.c.b16 %v3054, %v2958
    %v3823 = vpack.c.b16 %v3055, %v2959
    %v3824 = vpack.c.b16 %v3056, %v2960
    %v3825 = vpack.c.b16 %v3057, %v2961
    %v3826 = vpack.c.b16 %v3058, %v2962
    %v3827 = vpack.c.b16 %v3059, %v2963
    %v3828 = vpack.c.b16 %v3060, %v2964
    %v3829 = vpack.c.b16 %v3061, %v2965
    %v3830 = vpack.c.b16 %v3062, %v2966
    %v3831 = vpack.c.b16 %v3063, %v2967
    %v3832 = vpack.c.b16 %v3064, %v2968
    %v3833 = vpack.c.b16 %v3065, %v2969
    %v3834 = vpack.c.b16 %v3066, %v2970
    %v3835 = vpack.c.b16 %v3067, %v2971
    %v3836 = vpack.c.b16 %v3068, %v2972
    %v3837 = vpack.c.b16 %v3069, %v2973
    %v3838 = vpack.c.b16 %v3070, %v2974
    %v3839 = vpack.c.b16 %v3071, %v2975
    %v3840 = vpack.c.b16 %v3072, %v2976
    %v3841 = vpack.c.b16 %v3073, %v2977
    %v3842 = vpack.c.b16 %v3074, %v2978
    %v3843 = vpack.c.b16 %v3075, %v2979
    %v3844 = vpack.c.b16 %v3076, %v2980
    %v3845 = vpack.c.b16 %v3077, %v2981
    %v3846 = vpack.c.b16 %v3078, %v2982
    %v3847 = vpack.c.b16 %v3079, %v2983
    %v3848 = vpack.c.b16 %v3080, %v2984
    %v3849 = vpack.c.b16 %v3081, %v2985
    %v3850 = vpack.c.b16 %v3082, %v2986
    %v3851 = vpack.c.b16 %v3083, %v2987
    %v3852 = vpack.c.b16 %v3084, %v2988
    %v3853 = vpack.c.b16 %v3085, %v2989
    %v3854 = vpack.c.b16 %v3086, %v2990
    %v3855 = vpack.c.b16 %v3087, %v2991
    %v3856 = vpack.c.b16 %v3088, %v2992
    %v3857 = vpack.c.b16 %v3089, %v2993
    %v3858 = vpack.c.b16 %v3090, %v2994
    %v3859 = vpack.c.b16 %v3091, %v2995
    %v3860 = vpack.c.b16 %v3092, %v2996
    %v3861 = vpack.c.b16 %v3093, %v2997
    %v3862 = vpack.c.b16 %v3094, %v2998
    %v3863 = vpack.c.b16 %v3095, %v2999
    %v3864 = vpack.c.b16 %v3096, %v3000
    %v3865 = vpack.c.b16 %v3097, %v3001
    %v3866 = vpack.c.b16 %v3098, %v3002
    %v3867 = vpack.c.b16 %v3099, %v3003
    %v3868 = vpack.c.b16 %v3100, %v3004
    %v3869 = vpack.c.b16 %v3101, %v3005
    %v3870 = vpack.c.b16 %v3102, %v3006
    %v3871 = vpack.c.b16 %v3103, %v3007
    %v3872 = vpack.c.b16 %v3104, %v3008
    %v3873 = vpack.c.b16 %v3105, %v3009
    %v3874 = vpack.c.b16 %v3106, %v3010
    %v3875 = vpack.c.b16 %v3107, %v3011
    %v3876 = vpack.c.b16 %v3108, %v3012
    %v3877 = vpack.c.b16 %v3109, %v3013
    %v3878 = vpack.c.b16 %v3110, %v3014
    %v3879 = vpack.c.b16 %v3111, %v3015
    %v3880 = vpack.c.b16 %v3112, %v3016
    %v3881 = vpack.c.b16 %v3113, %v3017
    %v3882 = vpack.c.b16 %v3114, %v3018
    %v3883 = vpack.c.b16 %v3115, %v3019
    %4652 = vmatprep.subr.bf16.mxu0 %v3117
    %4653 = vmatpush1.bf16.msra.mxu0 %v3116
    %4654 = vmatprep.subr.bf16.mxu0 %v3213
    %4655 = vmatpush1.bf16.msra.mxu0 %v3212
    %4656 = vmatprep.subr.bf16.mxu0 %v3309
    %4657 = vmatpush1.bf16.msra.mxu0 %v3308
    %4658 = vmatprep.subr.bf16.mxu0 %v3405
    %4659 = vmatpush1.bf16.msra.mxu0 %v3404
    %4660 = vmatprep.subr.bf16.mxu0 %v3501
    %4661 = vmatpush1.bf16.msra.mxu0 %v3500
    %4662 = vmatprep.subr.bf16.mxu0 %v3597
    %4663 = vmatpush1.bf16.msra.mxu0 %v3596
    %4664 = vmatprep.subr.bf16.mxu0 %v3693
    %4665 = vmatpush1.bf16.msra.mxu0 %v3692
    %4666 = vmatprep.subr.bf16.mxu0 %v3789
    %4667 = vmatpush1.bf16.msra.mxu0 %v3788
    %4668 = vmatprep.subr.bf16.mxu0 0
    %4669 = vmatpush1.bf16.msra.mxu0 0
    %4670 = vmatprep.subr.bf16.mxu0 0
    %4671 = vmatpush1.bf16.msra.mxu0 0
    %4672 = vmatprep.subr.bf16.mxu0 0
    %4673 = vmatpush1.bf16.msra.mxu0 0
    %4674 = vmatprep.subr.bf16.mxu0 0
    %4675 = vmatpush1.bf16.msra.mxu0 0
    %4676 = vmatprep.subr.bf16.mxu0 0
    %4677 = vmatpush1.bf16.msra.mxu0 0
    %4678 = vmatprep.subr.bf16.mxu0 0
    %4679 = vmatpush1.bf16.msra.mxu0 0
    %4680 = vmatprep.subr.bf16.mxu0 0
    %4681 = vmatpush1.bf16.msra.mxu0 0
    %4682 = vmatprep.subr.bf16.mxu0 0
    %4683 = vmatpush1.bf16.msra.mxu0 0
    %4684 = vmatprep.mubr.bf16.mxu0 0
    %4685 = vmatmul.mubr.bf16.gmra.mrb[0].mxu0 %v43
    %v4686 = vpop.f32.mrb[0].mxu0
    %v4687 = vadd.f32 0.0, %v4686
    %v4688 = vpop.f32.mrb[0].mxu0
    %v4689 = vadd.f32 0.0, %v4688
    %v4690 = vpop.f32.mrb[0].mxu0
    %v4691 = vadd.f32 0.0, %v4690
    %v4692 = vpop.f32.mrb[0].mxu0
    %v4693 = vadd.f32 0.0, %v4692
    %4694 = vdwg.mxu0
    %4695 = vmatprep.subr.bf16.mxu0 %v3119
    %4696 = vmatpush1.bf16.msra.mxu0 %v3118
    %4697 = vmatprep.subr.bf16.mxu0 %v3215
    %4698 = vmatpush1.bf16.msra.mxu0 %v3214
    %4699 = vmatprep.subr.bf16.mxu0 %v3311
    %4700 = vmatpush1.bf16.msra.mxu0 %v3310
    %4701 = vmatprep.subr.bf16.mxu0 %v3407
    %4702 = vmatpush1.bf16.msra.mxu0 %v3406
    %4703 = vmatprep.subr.bf16.mxu0 %v3503
    %4704 = vmatpush1.bf16.msra.mxu0 %v3502
    %4705 = vmatprep.subr.bf16.mxu0 %v3599
    %4706 = vmatpush1.bf16.msra.mxu0 %v3598
    %4707 = vmatprep.subr.bf16.mxu0 %v3695
    %4708 = vmatpush1.bf16.msra.mxu0 %v3694
    %4709 = vmatprep.subr.bf16.mxu0 %v3791
    %4710 = vmatpush1.bf16.msra.mxu0 %v3790
    %4711 = vmatprep.subr.bf16.mxu0 0
    %4712 = vmatpush1.bf16.msra.mxu0 0
    %4713 = vmatprep.subr.bf16.mxu0 0
    %4714 = vmatpush1.bf16.msra.mxu0 0
    %4715 = vmatprep.subr.bf16.mxu0 0
    %4716 = vmatpush1.bf16.msra.mxu0 0
    %4717 = vmatprep.subr.bf16.mxu0 0
    %4718 = vmatpush1.bf16.msra.mxu0 0
    %4719 = vmatprep.subr.bf16.mxu0 0
    %4720 = vmatpush1.bf16.msra.mxu0 0
    %4721 = vmatprep.subr.bf16.mxu0 0
    %4722 = vmatpush1.bf16.msra.mxu0 0
    %4723 = vmatprep.subr.bf16.mxu0 0
    %4724 = vmatpush1.bf16.msra.mxu0 0
    %4725 = vmatprep.subr.bf16.mxu0 0
    %4726 = vmatpush1.bf16.msra.mxu0 0
    %4727 = vmatprep.mubr.bf16.mxu0 0
    %4728 = vmatmul.mubr.bf16.gmra.mrb[0].mxu0 %v43
    %v4729 = vpop.f32.mrb[0].mxu0
    %v4730 = vadd.f32 0.0, %v4729
    %v4731 = vpop.f32.mrb[0].mxu0
    %v4732 = vadd.f32 0.0, %v4731
    %v4733 = vpop.f32.mrb[0].mxu0
    %v4734 = vadd.f32 0.0, %v4733
    %v4735 = vpop.f32.mrb[0].mxu0
    %v4736 = vadd.f32 0.0, %v4735
    %4737 = vdwg.mxu0
    %4738 = vmatprep.subr.bf16.mxu0 %v3121
    %4739 = vmatpush1.bf16.msra.mxu0 %v3120
    %4740 = vmatprep.subr.bf16.mxu0 %v3217
    %4741 = vmatpush1.bf16.msra.mxu0 %v3216
    %4742 = vmatprep.subr.bf16.mxu0 %v3313
    %4743 = vmatpush1.bf16.msra.mxu0 %v3312
    %4744 = vmatprep.subr.bf16.mxu0 %v3409
    %4745 = vmatpush1.bf16.msra.mxu0 %v3408
    %4746 = vmatprep.subr.bf16.mxu0 %v3505
    %4747 = vmatpush1.bf16.msra.mxu0 %v3504
    %4748 = vmatprep.subr.bf16.mxu0 %v3601
    %4749 = vmatpush1.bf16.msra.mxu0 %v3600
    %4750 = vmatprep.subr.bf16.mxu0 %v3697
    %4751 = vmatpush1.bf16.msra.mxu0 %v3696
    %4752 = vmatprep.subr.bf16.mxu0 %v3793
    %4753 = vmatpush1.bf16.msra.mxu0 %v3792
    %4754 = vmatprep.subr.bf16.mxu0 0
    %4755 = vmatpush1.bf16.msra.mxu0 0
    %4756 = vmatprep.subr.bf16.mxu0 0
    %4757 = vmatpush1.bf16.msra.mxu0 0
    %4758 = vmatprep.subr.bf16.mxu0 0
    %4759 = vmatpush1.bf16.msra.mxu0 0
    %4760 = vmatprep.subr.bf16.mxu0 0
    %4761 = vmatpush1.bf16.msra.mxu0 0
    %4762 = vmatprep.subr.bf16.mxu0 0
    %4763 = vmatpush1.bf16.msra.mxu0 0
    %4764 = vmatprep.subr.bf16.mxu0 0
    %4765 = vmatpush1.bf16.msra.mxu0 0
    %4766 = vmatprep.subr.bf16.mxu0 0
    %4767 = vmatpush1.bf16.msra.mxu0 0
    %4768 = vmatprep.subr.bf16.mxu0 0
    %4769 = vmatpush1.bf16.msra.mxu0 0
    %4770 = vmatprep.mubr.bf16.mxu0 0
    %4771 = vmatmul.mubr.bf16.gmra.mrb[0].mxu0 %v43
    %v4772 = vpop.f32.mrb[0].mxu0
    %v4773 = vadd.f32 0.0, %v4772
    %v4774 = vpop.f32.mrb[0].mxu0
    %v4775 = vadd.f32 0.0, %v4774
    %v4776 = vpop.f32.mrb[0].mxu0
    %v4777 = vadd.f32 0.0, %v4776
    %v4778 = vpop.f32.mrb[0].mxu0
    %v4779 = vadd.f32 0.0, %v4778
    %4780 = vdwg.mxu0
    %4781 = vmatprep.subr.bf16.mxu0 %v3123
    %4782 = vmatpush1.bf16.msra.mxu0 %v3122
    %4783 = vmatprep.subr.bf16.mxu0 %v3219
    %4784 = vmatpush1.bf16.msra.mxu0 %v3218
    %4785 = vmatprep.subr.bf16.mxu0 %v3315
    %4786 = vmatpush1.bf16.msra.mxu0 %v3314
    %4787 = vmatprep.subr.bf16.mxu0 %v3411
    %4788 = vmatpush1.bf16.msra.mxu0 %v3410
    %4789 = vmatprep.subr.bf16.mxu0 %v3507
    %4790 = vmatpush1.bf16.msra.mxu0 %v3506
    %4791 = vmatprep.subr.bf16.mxu0 %v3603
    %4792 = vmatpush1.bf16.msra.mxu0 %v3602
    %4793 = vmatprep.subr.bf16.mxu0 %v3699
    %4794 = vmatpush1.bf16.msra.mxu0 %v3698
    %4795 = vmatprep.subr.bf16.mxu0 %v3795
    %4796 = vmatpush1.bf16.msra.mxu0 %v3794
    %4797 = vmatprep.subr.bf16.mxu0 0
    %4798 = vmatpush1.bf16.msra.mxu0 0
    %4799 = vmatprep.subr.bf16.mxu0 0
    %4800 = vmatpush1.bf16.msra.mxu0 0
    %4801 = vmatprep.subr.bf16.mxu0 0
    %4802 = vmatpush1.bf16.msra.mxu0 0
    %4803 = vmatprep.subr.bf16.mxu0 0
    %4804 = vmatpush1.bf16.msra.mxu0 0
    %4805 = vmatprep.subr.bf16.mxu0 0
    %4806 = vmatpush1.bf16.msra.mxu0 0
    %4807 = vmatprep.subr.bf16.mxu0 0
    %4808 = vmatpush1.bf16.msra.mxu0 0
    %4809 = vmatprep.subr.bf16.mxu0 0
    %4810 = vmatpush1.bf16.msra.mxu0 0
    %4811 = vmatprep.subr.bf16.mxu0 0
    %4812 = vmatpush1.bf16.msra.mxu0 0
    %4813 = vmatprep.mubr.bf16.mxu0 0
    %4814 = vmatmul.mubr.bf16.gmra.mrb[0].mxu0 %v43
    %v4815 = vpop.f32.mrb[0].mxu0
    %v4816 = vadd.f32 0.0, %v4815
    %v4817 = vpop.f32.mrb[0].mxu0
    %v4818 = vadd.f32 0.0, %v4817
    %v4819 = vpop.f32.mrb[0].mxu0
    %v4820 = vadd.f32 0.0, %v4819
    %v4821 = vpop.f32.mrb[0].mxu0
    %v4822 = vadd.f32 0.0, %v4821
    %4823 = vdwg.mxu0
    %4824 = vmatprep.subr.bf16.mxu0 %v3125
    %4825 = vmatpush1.bf16.msra.mxu0 %v3124
    %4826 = vmatprep.subr.bf16.mxu0 %v3221
    %4827 = vmatpush1.bf16.msra.mxu0 %v3220
    %4828 = vmatprep.subr.bf16.mxu0 %v3317
    %4829 = vmatpush1.bf16.msra.mxu0 %v3316
    %4830 = vmatprep.subr.bf16.mxu0 %v3413
    %4831 = vmatpush1.bf16.msra.mxu0 %v3412
    %4832 = vmatprep.subr.bf16.mxu0 %v3509
    %4833 = vmatpush1.bf16.msra.mxu0 %v3508
    %4834 = vmatprep.subr.bf16.mxu0 %v3605
    %4835 = vmatpush1.bf16.msra.mxu0 %v3604
    %4836 = vmatprep.subr.bf16.mxu0 %v3701
    %4837 = vmatpush1.bf16.msra.mxu0 %v3700
    %4838 = vmatprep.subr.bf16.mxu0 %v3797
    %4839 = vmatpush1.bf16.msra.mxu0 %v3796
    %4840 = vmatprep.subr.bf16.mxu0 0
    %4841 = vmatpush1.bf16.msra.mxu0 0
    %4842 = vmatprep.subr.bf16.mxu0 0
    %4843 = vmatpush1.bf16.msra.mxu0 0
    %4844 = vmatprep.subr.bf16.mxu0 0
    %4845 = vmatpush1.bf16.msra.mxu0 0
    %4846 = vmatprep.subr.bf16.mxu0 0
    %4847 = vmatpush1.bf16.msra.mxu0 0
    %4848 = vmatprep.subr.bf16.mxu0 0
    %4849 = vmatpush1.bf16.msra.mxu0 0
    %4850 = vmatprep.subr.bf16.mxu0 0
    %4851 = vmatpush1.bf16.msra.mxu0 0
    %4852 = vmatprep.subr.bf16.mxu0 0
    %4853 = vmatpush1.bf16.msra.mxu0 0
    %4854 = vmatprep.subr.bf16.mxu0 0
    %4855 = vmatpush1.bf16.msra.mxu0 0
    %4856 = vmatprep.mubr.bf16.mxu0 0
    %4857 = vmatmul.mubr.bf16.gmra.mrb[0].mxu0 %v43
    %v4858 = vpop.f32.mrb[0].mxu0
    %v4859 = vadd.f32 0.0, %v4858
    %v4860 = vpop.f32.mrb[0].mxu0
    %v4861 = vadd.f32 0.0, %v4860
    %v4862 = vpop.f32.mrb[0].mxu0
    %v4863 = vadd.f32 0.0, %v4862
    %v4864 = vpop.f32.mrb[0].mxu0
    %v4865 = vadd.f32 0.0, %v4864
    %4866 = vdwg.mxu0
    %4867 = vmatprep.subr.bf16.mxu0 %v3127
    %4868 = vmatpush1.bf16.msra.mxu0 %v3126
    %4869 = vmatprep.subr.bf16.mxu0 %v3223
    %4870 = vmatpush1.bf16.msra.mxu0 %v3222
    %4871 = vmatprep.subr.bf16.mxu0 %v3319
    %4872 = vmatpush1.bf16.msra.mxu0 %v3318
    %4873 = vmatprep.subr.bf16.mxu0 %v3415
    %4874 = vmatpush1.bf16.msra.mxu0 %v3414
    %4875 = vmatprep.subr.bf16.mxu0 %v3511
    %4876 = vmatpush1.bf16.msra.mxu0 %v3510
    %4877 = vmatprep.subr.bf16.mxu0 %v3607
    %4878 = vmatpush1.bf16.msra.mxu0 %v3606
    %4879 = vmatprep.subr.bf16.mxu0 %v3703
    %4880 = vmatpush1.bf16.msra.mxu0 %v3702
    %4881 = vmatprep.subr.bf16.mxu0 %v3799
    %4882 = vmatpush1.bf16.msra.mxu0 %v3798
    %4883 = vmatprep.subr.bf16.mxu0 0
    %4884 = vmatpush1.bf16.msra.mxu0 0
    %4885 = vmatprep.subr.bf16.mxu0 0
    %4886 = vmatpush1.bf16.msra.mxu0 0
    %4887 = vmatprep.subr.bf16.mxu0 0
    %4888 = vmatpush1.bf16.msra.mxu0 0
    %4889 = vmatprep.subr.bf16.mxu0 0
    %4890 = vmatpush1.bf16.msra.mxu0 0
    %4891 = vmatprep.subr.bf16.mxu0 0
    %4892 = vmatpush1.bf16.msra.mxu0 0
    %4893 = vmatprep.subr.bf16.mxu0 0
    %4894 = vmatpush1.bf16.msra.mxu0 0
    %4895 = vmatprep.subr.bf16.mxu0 0
    %4896 = vmatpush1.bf16.msra.mxu0 0
    %4897 = vmatprep.subr.bf16.mxu0 0
    %4898 = vmatpush1.bf16.msra.mxu0 0
    %4899 = vmatprep.mubr.bf16.mxu0 0
    %4900 = vmatmul.mubr.bf16.gmra.mrb[0].mxu0 %v43
    %v4901 = vpop.f32.mrb[0].mxu0
    %v4902 = vadd.f32 0.0, %v4901
    %v4903 = vpop.f32.mrb[0].mxu0
    %v4904 = vadd.f32 0.0, %v4903
    %v4905 = vpop.f32.mrb[0].mxu0
    %v4906 = vadd.f32 0.0, %v4905
    %v4907 = vpop.f32.mrb[0].mxu0
    %v4908 = vadd.f32 0.0, %v4907
    %4909 = vdwg.mxu0
    %4910 = vmatprep.subr.bf16.mxu0 %v3129
    %4911 = vmatpush1.bf16.msra.mxu0 %v3128
    %4912 = vmatprep.subr.bf16.mxu0 %v3225
    %4913 = vmatpush1.bf16.msra.mxu0 %v3224
    %4914 = vmatprep.subr.bf16.mxu0 %v3321
    %4915 = vmatpush1.bf16.msra.mxu0 %v3320
    %4916 = vmatprep.subr.bf16.mxu0 %v3417
    %4917 = vmatpush1.bf16.msra.mxu0 %v3416
    %4918 = vmatprep.subr.bf16.mxu0 %v3513
    %4919 = vmatpush1.bf16.msra.mxu0 %v3512
    %4920 = vmatprep.subr.bf16.mxu0 %v3609
    %4921 = vmatpush1.bf16.msra.mxu0 %v3608
    %4922 = vmatprep.subr.bf16.mxu0 %v3705
    %4923 = vmatpush1.bf16.msra.mxu0 %v3704
    %4924 = vmatprep.subr.bf16.mxu0 %v3801
    %4925 = vmatpush1.bf16.msra.mxu0 %v3800
    %4926 = vmatprep.subr.bf16.mxu0 0
    %4927 = vmatpush1.bf16.msra.mxu0 0
    %4928 = vmatprep.subr.bf16.mxu0 0
    %4929 = vmatpush1.bf16.msra.mxu0 0
    %4930 = vmatprep.subr.bf16.mxu0 0
    %4931 = vmatpush1.bf16.msra.mxu0 0
    %4932 = vmatprep.subr.bf16.mxu0 0
    %4933 = vmatpush1.bf16.msra.mxu0 0
    %4934 = vmatprep.subr.bf16.mxu0 0
    %4935 = vmatpush1.bf16.msra.mxu0 0
    %4936 = vmatprep.subr.bf16.mxu0 0
    %4937 = vmatpush1.bf16.msra.mxu0 0
    %4938 = vmatprep.subr.bf16.mxu0 0
    %4939 = vmatpush1.bf16.msra.mxu0 0
    %4940 = vmatprep.subr.bf16.mxu0 0
    %4941 = vmatpush1.bf16.msra.mxu0 0
    %4942 = vmatprep.mubr.bf16.mxu0 0
    %4943 = vmatmul.mubr.bf16.gmra.mrb[0].mxu0 %v43
    %v4944 = vpop.f32.mrb[0].mxu0
    %v4945 = vadd.f32 0.0, %v4944
    %v4946 = vpop.f32.mrb[0].mxu0
    %v4947 = vadd.f32 0.0, %v4946
    %v4948 = vpop.f32.mrb[0].mxu0
    %v4949 = vadd.f32 0.0, %v4948
    %v4950 = vpop.f32.mrb[0].mxu0
    %v4951 = vadd.f32 0.0, %v4950
    %4952 = vdwg.mxu0
    %4953 = vmatprep.subr.bf16.mxu0 %v3131
    %4954 = vmatpush1.bf16.msra.mxu0 %v3130
    %4955 = vmatprep.subr.bf16.mxu0 %v3227
    %4956 = vmatpush1.bf16.msra.mxu0 %v3226
    %4957 = vmatprep.subr.bf16.mxu0 %v3323
    %4958 = vmatpush1.bf16.msra.mxu0 %v3322
    %4959 = vmatprep.subr.bf16.mxu0 %v3419
    %4960 = vmatpush1.bf16.msra.mxu0 %v3418
    %4961 = vmatprep.subr.bf16.mxu0 %v3515
    %4962 = vmatpush1.bf16.msra.mxu0 %v3514
    %4963 = vmatprep.subr.bf16.mxu0 %v3611
    %4964 = vmatpush1.bf16.msra.mxu0 %v3610
    %4965 = vmatprep.subr.bf16.mxu0 %v3707
    %4966 = vmatpush1.bf16.msra.mxu0 %v3706
    %4967 = vmatprep.subr.bf16.mxu0 %v3803
    %4968 = vmatpush1.bf16.msra.mxu0 %v3802
    %4969 = vmatprep.subr.bf16.mxu0 0
    %4970 = vmatpush1.bf16.msra.mxu0 0
    %4971 = vmatprep.subr.bf16.mxu0 0
    %4972 = vmatpush1.bf16.msra.mxu0 0
    %4973 = vmatprep.subr.bf16.mxu0 0
    %4974 = vmatpush1.bf16.msra.mxu0 0
    %4975 = vmatprep.subr.bf16.mxu0 0
    %4976 = vmatpush1.bf16.msra.mxu0 0
    %4977 = vmatprep.subr.bf16.mxu0 0
    %4978 = vmatpush1.bf16.msra.mxu0 0
    %4979 = vmatprep.subr.bf16.mxu0 0
    %4980 = vmatpush1.bf16.msra.mxu0 0
    %4981 = vmatprep.subr.bf16.mxu0 0
    %4982 = vmatpush1.bf16.msra.mxu0 0
    %4983 = vmatprep.subr.bf16.mxu0 0
    %4984 = vmatpush1.bf16.msra.mxu0 0
    %4985 = vmatprep.mubr.bf16.mxu0 0
    %4986 = vmatmul.mubr.bf16.gmra.mrb[0].mxu0 %v43
    %v4987 = vpop.f32.mrb[0].mxu0
    %v4988 = vadd.f32 0.0, %v4987
    %v4989 = vpop.f32.mrb[0].mxu0
    %v4990 = vadd.f32 0.0, %v4989
    %v4991 = vpop.f32.mrb[0].mxu0
    %v4992 = vadd.f32 0.0, %v4991
    %v4993 = vpop.f32.mrb[0].mxu0
    %v4994 = vadd.f32 0.0, %v4993
    %4995 = vdwg.mxu0
    %4996 = vmatprep.subr.bf16.mxu0 %v3133
    %4997 = vmatpush1.bf16.msra.mxu0 %v3132
    %4998 = vmatprep.subr.bf16.mxu0 %v3229
    %4999 = vmatpush1.bf16.msra.mxu0 %v3228
    %5000 = vmatprep.subr.bf16.mxu0 %v3325
    %5001 = vmatpush1.bf16.msra.mxu0 %v3324
    %5002 = vmatprep.subr.bf16.mxu0 %v3421
    %5003 = vmatpush1.bf16.msra.mxu0 %v3420
    %5004 = vmatprep.subr.bf16.mxu0 %v3517
    %5005 = vmatpush1.bf16.msra.mxu0 %v3516
    %5006 = vmatprep.subr.bf16.mxu0 %v3613
    %5007 = vmatpush1.bf16.msra.mxu0 %v3612
    %5008 = vmatprep.subr.bf16.mxu0 %v3709
    %5009 = vmatpush1.bf16.msra.mxu0 %v3708
    %5010 = vmatprep.subr.bf16.mxu0 %v3805
    %5011 = vmatpush1.bf16.msra.mxu0 %v3804
    %5012 = vmatprep.subr.bf16.mxu0 0
    %5013 = vmatpush1.bf16.msra.mxu0 0
    %5014 = vmatprep.subr.bf16.mxu0 0
    %5015 = vmatpush1.bf16.msra.mxu0 0
    %5016 = vmatprep.subr.bf16.mxu0 0
    %5017 = vmatpush1.bf16.msra.mxu0 0
    %5018 = vmatprep.subr.bf16.mxu0 0
    %5019 = vmatpush1.bf16.msra.mxu0 0
    %5020 = vmatprep.subr.bf16.mxu0 0
    %5021 = vmatpush1.bf16.msra.mxu0 0
    %5022 = vmatprep.subr.bf16.mxu0 0
    %5023 = vmatpush1.bf16.msra.mxu0 0
    %5024 = vmatprep.subr.bf16.mxu0 0
    %5025 = vmatpush1.bf16.msra.mxu0 0
    %5026 = vmatprep.subr.bf16.mxu0 0
    %5027 = vmatpush1.bf16.msra.mxu0 0
    %5028 = vmatprep.mubr.bf16.mxu0 0
    %5029 = vmatmul.mubr.bf16.gmra.mrb[0].mxu0 %v43
    %v5030 = vpop.f32.mrb[0].mxu0
    %v5031 = vadd.f32 0.0, %v5030
    %v5032 = vpop.f32.mrb[0].mxu0
    %v5033 = vadd.f32 0.0, %v5032
    %v5034 = vpop.f32.mrb[0].mxu0
    %v5035 = vadd.f32 0.0, %v5034
    %v5036 = vpop.f32.mrb[0].mxu0
    %v5037 = vadd.f32 0.0, %v5036
    %5038 = vdwg.mxu0
    %5039 = vmatprep.subr.bf16.mxu0 %v3135
    %5040 = vmatpush1.bf16.msra.mxu0 %v3134
    %5041 = vmatprep.subr.bf16.mxu0 %v3231
    %5042 = vmatpush1.bf16.msra.mxu0 %v3230
    %5043 = vmatprep.subr.bf16.mxu0 %v3327
    %5044 = vmatpush1.bf16.msra.mxu0 %v3326
    %5045 = vmatprep.subr.bf16.mxu0 %v3423
    %5046 = vmatpush1.bf16.msra.mxu0 %v3422
    %5047 = vmatprep.subr.bf16.mxu0 %v3519
    %5048 = vmatpush1.bf16.msra.mxu0 %v3518
    %5049 = vmatprep.subr.bf16.mxu0 %v3615
    %5050 = vmatpush1.bf16.msra.mxu0 %v3614
    %5051 = vmatprep.subr.bf16.mxu0 %v3711
    %5052 = vmatpush1.bf16.msra.mxu0 %v3710
    %5053 = vmatprep.subr.bf16.mxu0 %v3807
    %5054 = vmatpush1.bf16.msra.mxu0 %v3806
    %5055 = vmatprep.subr.bf16.mxu0 0
    %5056 = vmatpush1.bf16.msra.mxu0 0
    %5057 = vmatprep.subr.bf16.mxu0 0
    %5058 = vmatpush1.bf16.msra.mxu0 0
    %5059 = vmatprep.subr.bf16.mxu0 0
    %5060 = vmatpush1.bf16.msra.mxu0 0
    %5061 = vmatprep.subr.bf16.mxu0 0
    %5062 = vmatpush1.bf16.msra.mxu0 0
    %5063 = vmatprep.subr.bf16.mxu0 0
    %5064 = vmatpush1.bf16.msra.mxu0 0
    %5065 = vmatprep.subr.bf16.mxu0 0
    %5066 = vmatpush1.bf16.msra.mxu0 0
    %5067 = vmatprep.subr.bf16.mxu0 0
    %5068 = vmatpush1.bf16.msra.mxu0 0
    %5069 = vmatprep.subr.bf16.mxu0 0
    %5070 = vmatpush1.bf16.msra.mxu0 0
    %5071 = vmatprep.mubr.bf16.mxu0 0
    %5072 = vmatmul.mubr.bf16.gmra.mrb[0].mxu0 %v43
    %v5073 = vpop.f32.mrb[0].mxu0
    %v5074 = vadd.f32 0.0, %v5073
    %v5075 = vpop.f32.mrb[0].mxu0
    %v5076 = vadd.f32 0.0, %v5075
    %v5077 = vpop.f32.mrb[0].mxu0
    %v5078 = vadd.f32 0.0, %v5077
    %v5079 = vpop.f32.mrb[0].mxu0
    %v5080 = vadd.f32 0.0, %v5079
    %5081 = vdwg.mxu0
    %5082 = vmatprep.subr.bf16.mxu0 %v3137
    %5083 = vmatpush1.bf16.msra.mxu0 %v3136
    %5084 = vmatprep.subr.bf16.mxu0 %v3233
    %5085 = vmatpush1.bf16.msra.mxu0 %v3232
    %5086 = vmatprep.subr.bf16.mxu0 %v3329
    %5087 = vmatpush1.bf16.msra.mxu0 %v3328
    %5088 = vmatprep.subr.bf16.mxu0 %v3425
    %5089 = vmatpush1.bf16.msra.mxu0 %v3424
    %5090 = vmatprep.subr.bf16.mxu0 %v3521
    %5091 = vmatpush1.bf16.msra.mxu0 %v3520
    %5092 = vmatprep.subr.bf16.mxu0 %v3617
    %5093 = vmatpush1.bf16.msra.mxu0 %v3616
    %5094 = vmatprep.subr.bf16.mxu0 %v3713
    %5095 = vmatpush1.bf16.msra.mxu0 %v3712
    %5096 = vmatprep.subr.bf16.mxu0 %v3809
    %5097 = vmatpush1.bf16.msra.mxu0 %v3808
    %5098 = vmatprep.subr.bf16.mxu0 0
    %5099 = vmatpush1.bf16.msra.mxu0 0
    %5100 = vmatprep.subr.bf16.mxu0 0
    %5101 = vmatpush1.bf16.msra.mxu0 0
    %5102 = vmatprep.subr.bf16.mxu0 0
    %5103 = vmatpush1.bf16.msra.mxu0 0
    %5104 = vmatprep.subr.bf16.mxu0 0
    %5105 = vmatpush1.bf16.msra.mxu0 0
    %5106 = vmatprep.subr.bf16.mxu0 0
    %5107 = vmatpush1.bf16.msra.mxu0 0
    %5108 = vmatprep.subr.bf16.mxu0 0
    %5109 = vmatpush1.bf16.msra.mxu0 0
    %5110 = vmatprep.subr.bf16.mxu0 0
    %5111 = vmatpush1.bf16.msra.mxu0 0
    %5112 = vmatprep.subr.bf16.mxu0 0
    %5113 = vmatpush1.bf16.msra.mxu0 0
    %5114 = vmatprep.mubr.bf16.mxu0 0
    %5115 = vmatmul.mubr.bf16.gmra.mrb[0].mxu0 %v43
    %v5116 = vpop.f32.mrb[0].mxu0
    %v5117 = vadd.f32 0.0, %v5116
    %v5118 = vpop.f32.mrb[0].mxu0
    %v5119 = vadd.f32 0.0, %v5118
    %v5120 = vpop.f32.mrb[0].mxu0
    %v5121 = vadd.f32 0.0, %v5120
    %v5122 = vpop.f32.mrb[0].mxu0
    %v5123 = vadd.f32 0.0, %v5122
    %5124 = vdwg.mxu0
    %5125 = vmatprep.subr.bf16.mxu0 %v3139
    %5126 = vmatpush1.bf16.msra.mxu0 %v3138
    %5127 = vmatprep.subr.bf16.mxu0 %v3235
    %5128 = vmatpush1.bf16.msra.mxu0 %v3234
    %5129 = vmatprep.subr.bf16.mxu0 %v3331
    %5130 = vmatpush1.bf16.msra.mxu0 %v3330
    %5131 = vmatprep.subr.bf16.mxu0 %v3427
    %5132 = vmatpush1.bf16.msra.mxu0 %v3426
    %5133 = vmatprep.subr.bf16.mxu0 %v3523
    %5134 = vmatpush1.bf16.msra.mxu0 %v3522
    %5135 = vmatprep.subr.bf16.mxu0 %v3619
    %5136 = vmatpush1.bf16.msra.mxu0 %v3618
    %5137 = vmatprep.subr.bf16.mxu0 %v3715
    %5138 = vmatpush1.bf16.msra.mxu0 %v3714
    %5139 = vmatprep.subr.bf16.mxu0 %v3811
    %5140 = vmatpush1.bf16.msra.mxu0 %v3810
    %5141 = vmatprep.subr.bf16.mxu0 0
    %5142 = vmatpush1.bf16.msra.mxu0 0
    %5143 = vmatprep.subr.bf16.mxu0 0
    %5144 = vmatpush1.bf16.msra.mxu0 0
    %5145 = vmatprep.subr.bf16.mxu0 0
    %5146 = vmatpush1.bf16.msra.mxu0 0
    %5147 = vmatprep.subr.bf16.mxu0 0
    %5148 = vmatpush1.bf16.msra.mxu0 0
    %5149 = vmatprep.subr.bf16.mxu0 0
    %5150 = vmatpush1.bf16.msra.mxu0 0
    %5151 = vmatprep.subr.bf16.mxu0 0
    %5152 = vmatpush1.bf16.msra.mxu0 0
    %5153 = vmatprep.subr.bf16.mxu0 0
    %5154 = vmatpush1.bf16.msra.mxu0 0
    %5155 = vmatprep.subr.bf16.mxu0 0
    %5156 = vmatpush1.bf16.msra.mxu0 0
    %5157 = vmatprep.mubr.bf16.mxu0 0
    %5158 = vmatmul.mubr.bf16.gmra.mrb[0].mxu0 %v43
    %v5159 = vpop.f32.mrb[0].mxu0
    %v5160 = vadd.f32 0.0, %v5159
    %v5161 = vpop.f32.mrb[0].mxu0
    %v5162 = vadd.f32 0.0, %v5161
    %v5163 = vpop.f32.mrb[0].mxu0
    %v5164 = vadd.f32 0.0, %v5163
    %v5165 = vpop.f32.mrb[0].mxu0
    %v5166 = vadd.f32 0.0, %v5165
    %5167 = vdwg.mxu0
    %5168 = vmatprep.subr.bf16.mxu0 %v3141
    %5169 = vmatpush1.bf16.msra.mxu0 %v3140
    %5170 = vmatprep.subr.bf16.mxu0 %v3237
    %5171 = vmatpush1.bf16.msra.mxu0 %v3236
    %5172 = vmatprep.subr.bf16.mxu0 %v3333
    %5173 = vmatpush1.bf16.msra.mxu0 %v3332
    %5174 = vmatprep.subr.bf16.mxu0 %v3429
    %5175 = vmatpush1.bf16.msra.mxu0 %v3428
    %5176 = vmatprep.subr.bf16.mxu0 %v3525
    %5177 = vmatpush1.bf16.msra.mxu0 %v3524
    %5178 = vmatprep.subr.bf16.mxu0 %v3621
    %5179 = vmatpush1.bf16.msra.mxu0 %v3620
    %5180 = vmatprep.subr.bf16.mxu0 %v3717
    %5181 = vmatpush1.bf16.msra.mxu0 %v3716
    %5182 = vmatprep.subr.bf16.mxu0 %v3813
    %5183 = vmatpush1.bf16.msra.mxu0 %v3812
    %5184 = vmatprep.subr.bf16.mxu0 0
    %5185 = vmatpush1.bf16.msra.mxu0 0
    %5186 = vmatprep.subr.bf16.mxu0 0
    %5187 = vmatpush1.bf16.msra.mxu0 0
    %5188 = vmatprep.subr.bf16.mxu0 0
    %5189 = vmatpush1.bf16.msra.mxu0 0
    %5190 = vmatprep.subr.bf16.mxu0 0
    %5191 = vmatpush1.bf16.msra.mxu0 0
    %5192 = vmatprep.subr.bf16.mxu0 0
    %5193 = vmatpush1.bf16.msra.mxu0 0
    %5194 = vmatprep.subr.bf16.mxu0 0
    %5195 = vmatpush1.bf16.msra.mxu0 0
    %5196 = vmatprep.subr.bf16.mxu0 0
    %5197 = vmatpush1.bf16.msra.mxu0 0
    %5198 = vmatprep.subr.bf16.mxu0 0
    %5199 = vmatpush1.bf16.msra.mxu0 0
    %5200 = vmatprep.mubr.bf16.mxu0 0
    %5201 = vmatmul.mubr.bf16.gmra.mrb[0].mxu0 %v43
    %v5202 = vpop.f32.mrb[0].mxu0
    %v5203 = vadd.f32 0.0, %v5202
    %v5204 = vpop.f32.mrb[0].mxu0
    %v5205 = vadd.f32 0.0, %v5204
    %v5206 = vpop.f32.mrb[0].mxu0
    %v5207 = vadd.f32 0.0, %v5206
    %v5208 = vpop.f32.mrb[0].mxu0
    %v5209 = vadd.f32 0.0, %v5208
    %5210 = vdwg.mxu0
    %5211 = vmatprep.subr.bf16.mxu0 %v3143
    %5212 = vmatpush1.bf16.msra.mxu0 %v3142
    %5213 = vmatprep.subr.bf16.mxu0 %v3239
    %5214 = vmatpush1.bf16.msra.mxu0 %v3238
    %5215 = vmatprep.subr.bf16.mxu0 %v3335
    %5216 = vmatpush1.bf16.msra.mxu0 %v3334
    %5217 = vmatprep.subr.bf16.mxu0 %v3431
    %5218 = vmatpush1.bf16.msra.mxu0 %v3430
    %5219 = vmatprep.subr.bf16.mxu0 %v3527
    %5220 = vmatpush1.bf16.msra.mxu0 %v3526
    %5221 = vmatprep.subr.bf16.mxu0 %v3623
    %5222 = vmatpush1.bf16.msra.mxu0 %v3622
    %5223 = vmatprep.subr.bf16.mxu0 %v3719
    %5224 = vmatpush1.bf16.msra.mxu0 %v3718
    %5225 = vmatprep.subr.bf16.mxu0 %v3815
    %5226 = vmatpush1.bf16.msra.mxu0 %v3814
    %5227 = vmatprep.subr.bf16.mxu0 0
    %5228 = vmatpush1.bf16.msra.mxu0 0
    %5229 = vmatprep.subr.bf16.mxu0 0
    %5230 = vmatpush1.bf16.msra.mxu0 0
    %5231 = vmatprep.subr.bf16.mxu0 0
    %5232 = vmatpush1.bf16.msra.mxu0 0
    %5233 = vmatprep.subr.bf16.mxu0 0
    %5234 = vmatpush1.bf16.msra.mxu0 0
    %5235 = vmatprep.subr.bf16.mxu0 0
    %5236 = vmatpush1.bf16.msra.mxu0 0
    %5237 = vmatprep.subr.bf16.mxu0 0
    %5238 = vmatpush1.bf16.msra.mxu0 0
    %5239 = vmatprep.subr.bf16.mxu0 0
    %5240 = vmatpush1.bf16.msra.mxu0 0
    %5241 = vmatprep.subr.bf16.mxu0 0
    %5242 = vmatpush1.bf16.msra.mxu0 0
    %5243 = vmatprep.mubr.bf16.mxu0 0
    %5244 = vmatmul.mubr.bf16.gmra.mrb[0].mxu0 %v43
    %v5245 = vpop.f32.mrb[0].mxu0
    %v5246 = vadd.f32 0.0, %v5245
    %v5247 = vpop.f32.mrb[0].mxu0
    %v5248 = vadd.f32 0.0, %v5247
    %v5249 = vpop.f32.mrb[0].mxu0
    %v5250 = vadd.f32 0.0, %v5249
    %v5251 = vpop.f32.mrb[0].mxu0
    %v5252 = vadd.f32 0.0, %v5251
    %5253 = vdwg.mxu0
    %5254 = vmatprep.subr.bf16.mxu0 %v3145
    %5255 = vmatpush1.bf16.msra.mxu0 %v3144
    %5256 = vmatprep.subr.bf16.mxu0 %v3241
    %5257 = vmatpush1.bf16.msra.mxu0 %v3240
    %5258 = vmatprep.subr.bf16.mxu0 %v3337
    %5259 = vmatpush1.bf16.msra.mxu0 %v3336
    %5260 = vmatprep.subr.bf16.mxu0 %v3433
    %5261 = vmatpush1.bf16.msra.mxu0 %v3432
    %5262 = vmatprep.subr.bf16.mxu0 %v3529
    %5263 = vmatpush1.bf16.msra.mxu0 %v3528
    %5264 = vmatprep.subr.bf16.mxu0 %v3625
    %5265 = vmatpush1.bf16.msra.mxu0 %v3624
    %5266 = vmatprep.subr.bf16.mxu0 %v3721
    %5267 = vmatpush1.bf16.msra.mxu0 %v3720
    %5268 = vmatprep.subr.bf16.mxu0 %v3817
    %5269 = vmatpush1.bf16.msra.mxu0 %v3816
    %5270 = vmatprep.subr.bf16.mxu0 0
    %5271 = vmatpush1.bf16.msra.mxu0 0
    %5272 = vmatprep.subr.bf16.mxu0 0
    %5273 = vmatpush1.bf16.msra.mxu0 0
    %5274 = vmatprep.subr.bf16.mxu0 0
    %5275 = vmatpush1.bf16.msra.mxu0 0
    %5276 = vmatprep.subr.bf16.mxu0 0
    %5277 = vmatpush1.bf16.msra.mxu0 0
    %5278 = vmatprep.subr.bf16.mxu0 0
    %5279 = vmatpush1.bf16.msra.mxu0 0
    %5280 = vmatprep.subr.bf16.mxu0 0
    %5281 = vmatpush1.bf16.msra.mxu0 0
    %5282 = vmatprep.subr.bf16.mxu0 0
    %5283 = vmatpush1.bf16.msra.mxu0 0
    %5284 = vmatprep.subr.bf16.mxu0 0
    %5285 = vmatpush1.bf16.msra.mxu0 0
    %5286 = vmatprep.mubr.bf16.mxu0 0
    %5287 = vmatmul.mubr.bf16.gmra.mrb[0].mxu0 %v43
    %v5288 = vpop.f32.mrb[0].mxu0
    %v5289 = vadd.f32 0.0, %v5288
    %v5290 = vpop.f32.mrb[0].mxu0
    %v5291 = vadd.f32 0.0, %v5290
    %v5292 = vpop.f32.mrb[0].mxu0
    %v5293 = vadd.f32 0.0, %v5292
    %v5294 = vpop.f32.mrb[0].mxu0
    %v5295 = vadd.f32 0.0, %v5294
    %5296 = vdwg.mxu0
    %5297 = vmatprep.subr.bf16.mxu0 %v3147
    %5298 = vmatpush1.bf16.msra.mxu0 %v3146
    %5299 = vmatprep.subr.bf16.mxu0 %v3243
    %5300 = vmatpush1.bf16.msra.mxu0 %v3242
    %5301 = vmatprep.subr.bf16.mxu0 %v3339
    %5302 = vmatpush1.bf16.msra.mxu0 %v3338
    %5303 = vmatprep.subr.bf16.mxu0 %v3435
    %5304 = vmatpush1.bf16.msra.mxu0 %v3434
    %5305 = vmatprep.subr.bf16.mxu0 %v3531
    %5306 = vmatpush1.bf16.msra.mxu0 %v3530
    %5307 = vmatprep.subr.bf16.mxu0 %v3627
    %5308 = vmatpush1.bf16.msra.mxu0 %v3626
    %5309 = vmatprep.subr.bf16.mxu0 %v3723
    %5310 = vmatpush1.bf16.msra.mxu0 %v3722
    %5311 = vmatprep.subr.bf16.mxu0 %v3819
    %5312 = vmatpush1.bf16.msra.mxu0 %v3818
    %5313 = vmatprep.subr.bf16.mxu0 0
    %5314 = vmatpush1.bf16.msra.mxu0 0
    %5315 = vmatprep.subr.bf16.mxu0 0
    %5316 = vmatpush1.bf16.msra.mxu0 0
    %5317 = vmatprep.subr.bf16.mxu0 0
    %5318 = vmatpush1.bf16.msra.mxu0 0
    %5319 = vmatprep.subr.bf16.mxu0 0
    %5320 = vmatpush1.bf16.msra.mxu0 0
    %5321 = vmatprep.subr.bf16.mxu0 0
    %5322 = vmatpush1.bf16.msra.mxu0 0
    %5323 = vmatprep.subr.bf16.mxu0 0
    %5324 = vmatpush1.bf16.msra.mxu0 0
    %5325 = vmatprep.subr.bf16.mxu0 0
    %5326 = vmatpush1.bf16.msra.mxu0 0
    %5327 = vmatprep.subr.bf16.mxu0 0
    %5328 = vmatpush1.bf16.msra.mxu0 0
    %5329 = vmatprep.mubr.bf16.mxu0 0
    %5330 = vmatmul.mubr.bf16.gmra.mrb[0].mxu0 %v43
    %v5331 = vpop.f32.mrb[0].mxu0
    %v5332 = vadd.f32 0.0, %v5331
    %v5333 = vpop.f32.mrb[0].mxu0
    %v5334 = vadd.f32 0.0, %v5333
    %v5335 = vpop.f32.mrb[0].mxu0
    %v5336 = vadd.f32 0.0, %v5335
    %v5337 = vpop.f32.mrb[0].mxu0
    %v5338 = vadd.f32 0.0, %v5337
    %5339 = vdwg.mxu0
    %5340 = vmatprep.subr.bf16.mxu0 %v3149
    %5341 = vmatpush1.bf16.msra.mxu0 %v3148
    %5342 = vmatprep.subr.bf16.mxu0 %v3245
    %5343 = vmatpush1.bf16.msra.mxu0 %v3244
    %5344 = vmatprep.subr.bf16.mxu0 %v3341
    %5345 = vmatpush1.bf16.msra.mxu0 %v3340
    %5346 = vmatprep.subr.bf16.mxu0 %v3437
    %5347 = vmatpush1.bf16.msra.mxu0 %v3436
    %5348 = vmatprep.subr.bf16.mxu0 %v3533
    %5349 = vmatpush1.bf16.msra.mxu0 %v3532
    %5350 = vmatprep.subr.bf16.mxu0 %v3629
    %5351 = vmatpush1.bf16.msra.mxu0 %v3628
    %5352 = vmatprep.subr.bf16.mxu0 %v3725
    %5353 = vmatpush1.bf16.msra.mxu0 %v3724
    %5354 = vmatprep.subr.bf16.mxu0 %v3821
    %5355 = vmatpush1.bf16.msra.mxu0 %v3820
    %5356 = vmatprep.subr.bf16.mxu0 0
    %5357 = vmatpush1.bf16.msra.mxu0 0
    %5358 = vmatprep.subr.bf16.mxu0 0
    %5359 = vmatpush1.bf16.msra.mxu0 0
    %5360 = vmatprep.subr.bf16.mxu0 0
    %5361 = vmatpush1.bf16.msra.mxu0 0
    %5362 = vmatprep.subr.bf16.mxu0 0
    %5363 = vmatpush1.bf16.msra.mxu0 0
    %5364 = vmatprep.subr.bf16.mxu0 0
    %5365 = vmatpush1.bf16.msra.mxu0 0
    %5366 = vmatprep.subr.bf16.mxu0 0
    %5367 = vmatpush1.bf16.msra.mxu0 0
    %5368 = vmatprep.subr.bf16.mxu0 0
    %5369 = vmatpush1.bf16.msra.mxu0 0
    %5370 = vmatprep.subr.bf16.mxu0 0
    %5371 = vmatpush1.bf16.msra.mxu0 0
    %5372 = vmatprep.mubr.bf16.mxu0 0
    %5373 = vmatmul.mubr.bf16.gmra.mrb[0].mxu0 %v43
    %v5374 = vpop.f32.mrb[0].mxu0
    %v5375 = vadd.f32 0.0, %v5374
    %v5376 = vpop.f32.mrb[0].mxu0
    %v5377 = vadd.f32 0.0, %v5376
    %v5378 = vpop.f32.mrb[0].mxu0
    %v5379 = vadd.f32 0.0, %v5378
    %v5380 = vpop.f32.mrb[0].mxu0
    %v5381 = vadd.f32 0.0, %v5380
    %5382 = vdwg.mxu0
    %5383 = vmatprep.subr.bf16.mxu0 %v3151
    %5384 = vmatpush1.bf16.msra.mxu0 %v3150
    %5385 = vmatprep.subr.bf16.mxu0 %v3247
    %5386 = vmatpush1.bf16.msra.mxu0 %v3246
    %5387 = vmatprep.subr.bf16.mxu0 %v3343
    %5388 = vmatpush1.bf16.msra.mxu0 %v3342
    %5389 = vmatprep.subr.bf16.mxu0 %v3439
    %5390 = vmatpush1.bf16.msra.mxu0 %v3438
    %5391 = vmatprep.subr.bf16.mxu0 %v3535
    %5392 = vmatpush1.bf16.msra.mxu0 %v3534
    %5393 = vmatprep.subr.bf16.mxu0 %v3631
    %5394 = vmatpush1.bf16.msra.mxu0 %v3630
    %5395 = vmatprep.subr.bf16.mxu0 %v3727
    %5396 = vmatpush1.bf16.msra.mxu0 %v3726
    %5397 = vmatprep.subr.bf16.mxu0 %v3823
    %5398 = vmatpush1.bf16.msra.mxu0 %v3822
    %5399 = vmatprep.subr.bf16.mxu0 0
    %5400 = vmatpush1.bf16.msra.mxu0 0
    %5401 = vmatprep.subr.bf16.mxu0 0
    %5402 = vmatpush1.bf16.msra.mxu0 0
    %5403 = vmatprep.subr.bf16.mxu0 0
    %5404 = vmatpush1.bf16.msra.mxu0 0
    %5405 = vmatprep.subr.bf16.mxu0 0
    %5406 = vmatpush1.bf16.msra.mxu0 0
    %5407 = vmatprep.subr.bf16.mxu0 0
    %5408 = vmatpush1.bf16.msra.mxu0 0
    %5409 = vmatprep.subr.bf16.mxu0 0
    %5410 = vmatpush1.bf16.msra.mxu0 0
    %5411 = vmatprep.subr.bf16.mxu0 0
    %5412 = vmatpush1.bf16.msra.mxu0 0
    %5413 = vmatprep.subr.bf16.mxu0 0
    %5414 = vmatpush1.bf16.msra.mxu0 0
    %5415 = vmatprep.mubr.bf16.mxu0 0
    %5416 = vmatmul.mubr.bf16.gmra.mrb[0].mxu0 %v43
    %v5417 = vpop.f32.mrb[0].mxu0
    %v5418 = vadd.f32 0.0, %v5417
    %v5419 = vpop.f32.mrb[0].mxu0
    %v5420 = vadd.f32 0.0, %v5419
    %v5421 = vpop.f32.mrb[0].mxu0
    %v5422 = vadd.f32 0.0, %v5421
    %v5423 = vpop.f32.mrb[0].mxu0
    %v5424 = vadd.f32 0.0, %v5423
    %5425 = vdwg.mxu0
    %5426 = vmatprep.subr.bf16.mxu0 %v3153
    %5427 = vmatpush1.bf16.msra.mxu0 %v3152
    %5428 = vmatprep.subr.bf16.mxu0 %v3249
    %5429 = vmatpush1.bf16.msra.mxu0 %v3248
    %5430 = vmatprep.subr.bf16.mxu0 %v3345
    %5431 = vmatpush1.bf16.msra.mxu0 %v3344
    %5432 = vmatprep.subr.bf16.mxu0 %v3441
    %5433 = vmatpush1.bf16.msra.mxu0 %v3440
    %5434 = vmatprep.subr.bf16.mxu0 %v3537
    %5435 = vmatpush1.bf16.msra.mxu0 %v3536
    %5436 = vmatprep.subr.bf16.mxu0 %v3633
    %5437 = vmatpush1.bf16.msra.mxu0 %v3632
    %5438 = vmatprep.subr.bf16.mxu0 %v3729
    %5439 = vmatpush1.bf16.msra.mxu0 %v3728
    %5440 = vmatprep.subr.bf16.mxu0 %v3825
    %5441 = vmatpush1.bf16.msra.mxu0 %v3824
    %5442 = vmatprep.subr.bf16.mxu0 0
    %5443 = vmatpush1.bf16.msra.mxu0 0
    %5444 = vmatprep.subr.bf16.mxu0 0
    %5445 = vmatpush1.bf16.msra.mxu0 0
    %5446 = vmatprep.subr.bf16.mxu0 0
    %5447 = vmatpush1.bf16.msra.mxu0 0
    %5448 = vmatprep.subr.bf16.mxu0 0
    %5449 = vmatpush1.bf16.msra.mxu0 0
    %5450 = vmatprep.subr.bf16.mxu0 0
    %5451 = vmatpush1.bf16.msra.mxu0 0
    %5452 = vmatprep.subr.bf16.mxu0 0
    %5453 = vmatpush1.bf16.msra.mxu0 0
    %5454 = vmatprep.subr.bf16.mxu0 0
    %5455 = vmatpush1.bf16.msra.mxu0 0
    %5456 = vmatprep.subr.bf16.mxu0 0
    %5457 = vmatpush1.bf16.msra.mxu0 0
    %5458 = vmatprep.mubr.bf16.mxu0 0
    %5459 = vmatmul.mubr.bf16.gmra.mrb[0].mxu0 %v43
    %v5460 = vpop.f32.mrb[0].mxu0
    %v5461 = vadd.f32 0.0, %v5460
    %v5462 = vpop.f32.mrb[0].mxu0
    %v5463 = vadd.f32 0.0, %v5462
    %v5464 = vpop.f32.mrb[0].mxu0
    %v5465 = vadd.f32 0.0, %v5464
    %v5466 = vpop.f32.mrb[0].mxu0
    %v5467 = vadd.f32 0.0, %v5466
    %5468 = vdwg.mxu0
    %5469 = vmatprep.subr.bf16.mxu0 %v3155
    %5470 = vmatpush1.bf16.msra.mxu0 %v3154
    %5471 = vmatprep.subr.bf16.mxu0 %v3251
    %5472 = vmatpush1.bf16.msra.mxu0 %v3250
    %5473 = vmatprep.subr.bf16.mxu0 %v3347
    %5474 = vmatpush1.bf16.msra.mxu0 %v3346
    %5475 = vmatprep.subr.bf16.mxu0 %v3443
    %5476 = vmatpush1.bf16.msra.mxu0 %v3442
    %5477 = vmatprep.subr.bf16.mxu0 %v3539
    %5478 = vmatpush1.bf16.msra.mxu0 %v3538
    %5479 = vmatprep.subr.bf16.mxu0 %v3635
    %5480 = vmatpush1.bf16.msra.mxu0 %v3634
    %5481 = vmatprep.subr.bf16.mxu0 %v3731
    %5482 = vmatpush1.bf16.msra.mxu0 %v3730
    %5483 = vmatprep.subr.bf16.mxu0 %v3827
    %5484 = vmatpush1.bf16.msra.mxu0 %v3826
    %5485 = vmatprep.subr.bf16.mxu0 0
    %5486 = vmatpush1.bf16.msra.mxu0 0
    %5487 = vmatprep.subr.bf16.mxu0 0
    %5488 = vmatpush1.bf16.msra.mxu0 0
    %5489 = vmatprep.subr.bf16.mxu0 0
    %5490 = vmatpush1.bf16.msra.mxu0 0
    %5491 = vmatprep.subr.bf16.mxu0 0
    %5492 = vmatpush1.bf16.msra.mxu0 0
    %5493 = vmatprep.subr.bf16.mxu0 0
    %5494 = vmatpush1.bf16.msra.mxu0 0
    %5495 = vmatprep.subr.bf16.mxu0 0
    %5496 = vmatpush1.bf16.msra.mxu0 0
    %5497 = vmatprep.subr.bf16.mxu0 0
    %5498 = vmatpush1.bf16.msra.mxu0 0
    %5499 = vmatprep.subr.bf16.mxu0 0
    %5500 = vmatpush1.bf16.msra.mxu0 0
    %5501 = vmatprep.mubr.bf16.mxu0 0
    %5502 = vmatmul.mubr.bf16.gmra.mrb[0].mxu0 %v43
    %v5503 = vpop.f32.mrb[0].mxu0
    %v5504 = vadd.f32 0.0, %v5503
    %v5505 = vpop.f32.mrb[0].mxu0
    %v5506 = vadd.f32 0.0, %v5505
    %v5507 = vpop.f32.mrb[0].mxu0
    %v5508 = vadd.f32 0.0, %v5507
    %v5509 = vpop.f32.mrb[0].mxu0
    %v5510 = vadd.f32 0.0, %v5509
    %5511 = vdwg.mxu0
    %5512 = vmatprep.subr.bf16.mxu0 %v3157
    %5513 = vmatpush1.bf16.msra.mxu0 %v3156
    %5514 = vmatprep.subr.bf16.mxu0 %v3253
    %5515 = vmatpush1.bf16.msra.mxu0 %v3252
    %5516 = vmatprep.subr.bf16.mxu0 %v3349
    %5517 = vmatpush1.bf16.msra.mxu0 %v3348
    %5518 = vmatprep.subr.bf16.mxu0 %v3445
    %5519 = vmatpush1.bf16.msra.mxu0 %v3444
    %5520 = vmatprep.subr.bf16.mxu0 %v3541
    %5521 = vmatpush1.bf16.msra.mxu0 %v3540
    %5522 = vmatprep.subr.bf16.mxu0 %v3637
    %5523 = vmatpush1.bf16.msra.mxu0 %v3636
    %5524 = vmatprep.subr.bf16.mxu0 %v3733
    %5525 = vmatpush1.bf16.msra.mxu0 %v3732
    %5526 = vmatprep.subr.bf16.mxu0 %v3829
    %5527 = vmatpush1.bf16.msra.mxu0 %v3828
    %5528 = vmatprep.subr.bf16.mxu0 0
    %5529 = vmatpush1.bf16.msra.mxu0 0
    %5530 = vmatprep.subr.bf16.mxu0 0
    %5531 = vmatpush1.bf16.msra.mxu0 0
    %5532 = vmatprep.subr.bf16.mxu0 0
    %5533 = vmatpush1.bf16.msra.mxu0 0
    %5534 = vmatprep.subr.bf16.mxu0 0
    %5535 = vmatpush1.bf16.msra.mxu0 0
    %5536 = vmatprep.subr.bf16.mxu0 0
    %5537 = vmatpush1.bf16.msra.mxu0 0
    %5538 = vmatprep.subr.bf16.mxu0 0
    %5539 = vmatpush1.bf16.msra.mxu0 0
    %5540 = vmatprep.subr.bf16.mxu0 0
    %5541 = vmatpush1.bf16.msra.mxu0 0
    %5542 = vmatprep.subr.bf16.mxu0 0
    %5543 = vmatpush1.bf16.msra.mxu0 0
    %5544 = vmatprep.mubr.bf16.mxu0 0
    %5545 = vmatmul.mubr.bf16.gmra.mrb[0].mxu0 %v43
    %v5546 = vpop.f32.mrb[0].mxu0
    %v5547 = vadd.f32 0.0, %v5546
    %v5548 = vpop.f32.mrb[0].mxu0
    %v5549 = vadd.f32 0.0, %v5548
    %v5550 = vpop.f32.mrb[0].mxu0
    %v5551 = vadd.f32 0.0, %v5550
    %v5552 = vpop.f32.mrb[0].mxu0
    %v5553 = vadd.f32 0.0, %v5552
    %5554 = vdwg.mxu0
    %5555 = vmatprep.subr.bf16.mxu0 %v3159
    %5556 = vmatpush1.bf16.msra.mxu0 %v3158
    %5557 = vmatprep.subr.bf16.mxu0 %v3255
    %5558 = vmatpush1.bf16.msra.mxu0 %v3254
    %5559 = vmatprep.subr.bf16.mxu0 %v3351
    %5560 = vmatpush1.bf16.msra.mxu0 %v3350
    %5561 = vmatprep.subr.bf16.mxu0 %v3447
    %5562 = vmatpush1.bf16.msra.mxu0 %v3446
    %5563 = vmatprep.subr.bf16.mxu0 %v3543
    %5564 = vmatpush1.bf16.msra.mxu0 %v3542
    %5565 = vmatprep.subr.bf16.mxu0 %v3639
    %5566 = vmatpush1.bf16.msra.mxu0 %v3638
    %5567 = vmatprep.subr.bf16.mxu0 %v3735
    %5568 = vmatpush1.bf16.msra.mxu0 %v3734
    %5569 = vmatprep.subr.bf16.mxu0 %v3831
    %5570 = vmatpush1.bf16.msra.mxu0 %v3830
    %5571 = vmatprep.subr.bf16.mxu0 0
    %5572 = vmatpush1.bf16.msra.mxu0 0
    %5573 = vmatprep.subr.bf16.mxu0 0
    %5574 = vmatpush1.bf16.msra.mxu0 0
    %5575 = vmatprep.subr.bf16.mxu0 0
    %5576 = vmatpush1.bf16.msra.mxu0 0
    %5577 = vmatprep.subr.bf16.mxu0 0
    %5578 = vmatpush1.bf16.msra.mxu0 0
    %5579 = vmatprep.subr.bf16.mxu0 0
    %5580 = vmatpush1.bf16.msra.mxu0 0
    %5581 = vmatprep.subr.bf16.mxu0 0
    %5582 = vmatpush1.bf16.msra.mxu0 0
    %5583 = vmatprep.subr.bf16.mxu0 0
    %5584 = vmatpush1.bf16.msra.mxu0 0
    %5585 = vmatprep.subr.bf16.mxu0 0
    %5586 = vmatpush1.bf16.msra.mxu0 0
    %5587 = vmatprep.mubr.bf16.mxu0 0
    %5588 = vmatmul.mubr.bf16.gmra.mrb[0].mxu0 %v43
    %v5589 = vpop.f32.mrb[0].mxu0
    %v5590 = vadd.f32 0.0, %v5589
    %v5591 = vpop.f32.mrb[0].mxu0
    %v5592 = vadd.f32 0.0, %v5591
    %v5593 = vpop.f32.mrb[0].mxu0
    %v5594 = vadd.f32 0.0, %v5593
    %v5595 = vpop.f32.mrb[0].mxu0
    %v5596 = vadd.f32 0.0, %v5595
    %5597 = vdwg.mxu0
    %5598 = vmatprep.subr.bf16.mxu0 %v3161
    %5599 = vmatpush1.bf16.msra.mxu0 %v3160
    %5600 = vmatprep.subr.bf16.mxu0 %v3257
    %5601 = vmatpush1.bf16.msra.mxu0 %v3256
    %5602 = vmatprep.subr.bf16.mxu0 %v3353
    %5603 = vmatpush1.bf16.msra.mxu0 %v3352
    %5604 = vmatprep.subr.bf16.mxu0 %v3449
    %5605 = vmatpush1.bf16.msra.mxu0 %v3448
    %5606 = vmatprep.subr.bf16.mxu0 %v3545
    %5607 = vmatpush1.bf16.msra.mxu0 %v3544
    %5608 = vmatprep.subr.bf16.mxu0 %v3641
    %5609 = vmatpush1.bf16.msra.mxu0 %v3640
    %5610 = vmatprep.subr.bf16.mxu0 %v3737
    %5611 = vmatpush1.bf16.msra.mxu0 %v3736
    %5612 = vmatprep.subr.bf16.mxu0 %v3833
    %5613 = vmatpush1.bf16.msra.mxu0 %v3832
    %5614 = vmatprep.subr.bf16.mxu0 0
    %5615 = vmatpush1.bf16.msra.mxu0 0
    %5616 = vmatprep.subr.bf16.mxu0 0
    %5617 = vmatpush1.bf16.msra.mxu0 0
    %5618 = vmatprep.subr.bf16.mxu0 0
    %5619 = vmatpush1.bf16.msra.mxu0 0
    %5620 = vmatprep.subr.bf16.mxu0 0
    %5621 = vmatpush1.bf16.msra.mxu0 0
    %5622 = vmatprep.subr.bf16.mxu0 0
    %5623 = vmatpush1.bf16.msra.mxu0 0
    %5624 = vmatprep.subr.bf16.mxu0 0
    %5625 = vmatpush1.bf16.msra.mxu0 0
    %5626 = vmatprep.subr.bf16.mxu0 0
    %5627 = vmatpush1.bf16.msra.mxu0 0
    %5628 = vmatprep.subr.bf16.mxu0 0
    %5629 = vmatpush1.bf16.msra.mxu0 0
    %5630 = vmatprep.mubr.bf16.mxu0 0
    %5631 = vmatmul.mubr.bf16.gmra.mrb[0].mxu0 %v43
    %v5632 = vpop.f32.mrb[0].mxu0
    %v5633 = vadd.f32 0.0, %v5632
    %v5634 = vpop.f32.mrb[0].mxu0
    %v5635 = vadd.f32 0.0, %v5634
    %v5636 = vpop.f32.mrb[0].mxu0
    %v5637 = vadd.f32 0.0, %v5636
    %v5638 = vpop.f32.mrb[0].mxu0
    %v5639 = vadd.f32 0.0, %v5638
    %5640 = vdwg.mxu0
    %5641 = vmatprep.subr.bf16.mxu0 %v3163
    %5642 = vmatpush1.bf16.msra.mxu0 %v3162
    %5643 = vmatprep.subr.bf16.mxu0 %v3259
    %5644 = vmatpush1.bf16.msra.mxu0 %v3258
    %5645 = vmatprep.subr.bf16.mxu0 %v3355
    %5646 = vmatpush1.bf16.msra.mxu0 %v3354
    %5647 = vmatprep.subr.bf16.mxu0 %v3451
    %5648 = vmatpush1.bf16.msra.mxu0 %v3450
    %5649 = vmatprep.subr.bf16.mxu0 %v3547
    %5650 = vmatpush1.bf16.msra.mxu0 %v3546
    %5651 = vmatprep.subr.bf16.mxu0 %v3643
    %5652 = vmatpush1.bf16.msra.mxu0 %v3642
    %5653 = vmatprep.subr.bf16.mxu0 %v3739
    %5654 = vmatpush1.bf16.msra.mxu0 %v3738
    %5655 = vmatprep.subr.bf16.mxu0 %v3835
    %5656 = vmatpush1.bf16.msra.mxu0 %v3834
    %5657 = vmatprep.subr.bf16.mxu0 0
    %5658 = vmatpush1.bf16.msra.mxu0 0
    %5659 = vmatprep.subr.bf16.mxu0 0
    %5660 = vmatpush1.bf16.msra.mxu0 0
    %5661 = vmatprep.subr.bf16.mxu0 0
    %5662 = vmatpush1.bf16.msra.mxu0 0
    %5663 = vmatprep.subr.bf16.mxu0 0
    %5664 = vmatpush1.bf16.msra.mxu0 0
    %5665 = vmatprep.subr.bf16.mxu0 0
    %5666 = vmatpush1.bf16.msra.mxu0 0
    %5667 = vmatprep.subr.bf16.mxu0 0
    %5668 = vmatpush1.bf16.msra.mxu0 0
    %5669 = vmatprep.subr.bf16.mxu0 0
    %5670 = vmatpush1.bf16.msra.mxu0 0
    %5671 = vmatprep.subr.bf16.mxu0 0
    %5672 = vmatpush1.bf16.msra.mxu0 0
    %5673 = vmatprep.mubr.bf16.mxu0 0
    %5674 = vmatmul.mubr.bf16.gmra.mrb[0].mxu0 %v43
    %v5675 = vpop.f32.mrb[0].mxu0
    %v5676 = vadd.f32 0.0, %v5675
    %v5677 = vpop.f32.mrb[0].mxu0
    %v5678 = vadd.f32 0.0, %v5677
    %v5679 = vpop.f32.mrb[0].mxu0
    %v5680 = vadd.f32 0.0, %v5679
    %v5681 = vpop.f32.mrb[0].mxu0
    %v5682 = vadd.f32 0.0, %v5681
    %5683 = vdwg.mxu0
    %5684 = vmatprep.subr.bf16.mxu0 %v3165
    %5685 = vmatpush1.bf16.msra.mxu0 %v3164
    %5686 = vmatprep.subr.bf16.mxu0 %v3261
    %5687 = vmatpush1.bf16.msra.mxu0 %v3260
    %5688 = vmatprep.subr.bf16.mxu0 %v3357
    %5689 = vmatpush1.bf16.msra.mxu0 %v3356
    %5690 = vmatprep.subr.bf16.mxu0 %v3453
    %5691 = vmatpush1.bf16.msra.mxu0 %v3452
    %5692 = vmatprep.subr.bf16.mxu0 %v3549
    %5693 = vmatpush1.bf16.msra.mxu0 %v3548
    %5694 = vmatprep.subr.bf16.mxu0 %v3645
    %5695 = vmatpush1.bf16.msra.mxu0 %v3644
    %5696 = vmatprep.subr.bf16.mxu0 %v3741
    %5697 = vmatpush1.bf16.msra.mxu0 %v3740
    %5698 = vmatprep.subr.bf16.mxu0 %v3837
    %5699 = vmatpush1.bf16.msra.mxu0 %v3836
    %5700 = vmatprep.subr.bf16.mxu0 0
    %5701 = vmatpush1.bf16.msra.mxu0 0
    %5702 = vmatprep.subr.bf16.mxu0 0
    %5703 = vmatpush1.bf16.msra.mxu0 0
    %5704 = vmatprep.subr.bf16.mxu0 0
    %5705 = vmatpush1.bf16.msra.mxu0 0
    %5706 = vmatprep.subr.bf16.mxu0 0
    %5707 = vmatpush1.bf16.msra.mxu0 0
    %5708 = vmatprep.subr.bf16.mxu0 0
    %5709 = vmatpush1.bf16.msra.mxu0 0
    %5710 = vmatprep.subr.bf16.mxu0 0
    %5711 = vmatpush1.bf16.msra.mxu0 0
    %5712 = vmatprep.subr.bf16.mxu0 0
    %5713 = vmatpush1.bf16.msra.mxu0 0
    %5714 = vmatprep.subr.bf16.mxu0 0
    %5715 = vmatpush1.bf16.msra.mxu0 0
    %5716 = vmatprep.mubr.bf16.mxu0 0
    %5717 = vmatmul.mubr.bf16.gmra.mrb[0].mxu0 %v43
    %v5718 = vpop.f32.mrb[0].mxu0
    %v5719 = vadd.f32 0.0, %v5718
    %v5720 = vpop.f32.mrb[0].mxu0
    %v5721 = vadd.f32 0.0, %v5720
    %v5722 = vpop.f32.mrb[0].mxu0
    %v5723 = vadd.f32 0.0, %v5722
    %v5724 = vpop.f32.mrb[0].mxu0
    %v5725 = vadd.f32 0.0, %v5724
    %5726 = vdwg.mxu0
    %5727 = vmatprep.subr.bf16.mxu0 %v3167
    %5728 = vmatpush1.bf16.msra.mxu0 %v3166
    %5729 = vmatprep.subr.bf16.mxu0 %v3263
    %5730 = vmatpush1.bf16.msra.mxu0 %v3262
    %5731 = vmatprep.subr.bf16.mxu0 %v3359
    %5732 = vmatpush1.bf16.msra.mxu0 %v3358
    %5733 = vmatprep.subr.bf16.mxu0 %v3455
    %5734 = vmatpush1.bf16.msra.mxu0 %v3454
    %5735 = vmatprep.subr.bf16.mxu0 %v3551
    %5736 = vmatpush1.bf16.msra.mxu0 %v3550
    %5737 = vmatprep.subr.bf16.mxu0 %v3647
    %5738 = vmatpush1.bf16.msra.mxu0 %v3646
    %5739 = vmatprep.subr.bf16.mxu0 %v3743
    %5740 = vmatpush1.bf16.msra.mxu0 %v3742
    %5741 = vmatprep.subr.bf16.mxu0 %v3839
    %5742 = vmatpush1.bf16.msra.mxu0 %v3838
    %5743 = vmatprep.subr.bf16.mxu0 0
    %5744 = vmatpush1.bf16.msra.mxu0 0
    %5745 = vmatprep.subr.bf16.mxu0 0
    %5746 = vmatpush1.bf16.msra.mxu0 0
    %5747 = vmatprep.subr.bf16.mxu0 0
    %5748 = vmatpush1.bf16.msra.mxu0 0
    %5749 = vmatprep.subr.bf16.mxu0 0
    %5750 = vmatpush1.bf16.msra.mxu0 0
    %5751 = vmatprep.subr.bf16.mxu0 0
    %5752 = vmatpush1.bf16.msra.mxu0 0
    %5753 = vmatprep.subr.bf16.mxu0 0
    %5754 = vmatpush1.bf16.msra.mxu0 0
    %5755 = vmatprep.subr.bf16.mxu0 0
    %5756 = vmatpush1.bf16.msra.mxu0 0
    %5757 = vmatprep.subr.bf16.mxu0 0
    %5758 = vmatpush1.bf16.msra.mxu0 0
    %5759 = vmatprep.mubr.bf16.mxu0 0
    %5760 = vmatmul.mubr.bf16.gmra.mrb[0].mxu0 %v43
    %v5761 = vpop.f32.mrb[0].mxu0
    %v5762 = vadd.f32 0.0, %v5761
    %v5763 = vpop.f32.mrb[0].mxu0
    %v5764 = vadd.f32 0.0, %v5763
    %v5765 = vpop.f32.mrb[0].mxu0
    %v5766 = vadd.f32 0.0, %v5765
    %v5767 = vpop.f32.mrb[0].mxu0
    %v5768 = vadd.f32 0.0, %v5767
    %5769 = vdwg.mxu0
    %5770 = vmatprep.subr.bf16.mxu0 %v3169
    %5771 = vmatpush1.bf16.msra.mxu0 %v3168
    %5772 = vmatprep.subr.bf16.mxu0 %v3265
    %5773 = vmatpush1.bf16.msra.mxu0 %v3264
    %5774 = vmatprep.subr.bf16.mxu0 %v3361
    %5775 = vmatpush1.bf16.msra.mxu0 %v3360
    %5776 = vmatprep.subr.bf16.mxu0 %v3457
    %5777 = vmatpush1.bf16.msra.mxu0 %v3456
    %5778 = vmatprep.subr.bf16.mxu0 %v3553
    %5779 = vmatpush1.bf16.msra.mxu0 %v3552
    %5780 = vmatprep.subr.bf16.mxu0 %v3649
    %5781 = vmatpush1.bf16.msra.mxu0 %v3648
    %5782 = vmatprep.subr.bf16.mxu0 %v3745
    %5783 = vmatpush1.bf16.msra.mxu0 %v3744
    %5784 = vmatprep.subr.bf16.mxu0 %v3841
    %5785 = vmatpush1.bf16.msra.mxu0 %v3840
    %5786 = vmatprep.subr.bf16.mxu0 0
    %5787 = vmatpush1.bf16.msra.mxu0 0
    %5788 = vmatprep.subr.bf16.mxu0 0
    %5789 = vmatpush1.bf16.msra.mxu0 0
    %5790 = vmatprep.subr.bf16.mxu0 0
    %5791 = vmatpush1.bf16.msra.mxu0 0
    %5792 = vmatprep.subr.bf16.mxu0 0
    %5793 = vmatpush1.bf16.msra.mxu0 0
    %5794 = vmatprep.subr.bf16.mxu0 0
    %5795 = vmatpush1.bf16.msra.mxu0 0
    %5796 = vmatprep.subr.bf16.mxu0 0
    %5797 = vmatpush1.bf16.msra.mxu0 0
    %5798 = vmatprep.subr.bf16.mxu0 0
    %5799 = vmatpush1.bf16.msra.mxu0 0
    %5800 = vmatprep.subr.bf16.mxu0 0
    %5801 = vmatpush1.bf16.msra.mxu0 0
    %5802 = vmatprep.mubr.bf16.mxu0 0
    %5803 = vmatmul.mubr.bf16.gmra.mrb[0].mxu0 %v43
    %v5804 = vpop.f32.mrb[0].mxu0
    %v5805 = vadd.f32 0.0, %v5804
    %v5806 = vpop.f32.mrb[0].mxu0
    %v5807 = vadd.f32 0.0, %v5806
    %v5808 = vpop.f32.mrb[0].mxu0
    %v5809 = vadd.f32 0.0, %v5808
    %v5810 = vpop.f32.mrb[0].mxu0
    %v5811 = vadd.f32 0.0, %v5810
    %5812 = vdwg.mxu0
    %5813 = vmatprep.subr.bf16.mxu0 %v3171
    %5814 = vmatpush1.bf16.msra.mxu0 %v3170
    %5815 = vmatprep.subr.bf16.mxu0 %v3267
    %5816 = vmatpush1.bf16.msra.mxu0 %v3266
    %5817 = vmatprep.subr.bf16.mxu0 %v3363
    %5818 = vmatpush1.bf16.msra.mxu0 %v3362
    %5819 = vmatprep.subr.bf16.mxu0 %v3459
    %5820 = vmatpush1.bf16.msra.mxu0 %v3458
    %5821 = vmatprep.subr.bf16.mxu0 %v3555
    %5822 = vmatpush1.bf16.msra.mxu0 %v3554
    %5823 = vmatprep.subr.bf16.mxu0 %v3651
    %5824 = vmatpush1.bf16.msra.mxu0 %v3650
    %5825 = vmatprep.subr.bf16.mxu0 %v3747
    %5826 = vmatpush1.bf16.msra.mxu0 %v3746
    %5827 = vmatprep.subr.bf16.mxu0 %v3843
    %5828 = vmatpush1.bf16.msra.mxu0 %v3842
    %5829 = vmatprep.subr.bf16.mxu0 0
    %5830 = vmatpush1.bf16.msra.mxu0 0
    %5831 = vmatprep.subr.bf16.mxu0 0
    %5832 = vmatpush1.bf16.msra.mxu0 0
    %5833 = vmatprep.subr.bf16.mxu0 0
    %5834 = vmatpush1.bf16.msra.mxu0 0
    %5835 = vmatprep.subr.bf16.mxu0 0
    %5836 = vmatpush1.bf16.msra.mxu0 0
    %5837 = vmatprep.subr.bf16.mxu0 0
    %5838 = vmatpush1.bf16.msra.mxu0 0
    %5839 = vmatprep.subr.bf16.mxu0 0
    %5840 = vmatpush1.bf16.msra.mxu0 0
    %5841 = vmatprep.subr.bf16.mxu0 0
    %5842 = vmatpush1.bf16.msra.mxu0 0
    %5843 = vmatprep.subr.bf16.mxu0 0
    %5844 = vmatpush1.bf16.msra.mxu0 0
    %5845 = vmatprep.mubr.bf16.mxu0 0
    %5846 = vmatmul.mubr.bf16.gmra.mrb[0].mxu0 %v43
    %v5847 = vpop.f32.mrb[0].mxu0
    %v5848 = vadd.f32 0.0, %v5847
    %v5849 = vpop.f32.mrb[0].mxu0
    %v5850 = vadd.f32 0.0, %v5849
    %v5851 = vpop.f32.mrb[0].mxu0
    %v5852 = vadd.f32 0.0, %v5851
    %v5853 = vpop.f32.mrb[0].mxu0
    %v5854 = vadd.f32 0.0, %v5853
    %5855 = vdwg.mxu0
    %5856 = vmatprep.subr.bf16.mxu0 %v3173
    %5857 = vmatpush1.bf16.msra.mxu0 %v3172
    %5858 = vmatprep.subr.bf16.mxu0 %v3269
    %5859 = vmatpush1.bf16.msra.mxu0 %v3268
    %5860 = vmatprep.subr.bf16.mxu0 %v3365
    %5861 = vmatpush1.bf16.msra.mxu0 %v3364
    %5862 = vmatprep.subr.bf16.mxu0 %v3461
    %5863 = vmatpush1.bf16.msra.mxu0 %v3460
    %5864 = vmatprep.subr.bf16.mxu0 %v3557
    %5865 = vmatpush1.bf16.msra.mxu0 %v3556
    %5866 = vmatprep.subr.bf16.mxu0 %v3653
    %5867 = vmatpush1.bf16.msra.mxu0 %v3652
    %5868 = vmatprep.subr.bf16.mxu0 %v3749
    %5869 = vmatpush1.bf16.msra.mxu0 %v3748
    %5870 = vmatprep.subr.bf16.mxu0 %v3845
    %5871 = vmatpush1.bf16.msra.mxu0 %v3844
    %5872 = vmatprep.subr.bf16.mxu0 0
    %5873 = vmatpush1.bf16.msra.mxu0 0
    %5874 = vmatprep.subr.bf16.mxu0 0
    %5875 = vmatpush1.bf16.msra.mxu0 0
    %5876 = vmatprep.subr.bf16.mxu0 0
    %5877 = vmatpush1.bf16.msra.mxu0 0
    %5878 = vmatprep.subr.bf16.mxu0 0
    %5879 = vmatpush1.bf16.msra.mxu0 0
    %5880 = vmatprep.subr.bf16.mxu0 0
    %5881 = vmatpush1.bf16.msra.mxu0 0
    %5882 = vmatprep.subr.bf16.mxu0 0
    %5883 = vmatpush1.bf16.msra.mxu0 0
    %5884 = vmatprep.subr.bf16.mxu0 0
    %5885 = vmatpush1.bf16.msra.mxu0 0
    %5886 = vmatprep.subr.bf16.mxu0 0
    %5887 = vmatpush1.bf16.msra.mxu0 0
    %5888 = vmatprep.mubr.bf16.mxu0 0
    %5889 = vmatmul.mubr.bf16.gmra.mrb[0].mxu0 %v43
    %v5890 = vpop.f32.mrb[0].mxu0
    %v5891 = vadd.f32 0.0, %v5890
    %v5892 = vpop.f32.mrb[0].mxu0
    %v5893 = vadd.f32 0.0, %v5892
    %v5894 = vpop.f32.mrb[0].mxu0
    %v5895 = vadd.f32 0.0, %v5894
    %v5896 = vpop.f32.mrb[0].mxu0
    %v5897 = vadd.f32 0.0, %v5896
    %5898 = vdwg.mxu0
    %5899 = vmatprep.subr.bf16.mxu0 %v3175
    %5900 = vmatpush1.bf16.msra.mxu0 %v3174
    %5901 = vmatprep.subr.bf16.mxu0 %v3271
    %5902 = vmatpush1.bf16.msra.mxu0 %v3270
    %5903 = vmatprep.subr.bf16.mxu0 %v3367
    %5904 = vmatpush1.bf16.msra.mxu0 %v3366
    %5905 = vmatprep.subr.bf16.mxu0 %v3463
    %5906 = vmatpush1.bf16.msra.mxu0 %v3462
    %5907 = vmatprep.subr.bf16.mxu0 %v3559
    %5908 = vmatpush1.bf16.msra.mxu0 %v3558
    %5909 = vmatprep.subr.bf16.mxu0 %v3655
    %5910 = vmatpush1.bf16.msra.mxu0 %v3654
    %5911 = vmatprep.subr.bf16.mxu0 %v3751
    %5912 = vmatpush1.bf16.msra.mxu0 %v3750
    %5913 = vmatprep.subr.bf16.mxu0 %v3847
    %5914 = vmatpush1.bf16.msra.mxu0 %v3846
    %5915 = vmatprep.subr.bf16.mxu0 0
    %5916 = vmatpush1.bf16.msra.mxu0 0
    %5917 = vmatprep.subr.bf16.mxu0 0
    %5918 = vmatpush1.bf16.msra.mxu0 0
    %5919 = vmatprep.subr.bf16.mxu0 0
    %5920 = vmatpush1.bf16.msra.mxu0 0
    %5921 = vmatprep.subr.bf16.mxu0 0
    %5922 = vmatpush1.bf16.msra.mxu0 0
    %5923 = vmatprep.subr.bf16.mxu0 0
    %5924 = vmatpush1.bf16.msra.mxu0 0
    %5925 = vmatprep.subr.bf16.mxu0 0
    %5926 = vmatpush1.bf16.msra.mxu0 0
    %5927 = vmatprep.subr.bf16.mxu0 0
    %5928 = vmatpush1.bf16.msra.mxu0 0
    %5929 = vmatprep.subr.bf16.mxu0 0
    %5930 = vmatpush1.bf16.msra.mxu0 0
    %5931 = vmatprep.mubr.bf16.mxu0 0
    %5932 = vmatmul.mubr.bf16.gmra.mrb[0].mxu0 %v43
    %v5933 = vpop.f32.mrb[0].mxu0
    %v5934 = vadd.f32 0.0, %v5933
    %v5935 = vpop.f32.mrb[0].mxu0
    %v5936 = vadd.f32 0.0, %v5935
    %v5937 = vpop.f32.mrb[0].mxu0
    %v5938 = vadd.f32 0.0, %v5937
    %v5939 = vpop.f32.mrb[0].mxu0
    %v5940 = vadd.f32 0.0, %v5939
    %5941 = vdwg.mxu0
    %5942 = vmatprep.subr.bf16.mxu0 %v3177
    %5943 = vmatpush1.bf16.msra.mxu0 %v3176
    %5944 = vmatprep.subr.bf16.mxu0 %v3273
    %5945 = vmatpush1.bf16.msra.mxu0 %v3272
    %5946 = vmatprep.subr.bf16.mxu0 %v3369
    %5947 = vmatpush1.bf16.msra.mxu0 %v3368
    %5948 = vmatprep.subr.bf16.mxu0 %v3465
    %5949 = vmatpush1.bf16.msra.mxu0 %v3464
    %5950 = vmatprep.subr.bf16.mxu0 %v3561
    %5951 = vmatpush1.bf16.msra.mxu0 %v3560
    %5952 = vmatprep.subr.bf16.mxu0 %v3657
    %5953 = vmatpush1.bf16.msra.mxu0 %v3656
    %5954 = vmatprep.subr.bf16.mxu0 %v3753
    %5955 = vmatpush1.bf16.msra.mxu0 %v3752
    %5956 = vmatprep.subr.bf16.mxu0 %v3849
    %5957 = vmatpush1.bf16.msra.mxu0 %v3848
    %5958 = vmatprep.subr.bf16.mxu0 0
    %5959 = vmatpush1.bf16.msra.mxu0 0
    %5960 = vmatprep.subr.bf16.mxu0 0
    %5961 = vmatpush1.bf16.msra.mxu0 0
    %5962 = vmatprep.subr.bf16.mxu0 0
    %5963 = vmatpush1.bf16.msra.mxu0 0
    %5964 = vmatprep.subr.bf16.mxu0 0
    %5965 = vmatpush1.bf16.msra.mxu0 0
    %5966 = vmatprep.subr.bf16.mxu0 0
    %5967 = vmatpush1.bf16.msra.mxu0 0
    %5968 = vmatprep.subr.bf16.mxu0 0
    %5969 = vmatpush1.bf16.msra.mxu0 0
    %5970 = vmatprep.subr.bf16.mxu0 0
    %5971 = vmatpush1.bf16.msra.mxu0 0
    %5972 = vmatprep.subr.bf16.mxu0 0
    %5973 = vmatpush1.bf16.msra.mxu0 0
    %5974 = vmatprep.mubr.bf16.mxu0 0
    %5975 = vmatmul.mubr.bf16.gmra.mrb[0].mxu0 %v43
    %v5976 = vpop.f32.mrb[0].mxu0
    %v5977 = vadd.f32 0.0, %v5976
    %v5978 = vpop.f32.mrb[0].mxu0
    %v5979 = vadd.f32 0.0, %v5978
    %v5980 = vpop.f32.mrb[0].mxu0
    %v5981 = vadd.f32 0.0, %v5980
    %v5982 = vpop.f32.mrb[0].mxu0
    %v5983 = vadd.f32 0.0, %v5982
    %5984 = vdwg.mxu0
    %5985 = vmatprep.subr.bf16.mxu0 %v3179
    %5986 = vmatpush1.bf16.msra.mxu0 %v3178
    %5987 = vmatprep.subr.bf16.mxu0 %v3275
    %5988 = vmatpush1.bf16.msra.mxu0 %v3274
    %5989 = vmatprep.subr.bf16.mxu0 %v3371
    %5990 = vmatpush1.bf16.msra.mxu0 %v3370
    %5991 = vmatprep.subr.bf16.mxu0 %v3467
    %5992 = vmatpush1.bf16.msra.mxu0 %v3466
    %5993 = vmatprep.subr.bf16.mxu0 %v3563
    %5994 = vmatpush1.bf16.msra.mxu0 %v3562
    %5995 = vmatprep.subr.bf16.mxu0 %v3659
    %5996 = vmatpush1.bf16.msra.mxu0 %v3658
    %5997 = vmatprep.subr.bf16.mxu0 %v3755
    %5998 = vmatpush1.bf16.msra.mxu0 %v3754
    %5999 = vmatprep.subr.bf16.mxu0 %v3851
    %6000 = vmatpush1.bf16.msra.mxu0 %v3850
    %6001 = vmatprep.subr.bf16.mxu0 0
    %6002 = vmatpush1.bf16.msra.mxu0 0
    %6003 = vmatprep.subr.bf16.mxu0 0
    %6004 = vmatpush1.bf16.msra.mxu0 0
    %6005 = vmatprep.subr.bf16.mxu0 0
    %6006 = vmatpush1.bf16.msra.mxu0 0
    %6007 = vmatprep.subr.bf16.mxu0 0
    %6008 = vmatpush1.bf16.msra.mxu0 0
    %6009 = vmatprep.subr.bf16.mxu0 0
    %6010 = vmatpush1.bf16.msra.mxu0 0
    %6011 = vmatprep.subr.bf16.mxu0 0
    %6012 = vmatpush1.bf16.msra.mxu0 0
    %6013 = vmatprep.subr.bf16.mxu0 0
    %6014 = vmatpush1.bf16.msra.mxu0 0
    %6015 = vmatprep.subr.bf16.mxu0 0
    %6016 = vmatpush1.bf16.msra.mxu0 0
    %6017 = vmatprep.mubr.bf16.mxu0 0
    %6018 = vmatmul.mubr.bf16.gmra.mrb[0].mxu0 %v43
    %v6019 = vpop.f32.mrb[0].mxu0
    %v6020 = vadd.f32 0.0, %v6019
    %v6021 = vpop.f32.mrb[0].mxu0
    %v6022 = vadd.f32 0.0, %v6021
    %v6023 = vpop.f32.mrb[0].mxu0
    %v6024 = vadd.f32 0.0, %v6023
    %v6025 = vpop.f32.mrb[0].mxu0
    %v6026 = vadd.f32 0.0, %v6025
    %6027 = vdwg.mxu0
    %6028 = vmatprep.subr.bf16.mxu0 %v3181
    %6029 = vmatpush1.bf16.msra.mxu0 %v3180
    %6030 = vmatprep.subr.bf16.mxu0 %v3277
    %6031 = vmatpush1.bf16.msra.mxu0 %v3276
    %6032 = vmatprep.subr.bf16.mxu0 %v3373
    %6033 = vmatpush1.bf16.msra.mxu0 %v3372
    %6034 = vmatprep.subr.bf16.mxu0 %v3469
    %6035 = vmatpush1.bf16.msra.mxu0 %v3468
    %6036 = vmatprep.subr.bf16.mxu0 %v3565
    %6037 = vmatpush1.bf16.msra.mxu0 %v3564
    %6038 = vmatprep.subr.bf16.mxu0 %v3661
    %6039 = vmatpush1.bf16.msra.mxu0 %v3660
    %6040 = vmatprep.subr.bf16.mxu0 %v3757
    %6041 = vmatpush1.bf16.msra.mxu0 %v3756
    %6042 = vmatprep.subr.bf16.mxu0 %v3853
    %6043 = vmatpush1.bf16.msra.mxu0 %v3852
    %6044 = vmatprep.subr.bf16.mxu0 0
    %6045 = vmatpush1.bf16.msra.mxu0 0
    %6046 = vmatprep.subr.bf16.mxu0 0
    %6047 = vmatpush1.bf16.msra.mxu0 0
    %6048 = vmatprep.subr.bf16.mxu0 0
    %6049 = vmatpush1.bf16.msra.mxu0 0
    %6050 = vmatprep.subr.bf16.mxu0 0
    %6051 = vmatpush1.bf16.msra.mxu0 0
    %6052 = vmatprep.subr.bf16.mxu0 0
    %6053 = vmatpush1.bf16.msra.mxu0 0
    %6054 = vmatprep.subr.bf16.mxu0 0
    %6055 = vmatpush1.bf16.msra.mxu0 0
    %6056 = vmatprep.subr.bf16.mxu0 0
    %6057 = vmatpush1.bf16.msra.mxu0 0
    %6058 = vmatprep.subr.bf16.mxu0 0
    %6059 = vmatpush1.bf16.msra.mxu0 0
    %6060 = vmatprep.mubr.bf16.mxu0 0
    %6061 = vmatmul.mubr.bf16.gmra.mrb[0].mxu0 %v43
    %v6062 = vpop.f32.mrb[0].mxu0
    %v6063 = vadd.f32 0.0, %v6062
    %v6064 = vpop.f32.mrb[0].mxu0
    %v6065 = vadd.f32 0.0, %v6064
    %v6066 = vpop.f32.mrb[0].mxu0
    %v6067 = vadd.f32 0.0, %v6066
    %v6068 = vpop.f32.mrb[0].mxu0
    %v6069 = vadd.f32 0.0, %v6068
    %6070 = vdwg.mxu0
    %6071 = vmatprep.subr.bf16.mxu0 %v3183
    %6072 = vmatpush1.bf16.msra.mxu0 %v3182
    %6073 = vmatprep.subr.bf16.mxu0 %v3279
    %6074 = vmatpush1.bf16.msra.mxu0 %v3278
    %6075 = vmatprep.subr.bf16.mxu0 %v3375
    %6076 = vmatpush1.bf16.msra.mxu0 %v3374
    %6077 = vmatprep.subr.bf16.mxu0 %v3471
    %6078 = vmatpush1.bf16.msra.mxu0 %v3470
    %6079 = vmatprep.subr.bf16.mxu0 %v3567
    %6080 = vmatpush1.bf16.msra.mxu0 %v3566
    %6081 = vmatprep.subr.bf16.mxu0 %v3663
    %6082 = vmatpush1.bf16.msra.mxu0 %v3662
    %6083 = vmatprep.subr.bf16.mxu0 %v3759
    %6084 = vmatpush1.bf16.msra.mxu0 %v3758
    %6085 = vmatprep.subr.bf16.mxu0 %v3855
    %6086 = vmatpush1.bf16.msra.mxu0 %v3854
    %6087 = vmatprep.subr.bf16.mxu0 0
    %6088 = vmatpush1.bf16.msra.mxu0 0
    %6089 = vmatprep.subr.bf16.mxu0 0
    %6090 = vmatpush1.bf16.msra.mxu0 0
    %6091 = vmatprep.subr.bf16.mxu0 0
    %6092 = vmatpush1.bf16.msra.mxu0 0
    %6093 = vmatprep.subr.bf16.mxu0 0
    %6094 = vmatpush1.bf16.msra.mxu0 0
    %6095 = vmatprep.subr.bf16.mxu0 0
    %6096 = vmatpush1.bf16.msra.mxu0 0
    %6097 = vmatprep.subr.bf16.mxu0 0
    %6098 = vmatpush1.bf16.msra.mxu0 0
    %6099 = vmatprep.subr.bf16.mxu0 0
    %6100 = vmatpush1.bf16.msra.mxu0 0
    %6101 = vmatprep.subr.bf16.mxu0 0
    %6102 = vmatpush1.bf16.msra.mxu0 0
    %6103 = vmatprep.mubr.bf16.mxu0 0
    %6104 = vmatmul.mubr.bf16.gmra.mrb[0].mxu0 %v43
    %v6105 = vpop.f32.mrb[0].mxu0
    %v6106 = vadd.f32 0.0, %v6105
    %v6107 = vpop.f32.mrb[0].mxu0
    %v6108 = vadd.f32 0.0, %v6107
    %v6109 = vpop.f32.mrb[0].mxu0
    %v6110 = vadd.f32 0.0, %v6109
    %v6111 = vpop.f32.mrb[0].mxu0
    %v6112 = vadd.f32 0.0, %v6111
    %6113 = vdwg.mxu0
    %6114 = vmatprep.subr.bf16.mxu0 %v3185
    %6115 = vmatpush1.bf16.msra.mxu0 %v3184
    %6116 = vmatprep.subr.bf16.mxu0 %v3281
    %6117 = vmatpush1.bf16.msra.mxu0 %v3280
    %6118 = vmatprep.subr.bf16.mxu0 %v3377
    %6119 = vmatpush1.bf16.msra.mxu0 %v3376
    %6120 = vmatprep.subr.bf16.mxu0 %v3473
    %6121 = vmatpush1.bf16.msra.mxu0 %v3472
    %6122 = vmatprep.subr.bf16.mxu0 %v3569
    %6123 = vmatpush1.bf16.msra.mxu0 %v3568
    %6124 = vmatprep.subr.bf16.mxu0 %v3665
    %6125 = vmatpush1.bf16.msra.mxu0 %v3664
    %6126 = vmatprep.subr.bf16.mxu0 %v3761
    %6127 = vmatpush1.bf16.msra.mxu0 %v3760
    %6128 = vmatprep.subr.bf16.mxu0 %v3857
    %6129 = vmatpush1.bf16.msra.mxu0 %v3856
    %6130 = vmatprep.subr.bf16.mxu0 0
    %6131 = vmatpush1.bf16.msra.mxu0 0
    %6132 = vmatprep.subr.bf16.mxu0 0
    %6133 = vmatpush1.bf16.msra.mxu0 0
    %6134 = vmatprep.subr.bf16.mxu0 0
    %6135 = vmatpush1.bf16.msra.mxu0 0
    %6136 = vmatprep.subr.bf16.mxu0 0
    %6137 = vmatpush1.bf16.msra.mxu0 0
    %6138 = vmatprep.subr.bf16.mxu0 0
    %6139 = vmatpush1.bf16.msra.mxu0 0
    %6140 = vmatprep.subr.bf16.mxu0 0
    %6141 = vmatpush1.bf16.msra.mxu0 0
    %6142 = vmatprep.subr.bf16.mxu0 0
    %6143 = vmatpush1.bf16.msra.mxu0 0
    %6144 = vmatprep.subr.bf16.mxu0 0
    %6145 = vmatpush1.bf16.msra.mxu0 0
    %6146 = vmatprep.mubr.bf16.mxu0 0
    %6147 = vmatmul.mubr.bf16.gmra.mrb[0].mxu0 %v43
    %v6148 = vpop.f32.mrb[0].mxu0
    %v6149 = vadd.f32 0.0, %v6148
    %v6150 = vpop.f32.mrb[0].mxu0
    %v6151 = vadd.f32 0.0, %v6150
    %v6152 = vpop.f32.mrb[0].mxu0
    %v6153 = vadd.f32 0.0, %v6152
    %v6154 = vpop.f32.mrb[0].mxu0
    %v6155 = vadd.f32 0.0, %v6154
    %6156 = vdwg.mxu0
    %6157 = vmatprep.subr.bf16.mxu0 %v3187
    %6158 = vmatpush1.bf16.msra.mxu0 %v3186
    %6159 = vmatprep.subr.bf16.mxu0 %v3283
    %6160 = vmatpush1.bf16.msra.mxu0 %v3282
    %6161 = vmatprep.subr.bf16.mxu0 %v3379
    %6162 = vmatpush1.bf16.msra.mxu0 %v3378
    %6163 = vmatprep.subr.bf16.mxu0 %v3475
    %6164 = vmatpush1.bf16.msra.mxu0 %v3474
    %6165 = vmatprep.subr.bf16.mxu0 %v3571
    %6166 = vmatpush1.bf16.msra.mxu0 %v3570
    %6167 = vmatprep.subr.bf16.mxu0 %v3667
    %6168 = vmatpush1.bf16.msra.mxu0 %v3666
    %6169 = vmatprep.subr.bf16.mxu0 %v3763
    %6170 = vmatpush1.bf16.msra.mxu0 %v3762
    %6171 = vmatprep.subr.bf16.mxu0 %v3859
    %6172 = vmatpush1.bf16.msra.mxu0 %v3858
    %6173 = vmatprep.subr.bf16.mxu0 0
    %6174 = vmatpush1.bf16.msra.mxu0 0
    %6175 = vmatprep.subr.bf16.mxu0 0
    %6176 = vmatpush1.bf16.msra.mxu0 0
    %6177 = vmatprep.subr.bf16.mxu0 0
    %6178 = vmatpush1.bf16.msra.mxu0 0
    %6179 = vmatprep.subr.bf16.mxu0 0
    %6180 = vmatpush1.bf16.msra.mxu0 0
    %6181 = vmatprep.subr.bf16.mxu0 0
    %6182 = vmatpush1.bf16.msra.mxu0 0
    %6183 = vmatprep.subr.bf16.mxu0 0
    %6184 = vmatpush1.bf16.msra.mxu0 0
    %6185 = vmatprep.subr.bf16.mxu0 0
    %6186 = vmatpush1.bf16.msra.mxu0 0
    %6187 = vmatprep.subr.bf16.mxu0 0
    %6188 = vmatpush1.bf16.msra.mxu0 0
    %6189 = vmatprep.mubr.bf16.mxu0 0
    %6190 = vmatmul.mubr.bf16.gmra.mrb[0].mxu0 %v43
    %v6191 = vpop.f32.mrb[0].mxu0
    %v6192 = vadd.f32 0.0, %v6191
    %v6193 = vpop.f32.mrb[0].mxu0
    %v6194 = vadd.f32 0.0, %v6193
    %v6195 = vpop.f32.mrb[0].mxu0
    %v6196 = vadd.f32 0.0, %v6195
    %v6197 = vpop.f32.mrb[0].mxu0
    %v6198 = vadd.f32 0.0, %v6197
    %6199 = vdwg.mxu0
    %6200 = vmatprep.subr.bf16.mxu0 %v3189
    %6201 = vmatpush1.bf16.msra.mxu0 %v3188
    %6202 = vmatprep.subr.bf16.mxu0 %v3285
    %6203 = vmatpush1.bf16.msra.mxu0 %v3284
    %6204 = vmatprep.subr.bf16.mxu0 %v3381
    %6205 = vmatpush1.bf16.msra.mxu0 %v3380
    %6206 = vmatprep.subr.bf16.mxu0 %v3477
    %6207 = vmatpush1.bf16.msra.mxu0 %v3476
    %6208 = vmatprep.subr.bf16.mxu0 %v3573
    %6209 = vmatpush1.bf16.msra.mxu0 %v3572
    %6210 = vmatprep.subr.bf16.mxu0 %v3669
    %6211 = vmatpush1.bf16.msra.mxu0 %v3668
    %6212 = vmatprep.subr.bf16.mxu0 %v3765
    %6213 = vmatpush1.bf16.msra.mxu0 %v3764
    %6214 = vmatprep.subr.bf16.mxu0 %v3861
    %6215 = vmatpush1.bf16.msra.mxu0 %v3860
    %6216 = vmatprep.subr.bf16.mxu0 0
    %6217 = vmatpush1.bf16.msra.mxu0 0
    %6218 = vmatprep.subr.bf16.mxu0 0
    %6219 = vmatpush1.bf16.msra.mxu0 0
    %6220 = vmatprep.subr.bf16.mxu0 0
    %6221 = vmatpush1.bf16.msra.mxu0 0
    %6222 = vmatprep.subr.bf16.mxu0 0
    %6223 = vmatpush1.bf16.msra.mxu0 0
    %6224 = vmatprep.subr.bf16.mxu0 0
    %6225 = vmatpush1.bf16.msra.mxu0 0
    %6226 = vmatprep.subr.bf16.mxu0 0
    %6227 = vmatpush1.bf16.msra.mxu0 0
    %6228 = vmatprep.subr.bf16.mxu0 0
    %6229 = vmatpush1.bf16.msra.mxu0 0
    %6230 = vmatprep.subr.bf16.mxu0 0
    %6231 = vmatpush1.bf16.msra.mxu0 0
    %6232 = vmatprep.mubr.bf16.mxu0 0
    %6233 = vmatmul.mubr.bf16.gmra.mrb[0].mxu0 %v43
    %v6234 = vpop.f32.mrb[0].mxu0
    %v6235 = vadd.f32 0.0, %v6234
    %v6236 = vpop.f32.mrb[0].mxu0
    %v6237 = vadd.f32 0.0, %v6236
    %v6238 = vpop.f32.mrb[0].mxu0
    %v6239 = vadd.f32 0.0, %v6238
    %v6240 = vpop.f32.mrb[0].mxu0
    %v6241 = vadd.f32 0.0, %v6240
    %6242 = vdwg.mxu0
    %6243 = vmatprep.subr.bf16.mxu0 %v3191
    %6244 = vmatpush1.bf16.msra.mxu0 %v3190
    %6245 = vmatprep.subr.bf16.mxu0 %v3287
    %6246 = vmatpush1.bf16.msra.mxu0 %v3286
    %6247 = vmatprep.subr.bf16.mxu0 %v3383
    %6248 = vmatpush1.bf16.msra.mxu0 %v3382
    %6249 = vmatprep.subr.bf16.mxu0 %v3479
    %6250 = vmatpush1.bf16.msra.mxu0 %v3478
    %6251 = vmatprep.subr.bf16.mxu0 %v3575
    %6252 = vmatpush1.bf16.msra.mxu0 %v3574
    %6253 = vmatprep.subr.bf16.mxu0 %v3671
    %6254 = vmatpush1.bf16.msra.mxu0 %v3670
    %6255 = vmatprep.subr.bf16.mxu0 %v3767
    %6256 = vmatpush1.bf16.msra.mxu0 %v3766
    %6257 = vmatprep.subr.bf16.mxu0 %v3863
    %6258 = vmatpush1.bf16.msra.mxu0 %v3862
    %6259 = vmatprep.subr.bf16.mxu0 0
    %6260 = vmatpush1.bf16.msra.mxu0 0
    %6261 = vmatprep.subr.bf16.mxu0 0
    %6262 = vmatpush1.bf16.msra.mxu0 0
    %6263 = vmatprep.subr.bf16.mxu0 0
    %6264 = vmatpush1.bf16.msra.mxu0 0
    %6265 = vmatprep.subr.bf16.mxu0 0
    %6266 = vmatpush1.bf16.msra.mxu0 0
    %6267 = vmatprep.subr.bf16.mxu0 0
    %6268 = vmatpush1.bf16.msra.mxu0 0
    %6269 = vmatprep.subr.bf16.mxu0 0
    %6270 = vmatpush1.bf16.msra.mxu0 0
    %6271 = vmatprep.subr.bf16.mxu0 0
    %6272 = vmatpush1.bf16.msra.mxu0 0
    %6273 = vmatprep.subr.bf16.mxu0 0
    %6274 = vmatpush1.bf16.msra.mxu0 0
    %6275 = vmatprep.mubr.bf16.mxu0 0
    %6276 = vmatmul.mubr.bf16.gmra.mrb[0].mxu0 %v43
    %v6277 = vpop.f32.mrb[0].mxu0
    %v6278 = vadd.f32 0.0, %v6277
    %v6279 = vpop.f32.mrb[0].mxu0
    %v6280 = vadd.f32 0.0, %v6279
    %v6281 = vpop.f32.mrb[0].mxu0
    %v6282 = vadd.f32 0.0, %v6281
    %v6283 = vpop.f32.mrb[0].mxu0
    %v6284 = vadd.f32 0.0, %v6283
    %6285 = vdwg.mxu0
    %6286 = vmatprep.subr.bf16.mxu0 %v3193
    %6287 = vmatpush1.bf16.msra.mxu0 %v3192
    %6288 = vmatprep.subr.bf16.mxu0 %v3289
    %6289 = vmatpush1.bf16.msra.mxu0 %v3288
    %6290 = vmatprep.subr.bf16.mxu0 %v3385
    %6291 = vmatpush1.bf16.msra.mxu0 %v3384
    %6292 = vmatprep.subr.bf16.mxu0 %v3481
    %6293 = vmatpush1.bf16.msra.mxu0 %v3480
    %6294 = vmatprep.subr.bf16.mxu0 %v3577
    %6295 = vmatpush1.bf16.msra.mxu0 %v3576
    %6296 = vmatprep.subr.bf16.mxu0 %v3673
    %6297 = vmatpush1.bf16.msra.mxu0 %v3672
    %6298 = vmatprep.subr.bf16.mxu0 %v3769
    %6299 = vmatpush1.bf16.msra.mxu0 %v3768
    %6300 = vmatprep.subr.bf16.mxu0 %v3865
    %6301 = vmatpush1.bf16.msra.mxu0 %v3864
    %6302 = vmatprep.subr.bf16.mxu0 0
    %6303 = vmatpush1.bf16.msra.mxu0 0
    %6304 = vmatprep.subr.bf16.mxu0 0
    %6305 = vmatpush1.bf16.msra.mxu0 0
    %6306 = vmatprep.subr.bf16.mxu0 0
    %6307 = vmatpush1.bf16.msra.mxu0 0
    %6308 = vmatprep.subr.bf16.mxu0 0
    %6309 = vmatpush1.bf16.msra.mxu0 0
    %6310 = vmatprep.subr.bf16.mxu0 0
    %6311 = vmatpush1.bf16.msra.mxu0 0
    %6312 = vmatprep.subr.bf16.mxu0 0
    %6313 = vmatpush1.bf16.msra.mxu0 0
    %6314 = vmatprep.subr.bf16.mxu0 0
    %6315 = vmatpush1.bf16.msra.mxu0 0
    %6316 = vmatprep.subr.bf16.mxu0 0
    %6317 = vmatpush1.bf16.msra.mxu0 0
    %6318 = vmatprep.mubr.bf16.mxu0 0
    %6319 = vmatmul.mubr.bf16.gmra.mrb[0].mxu0 %v43
    %v6320 = vpop.f32.mrb[0].mxu0
    %v6321 = vadd.f32 0.0, %v6320
    %v6322 = vpop.f32.mrb[0].mxu0
    %v6323 = vadd.f32 0.0, %v6322
    %v6324 = vpop.f32.mrb[0].mxu0
    %v6325 = vadd.f32 0.0, %v6324
    %v6326 = vpop.f32.mrb[0].mxu0
    %v6327 = vadd.f32 0.0, %v6326
    %6328 = vdwg.mxu0
    %6329 = vmatprep.subr.bf16.mxu0 %v3195
    %6330 = vmatpush1.bf16.msra.mxu0 %v3194
    %6331 = vmatprep.subr.bf16.mxu0 %v3291
    %6332 = vmatpush1.bf16.msra.mxu0 %v3290
    %6333 = vmatprep.subr.bf16.mxu0 %v3387
    %6334 = vmatpush1.bf16.msra.mxu0 %v3386
    %6335 = vmatprep.subr.bf16.mxu0 %v3483
    %6336 = vmatpush1.bf16.msra.mxu0 %v3482
    %6337 = vmatprep.subr.bf16.mxu0 %v3579
    %6338 = vmatpush1.bf16.msra.mxu0 %v3578
    %6339 = vmatprep.subr.bf16.mxu0 %v3675
    %6340 = vmatpush1.bf16.msra.mxu0 %v3674
    %6341 = vmatprep.subr.bf16.mxu0 %v3771
    %6342 = vmatpush1.bf16.msra.mxu0 %v3770
    %6343 = vmatprep.subr.bf16.mxu0 %v3867
    %6344 = vmatpush1.bf16.msra.mxu0 %v3866
    %6345 = vmatprep.subr.bf16.mxu0 0
    %6346 = vmatpush1.bf16.msra.mxu0 0
    %6347 = vmatprep.subr.bf16.mxu0 0
    %6348 = vmatpush1.bf16.msra.mxu0 0
    %6349 = vmatprep.subr.bf16.mxu0 0
    %6350 = vmatpush1.bf16.msra.mxu0 0
    %6351 = vmatprep.subr.bf16.mxu0 0
    %6352 = vmatpush1.bf16.msra.mxu0 0
    %6353 = vmatprep.subr.bf16.mxu0 0
    %6354 = vmatpush1.bf16.msra.mxu0 0
    %6355 = vmatprep.subr.bf16.mxu0 0
    %6356 = vmatpush1.bf16.msra.mxu0 0
    %6357 = vmatprep.subr.bf16.mxu0 0
    %6358 = vmatpush1.bf16.msra.mxu0 0
    %6359 = vmatprep.subr.bf16.mxu0 0
    %6360 = vmatpush1.bf16.msra.mxu0 0
    %6361 = vmatprep.mubr.bf16.mxu0 0
    %6362 = vmatmul.mubr.bf16.gmra.mrb[0].mxu0 %v43
    %v6363 = vpop.f32.mrb[0].mxu0
    %v6364 = vadd.f32 0.0, %v6363
    %v6365 = vpop.f32.mrb[0].mxu0
    %v6366 = vadd.f32 0.0, %v6365
    %v6367 = vpop.f32.mrb[0].mxu0
    %v6368 = vadd.f32 0.0, %v6367
    %v6369 = vpop.f32.mrb[0].mxu0
    %v6370 = vadd.f32 0.0, %v6369
    %6371 = vdwg.mxu0
    %6372 = vmatprep.subr.bf16.mxu0 %v3197
    %6373 = vmatpush1.bf16.msra.mxu0 %v3196
    %6374 = vmatprep.subr.bf16.mxu0 %v3293
    %6375 = vmatpush1.bf16.msra.mxu0 %v3292
    %6376 = vmatprep.subr.bf16.mxu0 %v3389
    %6377 = vmatpush1.bf16.msra.mxu0 %v3388
    %6378 = vmatprep.subr.bf16.mxu0 %v3485
    %6379 = vmatpush1.bf16.msra.mxu0 %v3484
    %6380 = vmatprep.subr.bf16.mxu0 %v3581
    %6381 = vmatpush1.bf16.msra.mxu0 %v3580
    %6382 = vmatprep.subr.bf16.mxu0 %v3677
    %6383 = vmatpush1.bf16.msra.mxu0 %v3676
    %6384 = vmatprep.subr.bf16.mxu0 %v3773
    %6385 = vmatpush1.bf16.msra.mxu0 %v3772
    %6386 = vmatprep.subr.bf16.mxu0 %v3869
    %6387 = vmatpush1.bf16.msra.mxu0 %v3868
    %6388 = vmatprep.subr.bf16.mxu0 0
    %6389 = vmatpush1.bf16.msra.mxu0 0
    %6390 = vmatprep.subr.bf16.mxu0 0
    %6391 = vmatpush1.bf16.msra.mxu0 0
    %6392 = vmatprep.subr.bf16.mxu0 0
    %6393 = vmatpush1.bf16.msra.mxu0 0
    %6394 = vmatprep.subr.bf16.mxu0 0
    %6395 = vmatpush1.bf16.msra.mxu0 0
    %6396 = vmatprep.subr.bf16.mxu0 0
    %6397 = vmatpush1.bf16.msra.mxu0 0
    %6398 = vmatprep.subr.bf16.mxu0 0
    %6399 = vmatpush1.bf16.msra.mxu0 0
    %6400 = vmatprep.subr.bf16.mxu0 0
    %6401 = vmatpush1.bf16.msra.mxu0 0
    %6402 = vmatprep.subr.bf16.mxu0 0
    %6403 = vmatpush1.bf16.msra.mxu0 0
    %6404 = vmatprep.mubr.bf16.mxu0 0
    %6405 = vmatmul.mubr.bf16.gmra.mrb[0].mxu0 %v43
    %v6406 = vpop.f32.mrb[0].mxu0
    %v6407 = vadd.f32 0.0, %v6406
    %v6408 = vpop.f32.mrb[0].mxu0
    %v6409 = vadd.f32 0.0, %v6408
    %v6410 = vpop.f32.mrb[0].mxu0
    %v6411 = vadd.f32 0.0, %v6410
    %v6412 = vpop.f32.mrb[0].mxu0
    %v6413 = vadd.f32 0.0, %v6412
    %6414 = vdwg.mxu0
    %6415 = vmatprep.subr.bf16.mxu0 %v3199
    %6416 = vmatpush1.bf16.msra.mxu0 %v3198
    %6417 = vmatprep.subr.bf16.mxu0 %v3295
    %6418 = vmatpush1.bf16.msra.mxu0 %v3294
    %6419 = vmatprep.subr.bf16.mxu0 %v3391
    %6420 = vmatpush1.bf16.msra.mxu0 %v3390
    %6421 = vmatprep.subr.bf16.mxu0 %v3487
    %6422 = vmatpush1.bf16.msra.mxu0 %v3486
    %6423 = vmatprep.subr.bf16.mxu0 %v3583
    %6424 = vmatpush1.bf16.msra.mxu0 %v3582
    %6425 = vmatprep.subr.bf16.mxu0 %v3679
    %6426 = vmatpush1.bf16.msra.mxu0 %v3678
    %6427 = vmatprep.subr.bf16.mxu0 %v3775
    %6428 = vmatpush1.bf16.msra.mxu0 %v3774
    %6429 = vmatprep.subr.bf16.mxu0 %v3871
    %6430 = vmatpush1.bf16.msra.mxu0 %v3870
    %6431 = vmatprep.subr.bf16.mxu0 0
    %6432 = vmatpush1.bf16.msra.mxu0 0
    %6433 = vmatprep.subr.bf16.mxu0 0
    %6434 = vmatpush1.bf16.msra.mxu0 0
    %6435 = vmatprep.subr.bf16.mxu0 0
    %6436 = vmatpush1.bf16.msra.mxu0 0
    %6437 = vmatprep.subr.bf16.mxu0 0
    %6438 = vmatpush1.bf16.msra.mxu0 0
    %6439 = vmatprep.subr.bf16.mxu0 0
    %6440 = vmatpush1.bf16.msra.mxu0 0
    %6441 = vmatprep.subr.bf16.mxu0 0
    %6442 = vmatpush1.bf16.msra.mxu0 0
    %6443 = vmatprep.subr.bf16.mxu0 0
    %6444 = vmatpush1.bf16.msra.mxu0 0
    %6445 = vmatprep.subr.bf16.mxu0 0
    %6446 = vmatpush1.bf16.msra.mxu0 0
    %6447 = vmatprep.mubr.bf16.mxu0 0
    %6448 = vmatmul.mubr.bf16.gmra.mrb[0].mxu0 %v43
    %v6449 = vpop.f32.mrb[0].mxu0
    %v6450 = vadd.f32 0.0, %v6449
    %v6451 = vpop.f32.mrb[0].mxu0
    %v6452 = vadd.f32 0.0, %v6451
    %v6453 = vpop.f32.mrb[0].mxu0
    %v6454 = vadd.f32 0.0, %v6453
    %v6455 = vpop.f32.mrb[0].mxu0
    %v6456 = vadd.f32 0.0, %v6455
    %6457 = vdwg.mxu0
    %6458 = vmatprep.subr.bf16.mxu0 %v3201
    %6459 = vmatpush1.bf16.msra.mxu0 %v3200
    %6460 = vmatprep.subr.bf16.mxu0 %v3297
    %6461 = vmatpush1.bf16.msra.mxu0 %v3296
    %6462 = vmatprep.subr.bf16.mxu0 %v3393
    %6463 = vmatpush1.bf16.msra.mxu0 %v3392
    %6464 = vmatprep.subr.bf16.mxu0 %v3489
    %6465 = vmatpush1.bf16.msra.mxu0 %v3488
    %6466 = vmatprep.subr.bf16.mxu0 %v3585
    %6467 = vmatpush1.bf16.msra.mxu0 %v3584
    %6468 = vmatprep.subr.bf16.mxu0 %v3681
    %6469 = vmatpush1.bf16.msra.mxu0 %v3680
    %6470 = vmatprep.subr.bf16.mxu0 %v3777
    %6471 = vmatpush1.bf16.msra.mxu0 %v3776
    %6472 = vmatprep.subr.bf16.mxu0 %v3873
    %6473 = vmatpush1.bf16.msra.mxu0 %v3872
    %6474 = vmatprep.subr.bf16.mxu0 0
    %6475 = vmatpush1.bf16.msra.mxu0 0
    %6476 = vmatprep.subr.bf16.mxu0 0
    %6477 = vmatpush1.bf16.msra.mxu0 0
    %6478 = vmatprep.subr.bf16.mxu0 0
    %6479 = vmatpush1.bf16.msra.mxu0 0
    %6480 = vmatprep.subr.bf16.mxu0 0
    %6481 = vmatpush1.bf16.msra.mxu0 0
    %6482 = vmatprep.subr.bf16.mxu0 0
    %6483 = vmatpush1.bf16.msra.mxu0 0
    %6484 = vmatprep.subr.bf16.mxu0 0
    %6485 = vmatpush1.bf16.msra.mxu0 0
    %6486 = vmatprep.subr.bf16.mxu0 0
    %6487 = vmatpush1.bf16.msra.mxu0 0
    %6488 = vmatprep.subr.bf16.mxu0 0
    %6489 = vmatpush1.bf16.msra.mxu0 0
    %6490 = vmatprep.mubr.bf16.mxu0 0
    %6491 = vmatmul.mubr.bf16.gmra.mrb[0].mxu0 %v43
    %v6492 = vpop.f32.mrb[0].mxu0
    %v6493 = vadd.f32 0.0, %v6492
    %v6494 = vpop.f32.mrb[0].mxu0
    %v6495 = vadd.f32 0.0, %v6494
    %v6496 = vpop.f32.mrb[0].mxu0
    %v6497 = vadd.f32 0.0, %v6496
    %v6498 = vpop.f32.mrb[0].mxu0
    %v6499 = vadd.f32 0.0, %v6498
    %6500 = vdwg.mxu0
    %6501 = vmatprep.subr.bf16.mxu0 %v3203
    %6502 = vmatpush1.bf16.msra.mxu0 %v3202
    %6503 = vmatprep.subr.bf16.mxu0 %v3299
    %6504 = vmatpush1.bf16.msra.mxu0 %v3298
    %6505 = vmatprep.subr.bf16.mxu0 %v3395
    %6506 = vmatpush1.bf16.msra.mxu0 %v3394
    %6507 = vmatprep.subr.bf16.mxu0 %v3491
    %6508 = vmatpush1.bf16.msra.mxu0 %v3490
    %6509 = vmatprep.subr.bf16.mxu0 %v3587
    %6510 = vmatpush1.bf16.msra.mxu0 %v3586
    %6511 = vmatprep.subr.bf16.mxu0 %v3683
    %6512 = vmatpush1.bf16.msra.mxu0 %v3682
    %6513 = vmatprep.subr.bf16.mxu0 %v3779
    %6514 = vmatpush1.bf16.msra.mxu0 %v3778
    %6515 = vmatprep.subr.bf16.mxu0 %v3875
    %6516 = vmatpush1.bf16.msra.mxu0 %v3874
    %6517 = vmatprep.subr.bf16.mxu0 0
    %6518 = vmatpush1.bf16.msra.mxu0 0
    %6519 = vmatprep.subr.bf16.mxu0 0
    %6520 = vmatpush1.bf16.msra.mxu0 0
    %6521 = vmatprep.subr.bf16.mxu0 0
    %6522 = vmatpush1.bf16.msra.mxu0 0
    %6523 = vmatprep.subr.bf16.mxu0 0
    %6524 = vmatpush1.bf16.msra.mxu0 0
    %6525 = vmatprep.subr.bf16.mxu0 0
    %6526 = vmatpush1.bf16.msra.mxu0 0
    %6527 = vmatprep.subr.bf16.mxu0 0
    %6528 = vmatpush1.bf16.msra.mxu0 0
    %6529 = vmatprep.subr.bf16.mxu0 0
    %6530 = vmatpush1.bf16.msra.mxu0 0
    %6531 = vmatprep.subr.bf16.mxu0 0
    %6532 = vmatpush1.bf16.msra.mxu0 0
    %6533 = vmatprep.mubr.bf16.mxu0 0
    %6534 = vmatmul.mubr.bf16.gmra.mrb[0].mxu0 %v43
    %v6535 = vpop.f32.mrb[0].mxu0
    %v6536 = vadd.f32 0.0, %v6535
    %v6537 = vpop.f32.mrb[0].mxu0
    %v6538 = vadd.f32 0.0, %v6537
    %v6539 = vpop.f32.mrb[0].mxu0
    %v6540 = vadd.f32 0.0, %v6539
    %v6541 = vpop.f32.mrb[0].mxu0
    %v6542 = vadd.f32 0.0, %v6541
    %6543 = vdwg.mxu0
    %6544 = vmatprep.subr.bf16.mxu0 %v3205
    %6545 = vmatpush1.bf16.msra.mxu0 %v3204
    %6546 = vmatprep.subr.bf16.mxu0 %v3301
    %6547 = vmatpush1.bf16.msra.mxu0 %v3300
    %6548 = vmatprep.subr.bf16.mxu0 %v3397
    %6549 = vmatpush1.bf16.msra.mxu0 %v3396
    %6550 = vmatprep.subr.bf16.mxu0 %v3493
    %6551 = vmatpush1.bf16.msra.mxu0 %v3492
    %6552 = vmatprep.subr.bf16.mxu0 %v3589
    %6553 = vmatpush1.bf16.msra.mxu0 %v3588
    %6554 = vmatprep.subr.bf16.mxu0 %v3685
    %6555 = vmatpush1.bf16.msra.mxu0 %v3684
    %6556 = vmatprep.subr.bf16.mxu0 %v3781
    %6557 = vmatpush1.bf16.msra.mxu0 %v3780
    %6558 = vmatprep.subr.bf16.mxu0 %v3877
    %6559 = vmatpush1.bf16.msra.mxu0 %v3876
    %6560 = vmatprep.subr.bf16.mxu0 0
    %6561 = vmatpush1.bf16.msra.mxu0 0
    %6562 = vmatprep.subr.bf16.mxu0 0
    %6563 = vmatpush1.bf16.msra.mxu0 0
    %6564 = vmatprep.subr.bf16.mxu0 0
    %6565 = vmatpush1.bf16.msra.mxu0 0
    %6566 = vmatprep.subr.bf16.mxu0 0
    %6567 = vmatpush1.bf16.msra.mxu0 0
    %6568 = vmatprep.subr.bf16.mxu0 0
    %6569 = vmatpush1.bf16.msra.mxu0 0
    %6570 = vmatprep.subr.bf16.mxu0 0
    %6571 = vmatpush1.bf16.msra.mxu0 0
    %6572 = vmatprep.subr.bf16.mxu0 0
    %6573 = vmatpush1.bf16.msra.mxu0 0
    %6574 = vmatprep.subr.bf16.mxu0 0
    %6575 = vmatpush1.bf16.msra.mxu0 0
    %6576 = vmatprep.mubr.bf16.mxu0 0
    %6577 = vmatmul.mubr.bf16.gmra.mrb[0].mxu0 %v43
    %v6578 = vpop.f32.mrb[0].mxu0
    %v6579 = vadd.f32 0.0, %v6578
    %v6580 = vpop.f32.mrb[0].mxu0
    %v6581 = vadd.f32 0.0, %v6580
    %v6582 = vpop.f32.mrb[0].mxu0
    %v6583 = vadd.f32 0.0, %v6582
    %v6584 = vpop.f32.mrb[0].mxu0
    %v6585 = vadd.f32 0.0, %v6584
    %6586 = vdwg.mxu0
    %6587 = vmatprep.subr.bf16.mxu0 %v3207
    %6588 = vmatpush1.bf16.msra.mxu0 %v3206
    %6589 = vmatprep.subr.bf16.mxu0 %v3303
    %6590 = vmatpush1.bf16.msra.mxu0 %v3302
    %6591 = vmatprep.subr.bf16.mxu0 %v3399
    %6592 = vmatpush1.bf16.msra.mxu0 %v3398
    %6593 = vmatprep.subr.bf16.mxu0 %v3495
    %6594 = vmatpush1.bf16.msra.mxu0 %v3494
    %6595 = vmatprep.subr.bf16.mxu0 %v3591
    %6596 = vmatpush1.bf16.msra.mxu0 %v3590
    %6597 = vmatprep.subr.bf16.mxu0 %v3687
    %6598 = vmatpush1.bf16.msra.mxu0 %v3686
    %6599 = vmatprep.subr.bf16.mxu0 %v3783
    %6600 = vmatpush1.bf16.msra.mxu0 %v3782
    %6601 = vmatprep.subr.bf16.mxu0 %v3879
    %6602 = vmatpush1.bf16.msra.mxu0 %v3878
    %6603 = vmatprep.subr.bf16.mxu0 0
    %6604 = vmatpush1.bf16.msra.mxu0 0
    %6605 = vmatprep.subr.bf16.mxu0 0
    %6606 = vmatpush1.bf16.msra.mxu0 0
    %6607 = vmatprep.subr.bf16.mxu0 0
    %6608 = vmatpush1.bf16.msra.mxu0 0
    %6609 = vmatprep.subr.bf16.mxu0 0
    %6610 = vmatpush1.bf16.msra.mxu0 0
    %6611 = vmatprep.subr.bf16.mxu0 0
    %6612 = vmatpush1.bf16.msra.mxu0 0
    %6613 = vmatprep.subr.bf16.mxu0 0
    %6614 = vmatpush1.bf16.msra.mxu0 0
    %6615 = vmatprep.subr.bf16.mxu0 0
    %6616 = vmatpush1.bf16.msra.mxu0 0
    %6617 = vmatprep.subr.bf16.mxu0 0
    %6618 = vmatpush1.bf16.msra.mxu0 0
    %6619 = vmatprep.mubr.bf16.mxu0 0
    %6620 = vmatmul.mubr.bf16.gmra.mrb[0].mxu0 %v43
    %v6621 = vpop.f32.mrb[0].mxu0
    %v6622 = vadd.f32 0.0, %v6621
    %v6623 = vpop.f32.mrb[0].mxu0
    %v6624 = vadd.f32 0.0, %v6623
    %v6625 = vpop.f32.mrb[0].mxu0
    %v6626 = vadd.f32 0.0, %v6625
    %v6627 = vpop.f32.mrb[0].mxu0
    %v6628 = vadd.f32 0.0, %v6627
    %6629 = vdwg.mxu0
    %6630 = vmatprep.subr.bf16.mxu0 %v3209
    %6631 = vmatpush1.bf16.msra.mxu0 %v3208
    %6632 = vmatprep.subr.bf16.mxu0 %v3305
    %6633 = vmatpush1.bf16.msra.mxu0 %v3304
    %6634 = vmatprep.subr.bf16.mxu0 %v3401
    %6635 = vmatpush1.bf16.msra.mxu0 %v3400
    %6636 = vmatprep.subr.bf16.mxu0 %v3497
    %6637 = vmatpush1.bf16.msra.mxu0 %v3496
    %6638 = vmatprep.subr.bf16.mxu0 %v3593
    %6639 = vmatpush1.bf16.msra.mxu0 %v3592
    %6640 = vmatprep.subr.bf16.mxu0 %v3689
    %6641 = vmatpush1.bf16.msra.mxu0 %v3688
    %6642 = vmatprep.subr.bf16.mxu0 %v3785
    %6643 = vmatpush1.bf16.msra.mxu0 %v3784
    %6644 = vmatprep.subr.bf16.mxu0 %v3881
    %6645 = vmatpush1.bf16.msra.mxu0 %v3880
    %6646 = vmatprep.subr.bf16.mxu0 0
    %6647 = vmatpush1.bf16.msra.mxu0 0
    %6648 = vmatprep.subr.bf16.mxu0 0
    %6649 = vmatpush1.bf16.msra.mxu0 0
    %6650 = vmatprep.subr.bf16.mxu0 0
    %6651 = vmatpush1.bf16.msra.mxu0 0
    %6652 = vmatprep.subr.bf16.mxu0 0
    %6653 = vmatpush1.bf16.msra.mxu0 0
    %6654 = vmatprep.subr.bf16.mxu0 0
    %6655 = vmatpush1.bf16.msra.mxu0 0
    %6656 = vmatprep.subr.bf16.mxu0 0
    %6657 = vmatpush1.bf16.msra.mxu0 0
    %6658 = vmatprep.subr.bf16.mxu0 0
    %6659 = vmatpush1.bf16.msra.mxu0 0
    %6660 = vmatprep.subr.bf16.mxu0 0
    %6661 = vmatpush1.bf16.msra.mxu0 0
    %6662 = vmatprep.mubr.bf16.mxu0 0
    %6663 = vmatmul.mubr.bf16.gmra.mrb[0].mxu0 %v43
    %v6664 = vpop.f32.mrb[0].mxu0
    %v6665 = vadd.f32 0.0, %v6664
    %v6666 = vpop.f32.mrb[0].mxu0
    %v6667 = vadd.f32 0.0, %v6666
    %v6668 = vpop.f32.mrb[0].mxu0
    %v6669 = vadd.f32 0.0, %v6668
    %v6670 = vpop.f32.mrb[0].mxu0
    %v6671 = vadd.f32 0.0, %v6670
    %6672 = vdwg.mxu0
    %6673 = vmatprep.subr.bf16.mxu0 %v3211
    %6674 = vmatpush1.bf16.msra.mxu0 %v3210
    %6675 = vmatprep.subr.bf16.mxu0 %v3307
    %6676 = vmatpush1.bf16.msra.mxu0 %v3306
    %6677 = vmatprep.subr.bf16.mxu0 %v3403
    %6678 = vmatpush1.bf16.msra.mxu0 %v3402
    %6679 = vmatprep.subr.bf16.mxu0 %v3499
    %6680 = vmatpush1.bf16.msra.mxu0 %v3498
    %6681 = vmatprep.subr.bf16.mxu0 %v3595
    %6682 = vmatpush1.bf16.msra.mxu0 %v3594
    %6683 = vmatprep.subr.bf16.mxu0 %v3691
    %6684 = vmatpush1.bf16.msra.mxu0 %v3690
    %6685 = vmatprep.subr.bf16.mxu0 %v3787
    %6686 = vmatpush1.bf16.msra.mxu0 %v3786
    %6687 = vmatprep.subr.bf16.mxu0 %v3883
    %6688 = vmatpush1.bf16.msra.mxu0 %v3882
    %6689 = vmatprep.subr.bf16.mxu0 0
    %6690 = vmatpush1.bf16.msra.mxu0 0
    %6691 = vmatprep.subr.bf16.mxu0 0
    %6692 = vmatpush1.bf16.msra.mxu0 0
    %6693 = vmatprep.subr.bf16.mxu0 0
    %6694 = vmatpush1.bf16.msra.mxu0 0
    %6695 = vmatprep.subr.bf16.mxu0 0
    %6696 = vmatpush1.bf16.msra.mxu0 0
    %6697 = vmatprep.subr.bf16.mxu0 0
    %6698 = vmatpush1.bf16.msra.mxu0 0
    %6699 = vmatprep.subr.bf16.mxu0 0
    %6700 = vmatpush1.bf16.msra.mxu0 0
    %6701 = vmatprep.subr.bf16.mxu0 0
    %6702 = vmatpush1.bf16.msra.mxu0 0
    %6703 = vmatprep.subr.bf16.mxu0 0
    %6704 = vmatpush1.bf16.msra.mxu0 0
    %6705 = vmatprep.mubr.bf16.mxu0 0
    %6706 = vmatmul.mubr.bf16.gmra.mrb[0].mxu0 %v43
    %v6707 = vpop.f32.mrb[0].mxu0
    %v6708 = vadd.f32 0.0, %v6707
    %v6709 = vpop.f32.mrb[0].mxu0
    %v6710 = vadd.f32 0.0, %v6709
    %v6711 = vpop.f32.mrb[0].mxu0
    %v6712 = vadd.f32 0.0, %v6711
    %v6713 = vpop.f32.mrb[0].mxu0
    %v6714 = vadd.f32 0.0, %v6713
    %6715 = vdwg.mxu0
    %v6716 = vpack.c.bf16 %v4691, %v4687
    %v6717 = vpack.c.bf16 %v4693, %v4689
    %v6718 = vpack.c.bf16 %v4734, %v4730
    %v6719 = vpack.c.bf16 %v4736, %v4732
    %v6720 = vpack.c.bf16 %v4777, %v4773
    %v6721 = vpack.c.bf16 %v4779, %v4775
    %v6722 = vpack.c.bf16 %v4820, %v4816
    %v6723 = vpack.c.bf16 %v4822, %v4818
    %v6724 = vpack.c.bf16 %v4863, %v4859
    %v6725 = vpack.c.bf16 %v4865, %v4861
    %v6726 = vpack.c.bf16 %v4906, %v4902
    %v6727 = vpack.c.bf16 %v4908, %v4904
    %v6728 = vpack.c.bf16 %v4949, %v4945
    %v6729 = vpack.c.bf16 %v4951, %v4947
    %v6730 = vpack.c.bf16 %v4992, %v4988
    %v6731 = vpack.c.bf16 %v4994, %v4990
    %v6732 = vpack.c.bf16 %v5035, %v5031
    %v6733 = vpack.c.bf16 %v5037, %v5033
    %v6734 = vpack.c.bf16 %v5078, %v5074
    %v6735 = vpack.c.bf16 %v5080, %v5076
    %v6736 = vpack.c.bf16 %v5121, %v5117
    %v6737 = vpack.c.bf16 %v5123, %v5119
    %v6738 = vpack.c.bf16 %v5164, %v5160
    %v6739 = vpack.c.bf16 %v5166, %v5162
    %v6740 = vpack.c.bf16 %v5207, %v5203
    %v6741 = vpack.c.bf16 %v5209, %v5205
    %v6742 = vpack.c.bf16 %v5250, %v5246
    %v6743 = vpack.c.bf16 %v5252, %v5248
    %v6744 = vpack.c.bf16 %v5293, %v5289
    %v6745 = vpack.c.bf16 %v5295, %v5291
    %v6746 = vpack.c.bf16 %v5336, %v5332
    %v6747 = vpack.c.bf16 %v5338, %v5334
    %v6748 = vpack.c.bf16 %v5379, %v5375
    %v6749 = vpack.c.bf16 %v5381, %v5377
    %v6750 = vpack.c.bf16 %v5422, %v5418
    %v6751 = vpack.c.bf16 %v5424, %v5420
    %v6752 = vpack.c.bf16 %v5465, %v5461
    %v6753 = vpack.c.bf16 %v5467, %v5463
    %v6754 = vpack.c.bf16 %v5508, %v5504
    %v6755 = vpack.c.bf16 %v5510, %v5506
    %v6756 = vpack.c.bf16 %v5551, %v5547
    %v6757 = vpack.c.bf16 %v5553, %v5549
    %v6758 = vpack.c.bf16 %v5594, %v5590
    %v6759 = vpack.c.bf16 %v5596, %v5592
    %v6760 = vpack.c.bf16 %v5637, %v5633
    %v6761 = vpack.c.bf16 %v5639, %v5635
    %v6762 = vpack.c.bf16 %v5680, %v5676
    %v6763 = vpack.c.bf16 %v5682, %v5678
    %v6764 = vpack.c.bf16 %v5723, %v5719
    %v6765 = vpack.c.bf16 %v5725, %v5721
    %v6766 = vpack.c.bf16 %v5766, %v5762
    %v6767 = vpack.c.bf16 %v5768, %v5764
    %v6768 = vpack.c.bf16 %v5809, %v5805
    %v6769 = vpack.c.bf16 %v5811, %v5807
    %v6770 = vpack.c.bf16 %v5852, %v5848
    %v6771 = vpack.c.bf16 %v5854, %v5850
    %v6772 = vpack.c.bf16 %v5895, %v5891
    %v6773 = vpack.c.bf16 %v5897, %v5893
    %v6774 = vpack.c.bf16 %v5938, %v5934
    %v6775 = vpack.c.bf16 %v5940, %v5936
    %v6776 = vpack.c.bf16 %v5981, %v5977
    %v6777 = vpack.c.bf16 %v5983, %v5979
    %v6778 = vpack.c.bf16 %v6024, %v6020
    %v6779 = vpack.c.bf16 %v6026, %v6022
    %v6780 = vpack.c.bf16 %v6067, %v6063
    %v6781 = vpack.c.bf16 %v6069, %v6065
    %v6782 = vpack.c.bf16 %v6110, %v6106
    %v6783 = vpack.c.bf16 %v6112, %v6108
    %v6784 = vpack.c.bf16 %v6153, %v6149
    %v6785 = vpack.c.bf16 %v6155, %v6151
    %v6786 = vpack.c.bf16 %v6196, %v6192
    %v6787 = vpack.c.bf16 %v6198, %v6194
    %v6788 = vpack.c.bf16 %v6239, %v6235
    %v6789 = vpack.c.bf16 %v6241, %v6237
    %v6790 = vpack.c.bf16 %v6282, %v6278
    %v6791 = vpack.c.bf16 %v6284, %v6280
    %v6792 = vpack.c.bf16 %v6325, %v6321
    %v6793 = vpack.c.bf16 %v6327, %v6323
    %v6794 = vpack.c.bf16 %v6368, %v6364
    %v6795 = vpack.c.bf16 %v6370, %v6366
    %v6796 = vpack.c.bf16 %v6411, %v6407
    %v6797 = vpack.c.bf16 %v6413, %v6409
    %v6798 = vpack.c.bf16 %v6454, %v6450
    %v6799 = vpack.c.bf16 %v6456, %v6452
    %v6800 = vpack.c.bf16 %v6497, %v6493
    %v6801 = vpack.c.bf16 %v6499, %v6495
    %v6802 = vpack.c.bf16 %v6540, %v6536
    %v6803 = vpack.c.bf16 %v6542, %v6538
    %v6804 = vpack.c.bf16 %v6583, %v6579
    %v6805 = vpack.c.bf16 %v6585, %v6581
    %v6806 = vpack.c.bf16 %v6626, %v6622
    %v6807 = vpack.c.bf16 %v6628, %v6624
    %v6808 = vpack.c.bf16 %v6669, %v6665
    %v6809 = vpack.c.bf16 %v6671, %v6667
    %v6810 = vpack.c.bf16 %v6712, %v6708
    %v6811 = vpack.c.bf16 %v6714, %v6710
    %v6908 = vunpack.c.l.b16 %v6716
    %v6909 = vunpack.c.l.b16 %v6717
    %v6910 = vunpack.c.l.b16 %v6718
    %v6911 = vunpack.c.l.b16 %v6719
    %v6912 = vunpack.c.l.b16 %v6720
    %v6913 = vunpack.c.l.b16 %v6721
    %v6914 = vunpack.c.l.b16 %v6722
    %v6915 = vunpack.c.l.b16 %v6723
    %v6916 = vunpack.c.l.b16 %v6724
    %v6917 = vunpack.c.l.b16 %v6725
    %v6918 = vunpack.c.l.b16 %v6726
    %v6919 = vunpack.c.l.b16 %v6727
    %v6920 = vunpack.c.l.b16 %v6728
    %v6921 = vunpack.c.l.b16 %v6729
    %v6922 = vunpack.c.l.b16 %v6730
    %v6923 = vunpack.c.l.b16 %v6731
    %v6924 = vunpack.c.l.b16 %v6732
    %v6925 = vunpack.c.l.b16 %v6733
    %v6926 = vunpack.c.l.b16 %v6734
    %v6927 = vunpack.c.l.b16 %v6735
    %v6928 = vunpack.c.l.b16 %v6736
    %v6929 = vunpack.c.l.b16 %v6737
    %v6930 = vunpack.c.l.b16 %v6738
    %v6931 = vunpack.c.l.b16 %v6739
    %v6932 = vunpack.c.l.b16 %v6740
    %v6933 = vunpack.c.l.b16 %v6741
    %v6934 = vunpack.c.l.b16 %v6742
    %v6935 = vunpack.c.l.b16 %v6743
    %v6936 = vunpack.c.l.b16 %v6744
    %v6937 = vunpack.c.l.b16 %v6745
    %v6938 = vunpack.c.l.b16 %v6746
    %v6939 = vunpack.c.l.b16 %v6747
    %v6940 = vunpack.c.l.b16 %v6748
    %v6941 = vunpack.c.l.b16 %v6749
    %v6942 = vunpack.c.l.b16 %v6750
    %v6943 = vunpack.c.l.b16 %v6751
    %v6944 = vunpack.c.l.b16 %v6752
    %v6945 = vunpack.c.l.b16 %v6753
    %v6946 = vunpack.c.l.b16 %v6754
    %v6947 = vunpack.c.l.b16 %v6755
    %v6948 = vunpack.c.l.b16 %v6756
    %v6949 = vunpack.c.l.b16 %v6757
    %v6950 = vunpack.c.l.b16 %v6758
    %v6951 = vunpack.c.l.b16 %v6759
    %v6952 = vunpack.c.l.b16 %v6760
    %v6953 = vunpack.c.l.b16 %v6761
    %v6954 = vunpack.c.l.b16 %v6762
    %v6955 = vunpack.c.l.b16 %v6763
    %v6956 = vunpack.c.l.b16 %v6764
    %v6957 = vunpack.c.l.b16 %v6765
    %v6958 = vunpack.c.l.b16 %v6766
    %v6959 = vunpack.c.l.b16 %v6767
    %v6960 = vunpack.c.l.b16 %v6768
    %v6961 = vunpack.c.l.b16 %v6769
    %v6962 = vunpack.c.l.b16 %v6770
    %v6963 = vunpack.c.l.b16 %v6771
    %v6964 = vunpack.c.l.b16 %v6772
    %v6965 = vunpack.c.l.b16 %v6773
    %v6966 = vunpack.c.l.b16 %v6774
    %v6967 = vunpack.c.l.b16 %v6775
    %v6968 = vunpack.c.l.b16 %v6776
    %v6969 = vunpack.c.l.b16 %v6777
    %v6970 = vunpack.c.l.b16 %v6778
    %v6971 = vunpack.c.l.b16 %v6779
    %v6972 = vunpack.c.l.b16 %v6780
    %v6973 = vunpack.c.l.b16 %v6781
    %v6974 = vunpack.c.l.b16 %v6782
    %v6975 = vunpack.c.l.b16 %v6783
    %v6976 = vunpack.c.l.b16 %v6784
    %v6977 = vunpack.c.l.b16 %v6785
    %v6978 = vunpack.c.l.b16 %v6786
    %v6979 = vunpack.c.l.b16 %v6787
    %v6980 = vunpack.c.l.b16 %v6788
    %v6981 = vunpack.c.l.b16 %v6789
    %v6982 = vunpack.c.l.b16 %v6790
    %v6983 = vunpack.c.l.b16 %v6791
    %v6984 = vunpack.c.l.b16 %v6792
    %v6985 = vunpack.c.l.b16 %v6793
    %v6986 = vunpack.c.l.b16 %v6794
    %v6987 = vunpack.c.l.b16 %v6795
    %v6988 = vunpack.c.l.b16 %v6796
    %v6989 = vunpack.c.l.b16 %v6797
    %v6990 = vunpack.c.l.b16 %v6798
    %v6991 = vunpack.c.l.b16 %v6799
    %v6992 = vunpack.c.l.b16 %v6800
    %v6993 = vunpack.c.l.b16 %v6801
    %v6994 = vunpack.c.l.b16 %v6802
    %v6995 = vunpack.c.l.b16 %v6803
    %v6996 = vunpack.c.l.b16 %v6804
    %v6997 = vunpack.c.l.b16 %v6805
    %v6998 = vunpack.c.l.b16 %v6806
    %v6999 = vunpack.c.l.b16 %v6807
    %v7000 = vunpack.c.l.b16 %v6808
    %v7001 = vunpack.c.l.b16 %v6809
    %v7002 = vunpack.c.l.b16 %v6810
    %v7003 = vunpack.c.l.b16 %v6811
    %v7004 = vunpack.c.h.b16 %v6716
    %v7005 = vunpack.c.h.b16 %v6717
    %v7006 = vunpack.c.h.b16 %v6718
    %v7007 = vunpack.c.h.b16 %v6719
    %v7008 = vunpack.c.h.b16 %v6720
    %v7009 = vunpack.c.h.b16 %v6721
    %v7010 = vunpack.c.h.b16 %v6722
    %v7011 = vunpack.c.h.b16 %v6723
    %v7012 = vunpack.c.h.b16 %v6724
    %v7013 = vunpack.c.h.b16 %v6725
    %v7014 = vunpack.c.h.b16 %v6726
    %v7015 = vunpack.c.h.b16 %v6727
    %v7016 = vunpack.c.h.b16 %v6728
    %v7017 = vunpack.c.h.b16 %v6729
    %v7018 = vunpack.c.h.b16 %v6730
    %v7019 = vunpack.c.h.b16 %v6731
    %v7020 = vunpack.c.h.b16 %v6732
    %v7021 = vunpack.c.h.b16 %v6733
    %v7022 = vunpack.c.h.b16 %v6734
    %v7023 = vunpack.c.h.b16 %v6735
    %v7024 = vunpack.c.h.b16 %v6736
    %v7025 = vunpack.c.h.b16 %v6737
    %v7026 = vunpack.c.h.b16 %v6738
    %v7027 = vunpack.c.h.b16 %v6739
    %v7028 = vunpack.c.h.b16 %v6740
    %v7029 = vunpack.c.h.b16 %v6741
    %v7030 = vunpack.c.h.b16 %v6742
    %v7031 = vunpack.c.h.b16 %v6743
    %v7032 = vunpack.c.h.b16 %v6744
    %v7033 = vunpack.c.h.b16 %v6745
    %v7034 = vunpack.c.h.b16 %v6746
    %v7035 = vunpack.c.h.b16 %v6747
    %v7036 = vunpack.c.h.b16 %v6748
    %v7037 = vunpack.c.h.b16 %v6749
    %v7038 = vunpack.c.h.b16 %v6750
    %v7039 = vunpack.c.h.b16 %v6751
    %v7040 = vunpack.c.h.b16 %v6752
    %v7041 = vunpack.c.h.b16 %v6753
    %v7042 = vunpack.c.h.b16 %v6754
    %v7043 = vunpack.c.h.b16 %v6755
    %v7044 = vunpack.c.h.b16 %v6756
    %v7045 = vunpack.c.h.b16 %v6757
    %v7046 = vunpack.c.h.b16 %v6758
    %v7047 = vunpack.c.h.b16 %v6759
    %v7048 = vunpack.c.h.b16 %v6760
    %v7049 = vunpack.c.h.b16 %v6761
    %v7050 = vunpack.c.h.b16 %v6762
    %v7051 = vunpack.c.h.b16 %v6763
    %v7052 = vunpack.c.h.b16 %v6764
    %v7053 = vunpack.c.h.b16 %v6765
    %v7054 = vunpack.c.h.b16 %v6766
    %v7055 = vunpack.c.h.b16 %v6767
    %v7056 = vunpack.c.h.b16 %v6768
    %v7057 = vunpack.c.h.b16 %v6769
    %v7058 = vunpack.c.h.b16 %v6770
    %v7059 = vunpack.c.h.b16 %v6771
    %v7060 = vunpack.c.h.b16 %v6772
    %v7061 = vunpack.c.h.b16 %v6773
    %v7062 = vunpack.c.h.b16 %v6774
    %v7063 = vunpack.c.h.b16 %v6775
    %v7064 = vunpack.c.h.b16 %v6776
    %v7065 = vunpack.c.h.b16 %v6777
    %v7066 = vunpack.c.h.b16 %v6778
    %v7067 = vunpack.c.h.b16 %v6779
    %v7068 = vunpack.c.h.b16 %v6780
    %v7069 = vunpack.c.h.b16 %v6781
    %v7070 = vunpack.c.h.b16 %v6782
    %v7071 = vunpack.c.h.b16 %v6783
    %v7072 = vunpack.c.h.b16 %v6784
    %v7073 = vunpack.c.h.b16 %v6785
    %v7074 = vunpack.c.h.b16 %v6786
    %v7075 = vunpack.c.h.b16 %v6787
    %v7076 = vunpack.c.h.b16 %v6788
    %v7077 = vunpack.c.h.b16 %v6789
    %v7078 = vunpack.c.h.b16 %v6790
    %v7079 = vunpack.c.h.b16 %v6791
    %v7080 = vunpack.c.h.b16 %v6792
    %v7081 = vunpack.c.h.b16 %v6793
    %v7082 = vunpack.c.h.b16 %v6794
    %v7083 = vunpack.c.h.b16 %v6795
    %v7084 = vunpack.c.h.b16 %v6796
    %v7085 = vunpack.c.h.b16 %v6797
    %v7086 = vunpack.c.h.b16 %v6798
    %v7087 = vunpack.c.h.b16 %v6799
    %v7088 = vunpack.c.h.b16 %v6800
    %v7089 = vunpack.c.h.b16 %v6801
    %v7090 = vunpack.c.h.b16 %v6802
    %v7091 = vunpack.c.h.b16 %v6803
    %v7092 = vunpack.c.h.b16 %v6804
    %v7093 = vunpack.c.h.b16 %v6805
    %v7094 = vunpack.c.h.b16 %v6806
    %v7095 = vunpack.c.h.b16 %v6807
    %v7096 = vunpack.c.h.b16 %v6808
    %v7097 = vunpack.c.h.b16 %v6809
    %v7098 = vunpack.c.h.b16 %v6810
    %v7099 = vunpack.c.h.b16 %v6811
    %v7100 = vpack.c.b16 %v6909, %v6908
    %v7101 = vpack.c.b16 %v6911, %v6910
    %v7102 = vpack.c.b16 %v6913, %v6912
    %v7103 = vpack.c.b16 %v6915, %v6914
    %v7104 = vpack.c.b16 %v6917, %v6916
    %v7105 = vpack.c.b16 %v6919, %v6918
    %v7106 = vpack.c.b16 %v6921, %v6920
    %v7107 = vpack.c.b16 %v6923, %v6922
    %v7108 = vpack.c.b16 %v6925, %v6924
    %v7109 = vpack.c.b16 %v6927, %v6926
    %v7110 = vpack.c.b16 %v6929, %v6928
    %v7111 = vpack.c.b16 %v6931, %v6930
    %v7112 = vpack.c.b16 %v6933, %v6932
    %v7113 = vpack.c.b16 %v6935, %v6934
    %v7114 = vpack.c.b16 %v6937, %v6936
    %v7115 = vpack.c.b16 %v6939, %v6938
    %v7116 = vpack.c.b16 %v6941, %v6940
    %v7117 = vpack.c.b16 %v6943, %v6942
    %v7118 = vpack.c.b16 %v6945, %v6944
    %v7119 = vpack.c.b16 %v6947, %v6946
    %v7120 = vpack.c.b16 %v6949, %v6948
    %v7121 = vpack.c.b16 %v6951, %v6950
    %v7122 = vpack.c.b16 %v6953, %v6952
    %v7123 = vpack.c.b16 %v6955, %v6954
    %v7124 = vpack.c.b16 %v6957, %v6956
    %v7125 = vpack.c.b16 %v6959, %v6958
    %v7126 = vpack.c.b16 %v6961, %v6960
    %v7127 = vpack.c.b16 %v6963, %v6962
    %v7128 = vpack.c.b16 %v6965, %v6964
    %v7129 = vpack.c.b16 %v6967, %v6966
    %v7130 = vpack.c.b16 %v6969, %v6968
    %v7131 = vpack.c.b16 %v6971, %v6970
    %v7132 = vpack.c.b16 %v6973, %v6972
    %v7133 = vpack.c.b16 %v6975, %v6974
    %v7134 = vpack.c.b16 %v6977, %v6976
    %v7135 = vpack.c.b16 %v6979, %v6978
    %v7136 = vpack.c.b16 %v6981, %v6980
    %v7137 = vpack.c.b16 %v6983, %v6982
    %v7138 = vpack.c.b16 %v6985, %v6984
    %v7139 = vpack.c.b16 %v6987, %v6986
    %v7140 = vpack.c.b16 %v6989, %v6988
    %v7141 = vpack.c.b16 %v6991, %v6990
    %v7142 = vpack.c.b16 %v6993, %v6992
    %v7143 = vpack.c.b16 %v6995, %v6994
    %v7144 = vpack.c.b16 %v6997, %v6996
    %v7145 = vpack.c.b16 %v6999, %v6998
    %v7146 = vpack.c.b16 %v7001, %v7000
    %v7147 = vpack.c.b16 %v7003, %v7002
    %v7148 = vpack.c.b16 %v7005, %v7004
    %v7149 = vpack.c.b16 %v7007, %v7006
    %v7150 = vpack.c.b16 %v7009, %v7008
    %v7151 = vpack.c.b16 %v7011, %v7010
    %v7152 = vpack.c.b16 %v7013, %v7012
    %v7153 = vpack.c.b16 %v7015, %v7014
    %v7154 = vpack.c.b16 %v7017, %v7016
    %v7155 = vpack.c.b16 %v7019, %v7018
    %v7156 = vpack.c.b16 %v7021, %v7020
    %v7157 = vpack.c.b16 %v7023, %v7022
    %v7158 = vpack.c.b16 %v7025, %v7024
    %v7159 = vpack.c.b16 %v7027, %v7026
    %v7160 = vpack.c.b16 %v7029, %v7028
    %v7161 = vpack.c.b16 %v7031, %v7030
    %v7162 = vpack.c.b16 %v7033, %v7032
    %v7163 = vpack.c.b16 %v7035, %v7034
    %v7164 = vpack.c.b16 %v7037, %v7036
    %v7165 = vpack.c.b16 %v7039, %v7038
    %v7166 = vpack.c.b16 %v7041, %v7040
    %v7167 = vpack.c.b16 %v7043, %v7042
    %v7168 = vpack.c.b16 %v7045, %v7044
    %v7169 = vpack.c.b16 %v7047, %v7046
    %v7170 = vpack.c.b16 %v7049, %v7048
    %v7171 = vpack.c.b16 %v7051, %v7050
    %v7172 = vpack.c.b16 %v7053, %v7052
    %v7173 = vpack.c.b16 %v7055, %v7054
    %v7174 = vpack.c.b16 %v7057, %v7056
    %v7175 = vpack.c.b16 %v7059, %v7058
    %v7176 = vpack.c.b16 %v7061, %v7060
    %v7177 = vpack.c.b16 %v7063, %v7062
    %v7178 = vpack.c.b16 %v7065, %v7064
    %v7179 = vpack.c.b16 %v7067, %v7066
    %v7180 = vpack.c.b16 %v7069, %v7068
    %v7181 = vpack.c.b16 %v7071, %v7070
    %v7182 = vpack.c.b16 %v7073, %v7072
    %v7183 = vpack.c.b16 %v7075, %v7074
    %v7184 = vpack.c.b16 %v7077, %v7076
    %v7185 = vpack.c.b16 %v7079, %v7078
    %v7186 = vpack.c.b16 %v7081, %v7080
    %v7187 = vpack.c.b16 %v7083, %v7082
    %v7188 = vpack.c.b16 %v7085, %v7084
    %v7189 = vpack.c.b16 %v7087, %v7086
    %v7190 = vpack.c.b16 %v7089, %v7088
    %v7191 = vpack.c.b16 %v7091, %v7090
    %v7192 = vpack.c.b16 %v7093, %v7092
    %v7193 = vpack.c.b16 %v7095, %v7094
    %v7194 = vpack.c.b16 %v7097, %v7096
    %v7195 = vpack.c.b16 %v7099, %v7098
    %7292 = vst [vmem:[#allocation7] sm:$0xff] %v7100
    %7293 = vst [vmem:[#allocation7 + $0x8] sm:$0xff] %v7101
    %7294 = vst [vmem:[#allocation7 + $0x10] sm:$0xff] %v7102
    %7295 = vst [vmem:[#allocation7 + $0x18] sm:$0xff] %v7103
    %7296 = vst [vmem:[#allocation7 + $0x20] sm:$0xff] %v7104
    %7297 = vst [vmem:[#allocation7 + $0x28] sm:$0xff] %v7105
    %7298 = vst [vmem:[#allocation7 + $0x30] sm:$0xff] %v7106
    %7299 = vst [vmem:[#allocation7 + $0x38] sm:$0xff] %v7107
    %7300 = vst [vmem:[#allocation7 + $0x40] sm:$0xff] %v7108
    %7301 = vst [vmem:[#allocation7 + $0x48] sm:$0xff] %v7109
    %7302 = vst [vmem:[#allocation7 + $0x50] sm:$0xff] %v7110
    %7303 = vst [vmem:[#allocation7 + $0x58] sm:$0xff] %v7111
    %7304 = vst [vmem:[#allocation7 + $0x60] sm:$0xff] %v7112
    %7305 = vst [vmem:[#allocation7 + $0x68] sm:$0xff] %v7113
    %7306 = vst [vmem:[#allocation7 + $0x70] sm:$0xff] %v7114
    %7307 = vst [vmem:[#allocation7 + $0x78] sm:$0xff] %v7115
    %7308 = vst [vmem:[#allocation7 + $0x80] sm:$0xff] %v7116
    %7309 = vst [vmem:[#allocation7 + $0x88] sm:$0xff] %v7117
    %7310 = vst [vmem:[#allocation7 + $0x90] sm:$0xff] %v7118
    %7311 = vst [vmem:[#allocation7 + $0x98] sm:$0xff] %v7119
    %7312 = vst [vmem:[#allocation7 + $0xa0] sm:$0xff] %v7120
    %7313 = vst [vmem:[#allocation7 + $0xa8] sm:$0xff] %v7121
    %7314 = vst [vmem:[#allocation7 + $0xb0] sm:$0xff] %v7122
    %7315 = vst [vmem:[#allocation7 + $0xb8] sm:$0xff] %v7123
    %7316 = vst [vmem:[#allocation7 + $0xc0] sm:$0xff] %v7124
    %7317 = vst [vmem:[#allocation7 + $0xc8] sm:$0xff] %v7125
    %7318 = vst [vmem:[#allocation7 + $0xd0] sm:$0xff] %v7126
    %7319 = vst [vmem:[#allocation7 + $0xd8] sm:$0xff] %v7127
    %7320 = vst [vmem:[#allocation7 + $0xe0] sm:$0xff] %v7128
    %7321 = vst [vmem:[#allocation7 + $0xe8] sm:$0xff] %v7129
    %7322 = vst [vmem:[#allocation7 + $0xf0] sm:$0xff] %v7130
    %7323 = vst [vmem:[#allocation7 + $0xf8] sm:$0xff] %v7131
    %7324 = vst [vmem:[#allocation7 + $0x100] sm:$0xff] %v7132
    %7325 = vst [vmem:[#allocation7 + $0x108] sm:$0xff] %v7133
    %7326 = vst [vmem:[#allocation7 + $0x110] sm:$0xff] %v7134
    %7327 = vst [vmem:[#allocation7 + $0x118] sm:$0xff] %v7135
    %7328 = vst [vmem:[#allocation7 + $0x120] sm:$0xff] %v7136
    %7329 = vst [vmem:[#allocation7 + $0x128] sm:$0xff] %v7137
    %7330 = vst [vmem:[#allocation7 + $0x130] sm:$0xff] %v7138
    %7331 = vst [vmem:[#allocation7 + $0x138] sm:$0xff] %v7139
    %7332 = vst [vmem:[#allocation7 + $0x140] sm:$0xff] %v7140
    %7333 = vst [vmem:[#allocation7 + $0x148] sm:$0xff] %v7141
    %7334 = vst [vmem:[#allocation7 + $0x150] sm:$0xff] %v7142
    %7335 = vst [vmem:[#allocation7 + $0x158] sm:$0xff] %v7143
    %7336 = vst [vmem:[#allocation7 + $0x160] sm:$0xff] %v7144
    %7337 = vst [vmem:[#allocation7 + $0x168] sm:$0xff] %v7145
    %7338 = vst [vmem:[#allocation7 + $0x170] sm:$0xff] %v7146
    %7339 = vst [vmem:[#allocation7 + $0x178] sm:$0xff] %v7147
    %7340 = vst [vmem:[#allocation7 + $0x180] sm:$0xff] %v7148
    %7341 = vst [vmem:[#allocation7 + $0x188] sm:$0xff] %v7149
    %7342 = vst [vmem:[#allocation7 + $0x190] sm:$0xff] %v7150
    %7343 = vst [vmem:[#allocation7 + $0x198] sm:$0xff] %v7151
    %7344 = vst [vmem:[#allocation7 + $0x1a0] sm:$0xff] %v7152
    %7345 = vst [vmem:[#allocation7 + $0x1a8] sm:$0xff] %v7153
    %7346 = vst [vmem:[#allocation7 + $0x1b0] sm:$0xff] %v7154
    %7347 = vst [vmem:[#allocation7 + $0x1b8] sm:$0xff] %v7155
    %7348 = vst [vmem:[#allocation7 + $0x1c0] sm:$0xff] %v7156
    %7349 = vst [vmem:[#allocation7 + $0x1c8] sm:$0xff] %v7157
    %7350 = vst [vmem:[#allocation7 + $0x1d0] sm:$0xff] %v7158
    %7351 = vst [vmem:[#allocation7 + $0x1d8] sm:$0xff] %v7159
    %7352 = vst [vmem:[#allocation7 + $0x1e0] sm:$0xff] %v7160
    %7353 = vst [vmem:[#allocation7 + $0x1e8] sm:$0xff] %v7161
    %7354 = vst [vmem:[#allocation7 + $0x1f0] sm:$0xff] %v7162
    %7355 = vst [vmem:[#allocation7 + $0x1f8] sm:$0xff] %v7163
    %7356 = vst [vmem:[#allocation7 + $0x200] sm:$0xff] %v7164
    %7357 = vst [vmem:[#allocation7 + $0x208] sm:$0xff] %v7165
    %7358 = vst [vmem:[#allocation7 + $0x210] sm:$0xff] %v7166
    %7359 = vst [vmem:[#allocation7 + $0x218] sm:$0xff] %v7167
    %7360 = vst [vmem:[#allocation7 + $0x220] sm:$0xff] %v7168
    %7361 = vst [vmem:[#allocation7 + $0x228] sm:$0xff] %v7169
    %7362 = vst [vmem:[#allocation7 + $0x230] sm:$0xff] %v7170
    %7363 = vst [vmem:[#allocation7 + $0x238] sm:$0xff] %v7171
    %7364 = vst [vmem:[#allocation7 + $0x240] sm:$0xff] %v7172
    %7365 = vst [vmem:[#allocation7 + $0x248] sm:$0xff] %v7173
    %7366 = vst [vmem:[#allocation7 + $0x250] sm:$0xff] %v7174
    %7367 = vst [vmem:[#allocation7 + $0x258] sm:$0xff] %v7175
    %7368 = vst [vmem:[#allocation7 + $0x260] sm:$0xff] %v7176
    %7369 = vst [vmem:[#allocation7 + $0x268] sm:$0xff] %v7177
    %7370 = vst [vmem:[#allocation7 + $0x270] sm:$0xff] %v7178
    %7371 = vst [vmem:[#allocation7 + $0x278] sm:$0xff] %v7179
    %7372 = vst [vmem:[#allocation7 + $0x280] sm:$0xff] %v7180
    %7373 = vst [vmem:[#allocation7 + $0x288] sm:$0xff] %v7181
    %7374 = vst [vmem:[#allocation7 + $0x290] sm:$0xff] %v7182
    %7375 = vst [vmem:[#allocation7 + $0x298] sm:$0xff] %v7183
    %7376 = vst [vmem:[#allocation7 + $0x2a0] sm:$0xff] %v7184
    %7377 = vst [vmem:[#allocation7 + $0x2a8] sm:$0xff] %v7185
    %7378 = vst [vmem:[#allocation7 + $0x2b0] sm:$0xff] %v7186
    %7379 = vst [vmem:[#allocation7 + $0x2b8] sm:$0xff] %v7187
    %7380 = vst [vmem:[#allocation7 + $0x2c0] sm:$0xff] %v7188
    %7381 = vst [vmem:[#allocation7 + $0x2c8] sm:$0xff] %v7189
    %7382 = vst [vmem:[#allocation7 + $0x2d0] sm:$0xff] %v7190
    %7383 = vst [vmem:[#allocation7 + $0x2d8] sm:$0xff] %v7191
    %7384 = vst [vmem:[#allocation7 + $0x2e0] sm:$0xff] %v7192
    %7385 = vst [vmem:[#allocation7 + $0x2e8] sm:$0xff] %v7193
    %7386 = vst [vmem:[#allocation7 + $0x2f0] sm:$0xff] %v7194
    %7387 = vst [vmem:[#allocation7 + $0x2f8] sm:$0xff] %v7195
    // Predicated region
    $region18: #{tpu_custom_call.1} parent=1 // pred_check
      _
    $region19: #{tpu_custom_call.1} parent=1 // pred_check_branch
      %7389 = sbr.rel (0) target = $region21
    $region20: #{tpu_custom_call.1} parent=1 // pred_region
      %s7391 = ssub.s32 12288, 12288
      %7392 = vsyncadd [#allocation4], %s7391
      %s7393 = sshll.u32 [#allocation7], 4
      %s7394 = int_to_ptr.vmem [resolvable:$true] %s7393
      %7399 = dma.vmem_to_hbm [thread:$0]  %s7394, 12288, %s2, [#allocation4], 6144, 6144, 384
    $region21: #{tpu_custom_call.1} parent=1 // pred_fallthru
      _
    // Predicated region
    $region22: #{tpu_custom_call.1} parent=1 // pred_check
      _
    $region23: #{tpu_custom_call.1} parent=1 // pred_check_branch
      %7401 = sbr.rel (0) target = $region25
    $region24: #{tpu_custom_call.1} parent=1 // pred_region
      %7402 = dma.done [#allocation4], 12288
    $region25: #{tpu_custom_call.1} parent=1 // pred_fallthru
      _
    %7403 = vsyncpa [#allocation3], 1
    %7404 = vsyncpa [#allocation6], 1
    %7405 = vsyncpa [#allocation4], 1

</llo_original>
